<compile_context>
chip_gen: v7x
topology: tpu7x:2x2x1
jax: 0.10.0
libtpu: 0.0.40
codegen_flags: <defaults>
</compile_context>

<pallas_src>
import jax
import jax.numpy as jnp
from jax.experimental import pallas as pl
from jax.experimental.pallas import tpu as pltpu

IN = 784          # input / reconstruction dim
HID = 400         # true hidden dim
HID_PAD = 512     # lane-dense hidden dim (4 x 128)
LATENT = 20       # true latent dim
LAT_PAD = 128     # lane-padded latent dim == fused head slab width


# ----------------------------------------------------------------------------
# Kernel
# ----------------------------------------------------------------------------
def _vae_kernel(x_ref, eps_ref,
                w1_ref, b1_ref,
                wh_ref, bh_ref,
                w3_ref, b3_ref,
                w4_ref, b4_ref,
                recon_ref, head_ref):
    # x_ref: (TB, 784) f32 or bf16; eps_ref: (TB, 128) bf16 (lanes >= 20 unused)
    x = x_ref[...].astype(jnp.bfloat16)

    # encode: h1 = relu(x @ W1 + b1)   (bf16 MXU, f32 accumulate + epilogue)
    h1 = jnp.dot(x, w1_ref[...], preferred_element_type=jnp.float32) + b1_ref[...]
    h1 = jnp.maximum(h1, 0.0)                         # (TB, 512) f32, lanes>=400 are 0

    # fused head: one lane-dense (TB, 128) slab; mu in lanes 0..19, logvar in 20..39
    head = jnp.dot(h1.astype(jnp.bfloat16), wh_ref[...],
                   preferred_element_type=jnp.float32) + bh_ref[...]
    head_ref[...] = head                              # single lane-dense f32 store

    # Align logvar (lanes 20..39) with eps/mu lanes 0..19 via a circular lane
    # roll on the XLU: roll by +108 == roll by -20 for a 128-lane axis.
    logvar_aligned = pltpu.roll(head, LAT_PAD - LATENT, 1)
    # Clamp only to prevent exp overflow on the wrapped (mu) lanes -> no 0*inf.
    std = jnp.exp(0.5 * jnp.minimum(logvar_aligned, 170.0))

    # reparameterize (training mode): z = eps * std + mu
    # Lanes 0..19 carry the real latent; lanes >= 20 hold finite junk that is
    # annihilated by the zero rows (>= 20) of the padded decoder weight W3.
    z = eps_ref[...].astype(jnp.float32) * std + head

    # decode: h3 = relu(z @ W3 + b3); recon = sigmoid(h3 @ W4 + b4)
    h3 = jnp.dot(z.astype(jnp.bfloat16), w3_ref[...],
                 preferred_element_type=jnp.float32) + b3_ref[...]
    h3 = jnp.maximum(h3, 0.0)                         # (TB, 512) f32
    logits = jnp.dot(h3.astype(jnp.bfloat16), w4_ref[...],
                     preferred_element_type=jnp.float32) + b4_ref[...]

    # sigmoid = 1 / (1 + exp(-x)): exp on EUP + approximate reciprocal on EUP
    recon = pl.reciprocal(1.0 + jnp.exp(-logits), approx=True)
    recon_ref[...] = recon.astype(recon_ref.dtype)    # bf16 store (halves HBM writeback)


# ----------------------------------------------------------------------------
# One-time parameter packing (hoisted out of the forward pass)
# ----------------------------------------------------------------------------
def pack_params(params):
    """Pack / zero-pad / bf16-cast the VAE weights once.

    params: (w1, b1, w21, b21, w22, b22, w3, b3, w4, b4) with weights stored
    as (in, out) and biases as (1, out), all f32.
    """
    (w1, b1, w21, b21, w22, b22, w3, b3, w4, b4) = params

    # encoder: (784, 400) -> (784, 512) bf16; bias (1, 512) f32
    w1p = jnp.zeros((IN, HID_PAD), jnp.float32).at[:, :HID].set(w1).astype(jnp.bfloat16)
    b1p = jnp.zeros((1, HID_PAD), jnp.float32).at[:, :HID].set(b1)

    # fused mu|logvar head: (512, 128) bf16, mu -> lanes 0..19, logvar -> 20..39
    wh = jnp.zeros((HID_PAD, LAT_PAD), jnp.float32)
    wh = wh.at[:HID, :LATENT].set(w21).at[:HID, LATENT:2 * LATENT].set(w22)
    whp = wh.astype(jnp.bfloat16)
    bhp = jnp.zeros((1, LAT_PAD), jnp.float32)
    bhp = bhp.at[:, :LATENT].set(b21).at[:, LATENT:2 * LATENT].set(b22)

    # decoder input: (20, 400) -> (128, 512) bf16; padded rows/cols are zero
    w3p = jnp.zeros((LAT_PAD, HID_PAD), jnp.float32).at[:LATENT, :HID].set(w3)
    w3p = w3p.astype(jnp.bfloat16)
    b3p = jnp.zeros((1, HID_PAD), jnp.float32).at[:, :HID].set(b3)

    # decoder output: (400, 784) -> (512, 784) bf16; padded rows are zero
    w4p = jnp.zeros((HID_PAD, IN), jnp.float32).at[:HID, :].set(w4).astype(jnp.bfloat16)
    b4p = b4                                            # (1, 784) f32

    return (w1p, b1p, whp, bhp, w3p, b3p, w4p, b4p)


# ----------------------------------------------------------------------------
# Forward wrapper
# ----------------------------------------------------------------------------
def vae_forward(x, eps, packed_params, *, tb=None):
    """x: (B, 1, 28, 28) or (B, 784); eps: (B, 20) standard-normal noise.
    packed_params: output of pack_params().
    Returns (reconstruction (B, 784) bf16, mu (B, 20) f32, logvar (B, 20) f32)."""
    B = x.shape[0]
    x2d = x.reshape(B, IN)
    (w1p, b1p, whp, bhp, w3p, b3p, w4p, b4p) = packed_params

    # Tile selection: 128 is MXU-optimal for v5e and keeps >=2 tiles for v7x's
    # two TensorCores at moderate B; 256 fills the 256-wide MXU M on v6e/v7x
    # and halves per-step overhead once the batch is large enough.
    if tb is None:
        tb = 256 if B >= 512 else 128
    n_tiles = pl.cdiv(B, tb)
    Bp = n_tiles * tb

    # Inputs: avoid materializing padded copies when the batch tiles evenly.
    if Bp == B:
        xp = x2d                                       # native dtype, cast in-kernel
    else:
        xp = jnp.pad(x2d, ((0, Bp - B), (0, 0))).astype(jnp.bfloat16)
    # eps must be widened to 128 lanes anyway; fuse the bf16 cast into that pad.
    ep = jnp.pad(eps.astype(jnp.bfloat16), ((0, Bp - B), (0, LAT_PAD - LATENT)))

    def tile_spec(shape):
        return pl.BlockSpec(shape, lambda i: (i, 0))

    def resident_spec(shape):
        return pl.BlockSpec(shape, lambda i: (0, 0))

    in_specs = [
        tile_spec((tb, IN)),               # x tile
        tile_spec((tb, LAT_PAD)),          # eps tile
        resident_spec(w1p.shape), resident_spec(b1p.shape),
        resident_spec(whp.shape), resident_spec(bhp.shape),
        resident_spec(w3p.shape), resident_spec(b3p.shape),
        resident_spec(w4p.shape), resident_spec(b4p.shape),
    ]
    out_shapes = (
        jax.ShapeDtypeStruct((Bp, IN), jnp.bfloat16),        # reconstruction (bf16)
        jax.ShapeDtypeStruct((Bp, LAT_PAD), jnp.float32),    # mu|logvar head slab
    )
    out_specs = (
        tile_spec((tb, IN)),
        tile_spec((tb, LAT_PAD)),
    )

    flops = 2 * Bp * (IN * HID_PAD + HID_PAD * LAT_PAD
                      + LAT_PAD * HID_PAD + HID_PAD * IN)
    transcendentals = Bp * (LAT_PAD + 2 * IN)          # std exp + sigmoid exp + recip
    bytes_accessed = (
        w1p.size * 2 + whp.size * 2 + w3p.size * 2 + w4p.size * 2      # bf16 weights
        + (b1p.size + bhp.size + b3p.size + b4p.size) * 4              # f32 biases
        + xp.size * xp.dtype.itemsize + ep.size * 2                    # inputs
        + Bp * IN * 2 + Bp * LAT_PAD * 4                               # outputs
    )

    recon_p, head_p = pl.pallas_call(
        _vae_kernel,
        out_shape=out_shapes,
        grid=(n_tiles,),
        in_specs=in_specs,
        out_specs=out_specs,
        compiler_params=pltpu.CompilerParams(
            dimension_semantics=("parallel",),   # batch axis shards over v7x's 2 TCs
            vmem_limit_bytes=16 << 20,
        ),
        cost_estimate=pl.CostEstimate(
            flops=flops,
            transcendentals=transcendentals,
            bytes_accessed=bytes_accessed,
        ),
    )(xp, ep, w1p, b1p, whp, bhp, w3p, b3p, w4p, b4p)

    recon = recon_p[:B]
    mu = head_p[:B, :LATENT]
    logvar = head_p[:B, LATENT:2 * LATENT]
    return recon, mu, logvar


# ----------------------------------------------------------------------------
# Reference / init / test
# ----------------------------------------------------------------------------
def init_params(key):
    """Deterministic init mimicking torch.nn.Linear default (uniform +-1/sqrt(fan_in)).
    Weights are returned pre-transposed as (in, out); biases as (1, out)."""
    def linear(k, fan_in, fan_out):
        kw, kb = jax.random.split(k)
        bound = 1.0 / (fan_in ** 0.5)
        w = jax.random.uniform(kw, (fan_in, fan_out), jnp.float32, -bound, bound)
        b = jax.random.uniform(kb, (1, fan_out), jnp.float32, -bound, bound)
        return w, b

    k1, k2, k3, k4, k5 = jax.random.split(key, 5)
    w1, b1 = linear(k1, IN, HID)
    w21, b21 = linear(k2, HID, LATENT)
    w22, b22 = linear(k3, HID, LATENT)
    w3, b3 = linear(k4, LATENT, HID)
    w4, b4 = linear(k5, HID, IN)
    return (w1, b1, w21, b21, w22, b22, w3, b3, w4, b4)


def vae_reference(x, eps, params):
    """Pure-JAX f32 reference matching the PyTorch module (training mode)."""
    (w1, b1, w21, b21, w22, b22, w3, b3, w4, b4) = params
    xf = x.reshape(x.shape[0], IN)
    h1 = jax.nn.relu(xf @ w1 + b1)
    mu = h1 @ w21 + b21
    logvar = h1 @ w22 + b22
    z = eps * jnp.exp(0.5 * logvar) + mu
    h3 = jax.nn.relu(z @ w3 + b3)
    recon = jax.nn.sigmoid(h3 @ w4 + b4)
    return recon, mu, logvar


if __name__ == "__main__":
    key = jax.random.PRNGKey(0)
    kp, kx, ke = jax.random.split(key, 3)

    params = init_params(kp)
    packed = pack_params(params)                       # one-time weight packing

    B = 8
    x = jax.random.uniform(kx, (B, 1, 28, 28), jnp.float32)   # MNIST-like NCHW
    eps = jax.random.normal(ke, (B, LATENT), jnp.float32)     # reparam noise

    recon, mu, logvar = vae_forward(x, eps, packed)
    jax.block_until_ready((recon, mu, logvar))

    assert recon.shape == (B, IN) and recon.dtype == jnp.bfloat16
    assert mu.shape == (B, LATENT) and logvar.shape == (B, LATENT)

    # Correctness vs. pure-JAX f32 reference (generous tolerance for the bf16
    # MXU operands, bf16 recon output and the approximate EUP reciprocal).
    recon_f32 = recon.astype(jnp.float32)
    r_ref, mu_ref, lv_ref = vae_reference(x, eps, params)
    assert bool(jnp.all(jnp.isfinite(recon_f32)))
    assert bool(jnp.all(jnp.isfinite(mu))) and bool(jnp.all(jnp.isfinite(logvar)))
    assert float(jnp.max(jnp.abs(recon_f32 - r_ref))) < 3e-2
    assert float(jnp.max(jnp.abs(mu - mu_ref))) < 3e-2
    assert float(jnp.max(jnp.abs(logvar - lv_ref))) < 3e-2

    print("KERNEL_OK")
</pallas_src>

<mosaic_0001>
module attributes {stable_mosaic.version = 11 : i64} {
  func.func @_vae_kernel(%arg0: i32, %arg1: memref<128x784xbf16, #tpu.memory_space<vmem>>, %arg2: memref<128x128xbf16, #tpu.memory_space<vmem>>, %arg3: memref<784x512xbf16, #tpu.memory_space<vmem>>, %arg4: memref<1x512xf32, #tpu.memory_space<vmem>>, %arg5: memref<512x128xbf16, #tpu.memory_space<vmem>>, %arg6: memref<1x128xf32, #tpu.memory_space<vmem>>, %arg7: memref<128x512xbf16, #tpu.memory_space<vmem>>, %arg8: memref<1x512xf32, #tpu.memory_space<vmem>>, %arg9: memref<512x784xbf16, #tpu.memory_space<vmem>>, %arg10: memref<1x784xf32, #tpu.memory_space<vmem>>, %arg11: memref<128x784xbf16, #tpu.memory_space<vmem>>, %arg12: memref<128x128xf32, #tpu.memory_space<vmem>>) attributes {dimension_semantics = [#tpu.dimension_semantics<parallel>], iteration_bounds = array<i64: 1>, scalar_prefetch = 0 : i64, scratch_operands = 0 : i64, tpu.core_type = #tpu.core_type<tc>, window_params = [{transform_indices = @transform_0, window_bounds = array<i64: 128, 784>}, {transform_indices = @transform_1, window_bounds = array<i64: 128, 128>}, {pipeline_mode = #tpu.pipeline_mode<synchronous>, transform_indices = @transform_2, window_bounds = array<i64: 784, 512>}, {pipeline_mode = #tpu.pipeline_mode<synchronous>, transform_indices = @transform_3, window_bounds = array<i64: 1, 512>}, {pipeline_mode = #tpu.pipeline_mode<synchronous>, transform_indices = @transform_4, window_bounds = array<i64: 512, 128>}, {pipeline_mode = #tpu.pipeline_mode<synchronous>, transform_indices = @transform_5, window_bounds = array<i64: 1, 128>}, {pipeline_mode = #tpu.pipeline_mode<synchronous>, transform_indices = @transform_6, window_bounds = array<i64: 128, 512>}, {pipeline_mode = #tpu.pipeline_mode<synchronous>, transform_indices = @transform_7, window_bounds = array<i64: 1, 512>}, {pipeline_mode = #tpu.pipeline_mode<synchronous>, transform_indices = @transform_8, window_bounds = array<i64: 512, 784>}, {pipeline_mode = #tpu.pipeline_mode<synchronous>, transform_indices = @transform_9, window_bounds = array<i64: 1, 784>}, {transform_indices = @transform_10, window_bounds = array<i64: 128, 784>}, {transform_indices = @transform_11, window_bounds = array<i64: 128, 128>}]} {
    %c0 = arith.constant 0 : index
    %c0_0 = arith.constant 0 : index
    %0 = vector.load %arg1[%c0, %c0_0] : memref<128x784xbf16, #tpu.memory_space<vmem>>, vector<128x784xbf16>
    %c0_1 = arith.constant 0 : index
    %c0_2 = arith.constant 0 : index
    %1 = vector.load %arg3[%c0_1, %c0_2] : memref<784x512xbf16, #tpu.memory_space<vmem>>, vector<784x512xbf16>
    %cst = arith.constant dense<0.000000e+00> : vector<128x512xf32>
    %2 = tpu.matmul %0, %1, %cst {dimension_numbers = #tpu.dot_dimension_numbers<[1], [0], [0], [1], [0, 0, 1, 1], [], []>} : vector<128x784xbf16>, vector<784x512xbf16>, vector<128x512xf32> -> vector<128x512xf32>
    %c0_3 = arith.constant 0 : index
    %c0_4 = arith.constant 0 : index
    %3 = vector.load %arg4[%c0_3, %c0_4] : memref<1x512xf32, #tpu.memory_space<vmem>>, vector<1x512xf32>
    %4 = vector.broadcast %3 : vector<1x512xf32> to vector<128x512xf32>
    %5 = arith.addf %2, %4 : vector<128x512xf32>
    %cst_5 = arith.constant 0.000000e+00 : f32
    %6 = vector.broadcast %cst_5 : f32 to vector<128x512xf32>
    %7 = arith.maximumf %5, %6 : vector<128x512xf32>
    %8 = arith.truncf %7 : vector<128x512xf32> to vector<128x512xbf16>
    %c0_6 = arith.constant 0 : index
    %c0_7 = arith.constant 0 : index
    %9 = vector.load %arg5[%c0_6, %c0_7] : memref<512x128xbf16, #tpu.memory_space<vmem>>, vector<512x128xbf16>
    %cst_8 = arith.constant dense<0.000000e+00> : vector<128x128xf32>
    %10 = tpu.matmul %8, %9, %cst_8 {dimension_numbers = #tpu.dot_dimension_numbers<[1], [0], [0], [1], [0, 0, 1, 1], [], []>} : vector<128x512xbf16>, vector<512x128xbf16>, vector<128x128xf32> -> vector<128x128xf32>
    %c0_9 = arith.constant 0 : index
    %c0_10 = arith.constant 0 : index
    %11 = vector.load %arg6[%c0_9, %c0_10] : memref<1x128xf32, #tpu.memory_space<vmem>>, vector<1x128xf32>
    %12 = vector.broadcast %11 : vector<1x128xf32> to vector<128x128xf32>
    %13 = arith.addf %10, %12 : vector<128x128xf32>
    %c0_11 = arith.constant 0 : index
    %c0_12 = arith.constant 0 : index
    %14 = vector.load %arg12[%c0_11, %c0_12] : memref<128x128xf32, #tpu.memory_space<vmem>>, vector<128x128xf32>
    tpu.vector_store %arg12[%c0_11, %c0_12], %13 {strides = array<i32>} : memref<128x128xf32, #tpu.memory_space<vmem>>, vector<128x128xf32>,
    %c108_i32 = arith.constant 108 : i32
    %15 = tpu.dynamic_rotate %13 by %c108_i32 dim 1 : vector<128x128xf32>, i32 -> vector<128x128xf32>
    %cst_13 = arith.constant 1.700000e+02 : f32
    %16 = vector.broadcast %cst_13 : f32 to vector<128x128xf32>
    %17 = arith.minimumf %15, %16 : vector<128x128xf32>
    %cst_14 = arith.constant 5.000000e-01 : f32
    %18 = vector.broadcast %cst_14 : f32 to vector<128x128xf32>
    %19 = arith.mulf %18, %17 : vector<128x128xf32>
    %20 = math.exp %19 : vector<128x128xf32>
    %c0_15 = arith.constant 0 : index
    %c0_16 = arith.constant 0 : index
    %21 = vector.load %arg2[%c0_15, %c0_16] : memref<128x128xbf16, #tpu.memory_space<vmem>>, vector<128x128xbf16>
    %22 = arith.extf %21 : vector<128x128xbf16> to vector<128x128xf32>
    %23 = arith.mulf %22, %20 : vector<128x128xf32>
    %24 = arith.addf %23, %13 : vector<128x128xf32>
    %25 = arith.truncf %24 : vector<128x128xf32> to vector<128x128xbf16>
    %c0_17 = arith.constant 0 : index
    %c0_18 = arith.constant 0 : index
    %26 = vector.load %arg7[%c0_17, %c0_18] : memref<128x512xbf16, #tpu.memory_space<vmem>>, vector<128x512xbf16>
    %cst_19 = arith.constant dense<0.000000e+00> : vector<128x512xf32>
    %27 = tpu.matmul %25, %26, %cst_19 {dimension_numbers = #tpu.dot_dimension_numbers<[1], [0], [0], [1], [0, 0, 1, 1], [], []>} : vector<128x128xbf16>, vector<128x512xbf16>, vector<128x512xf32> -> vector<128x512xf32>
    %c0_20 = arith.constant 0 : index
    %c0_21 = arith.constant 0 : index
    %28 = vector.load %arg8[%c0_20, %c0_21] : memref<1x512xf32, #tpu.memory_space<vmem>>, vector<1x512xf32>
    %29 = vector.broadcast %28 : vector<1x512xf32> to vector<128x512xf32>
    %30 = arith.addf %27, %29 : vector<128x512xf32>
    %cst_22 = arith.constant 0.000000e+00 : f32
    %31 = vector.broadcast %cst_22 : f32 to vector<128x512xf32>
    %32 = arith.maximumf %30, %31 : vector<128x512xf32>
    %33 = arith.truncf %32 : vector<128x512xf32> to vector<128x512xbf16>
    %c0_23 = arith.constant 0 : index
    %c0_24 = arith.constant 0 : index
    %34 = vector.load %arg9[%c0_23, %c0_24] : memref<512x784xbf16, #tpu.memory_space<vmem>>, vector<512x784xbf16>
    %cst_25 = arith.constant dense<0.000000e+00> : vector<128x784xf32>
    %35 = tpu.matmul %33, %34, %cst_25 {dimension_numbers = #tpu.dot_dimension_numbers<[1], [0], [0], [1], [0, 0, 1, 1], [], []>} : vector<128x512xbf16>, vector<512x784xbf16>, vector<128x784xf32> -> vector<128x784xf32>
    %c0_26 = arith.constant 0 : index
    %c0_27 = arith.constant 0 : index
    %36 = vector.load %arg10[%c0_26, %c0_27] : memref<1x784xf32, #tpu.memory_space<vmem>>, vector<1x784xf32>
    %37 = vector.broadcast %36 : vector<1x784xf32> to vector<128x784xf32>
    %38 = arith.addf %35, %37 : vector<128x784xf32>
    %cst_28 = arith.constant 0.000000e+00 : f32
    %39 = vector.broadcast %cst_28 : f32 to vector<128x784xf32>
    %40 = arith.subf %39, %38 : vector<128x784xf32>
    %41 = math.exp %40 : vector<128x784xf32>
    %cst_29 = arith.constant 1.000000e+00 : f32
    %42 = vector.broadcast %cst_29 : f32 to vector<128x784xf32>
    %43 = arith.addf %42, %41 : vector<128x784xf32>
    %44 = tpu.reciprocal %43 {approx = true} : vector<128x784xf32> -> vector<128x784xf32>
    %45 = arith.truncf %44 : vector<128x784xf32> to vector<128x784xbf16>
    %c0_30 = arith.constant 0 : index
    %c0_31 = arith.constant 0 : index
    %46 = vector.load %arg11[%c0_30, %c0_31] : memref<128x784xbf16, #tpu.memory_space<vmem>>, vector<128x784xbf16>
    tpu.vector_store %arg11[%c0_30, %c0_31], %45 {strides = array<i32>} : memref<128x784xbf16, #tpu.memory_space<vmem>>, vector<128x784xbf16>,
    return
  }
  func.func @transform_0(%arg0: i32) -> (i32, i32) {
    %c0_i32 = arith.constant 0 : i32
    %c0_i32_0 = arith.constant 0 : i32
    return %arg0, %c0_i32 : i32, i32
  }
  func.func @transform_1(%arg0: i32) -> (i32, i32) {
    %c0_i32 = arith.constant 0 : i32
    %c0_i32_0 = arith.constant 0 : i32
    return %arg0, %c0_i32 : i32, i32
  }
  func.func @transform_2(%arg0: i32) -> (i32, i32) {
    %c0_i32 = arith.constant 0 : i32
    %c0_i32_0 = arith.constant 0 : i32
    %c0_i32_1 = arith.constant 0 : i32
    return %c0_i32, %c0_i32_0 : i32, i32
  }
  func.func @transform_3(%arg0: i32) -> (i32, i32) {
    %c0_i32 = arith.constant 0 : i32
    %c0_i32_0 = arith.constant 0 : i32
    %c0_i32_1 = arith.constant 0 : i32
    return %c0_i32, %c0_i32_0 : i32, i32
  }
  func.func @transform_4(%arg0: i32) -> (i32, i32) {
    %c0_i32 = arith.constant 0 : i32
    %c0_i32_0 = arith.constant 0 : i32
    %c0_i32_1 = arith.constant 0 : i32
    return %c0_i32, %c0_i32_0 : i32, i32
  }
  func.func @transform_5(%arg0: i32) -> (i32, i32) {
    %c0_i32 = arith.constant 0 : i32
    %c0_i32_0 = arith.constant 0 : i32
    %c0_i32_1 = arith.constant 0 : i32
    return %c0_i32, %c0_i32_0 : i32, i32
  }
  func.func @transform_6(%arg0: i32) -> (i32, i32) {
    %c0_i32 = arith.constant 0 : i32
    %c0_i32_0 = arith.constant 0 : i32
    %c0_i32_1 = arith.constant 0 : i32
    return %c0_i32, %c0_i32_0 : i32, i32
  }
  func.func @transform_7(%arg0: i32) -> (i32, i32) {
    %c0_i32 = arith.constant 0 : i32
    %c0_i32_0 = arith.constant 0 : i32
    %c0_i32_1 = arith.constant 0 : i32
    return %c0_i32, %c0_i32_0 : i32, i32
  }
  func.func @transform_8(%arg0: i32) -> (i32, i32) {
    %c0_i32 = arith.constant 0 : i32
    %c0_i32_0 = arith.constant 0 : i32
    %c0_i32_1 = arith.constant 0 : i32
    return %c0_i32, %c0_i32_0 : i32, i32
  }
  func.func @transform_9(%arg0: i32) -> (i32, i32) {
    %c0_i32 = arith.constant 0 : i32
    %c0_i32_0 = arith.constant 0 : i32
    %c0_i32_1 = arith.constant 0 : i32
    return %c0_i32, %c0_i32_0 : i32, i32
  }
  func.func @transform_10(%arg0: i32) -> (i32, i32) {
    %c0_i32 = arith.constant 0 : i32
    %c0_i32_0 = arith.constant 0 : i32
    return %arg0, %c0_i32 : i32, i32
  }
  func.func @transform_11(%arg0: i32) -> (i32, i32) {
    %c0_i32 = arith.constant 0 : i32
    %c0_i32_0 = arith.constant 0 : i32
    return %arg0, %c0_i32 : i32, i32
  }
}

</mosaic_0001>

<llo_original>
// kernel: tpu_custom_call.1
$region0: #{tpu_custom_call.1}
  #allocation0 [shape = 'u32[]', space=smem, size = 0x4, offset = 0x4, fixed_abs, tag = 'smem constant byte address 0x4 - core index']
  #allocation1 [shape = 'u32[144,128]{1,0:T(1,128)}', space=vmem, size = 0x12000, scoped, tag = 'internal scratch']
  %s0 = inlined_call_operand.vmem [shape: bf16[128,784], index: 0, kind: input, shape index: {}]
  %s1 = inlined_call_operand.vmem [shape: bf16[128,128], index: 1, kind: input, shape index: {}]
  %s2 = inlined_call_operand.vmem [shape: bf16[784,512], index: 2, kind: input, shape index: {}]
  %s3 = inlined_call_operand.vmem [shape: f32[1,512], index: 3, kind: input, shape index: {}]
  %s4 = inlined_call_operand.vmem [shape: bf16[512,128], index: 4, kind: input, shape index: {}]
  %s5 = inlined_call_operand.vmem [shape: f32[1,128], index: 5, kind: input, shape index: {}]
  %s6 = inlined_call_operand.vmem [shape: bf16[128,512], index: 6, kind: input, shape index: {}]
  %s7 = inlined_call_operand.vmem [shape: f32[1,512], index: 7, kind: input, shape index: {}]
  %s8 = inlined_call_operand.vmem [shape: bf16[512,784], index: 8, kind: input, shape index: {}]
  %s9 = inlined_call_operand.vmem [shape: f32[1,784], index: 9, kind: input, shape index: {}]
  %s10 = inlined_call_operand.vmem [shape: bf16[128,784], index: 10, kind: output, shape index: {0}]
  %s11 = inlined_call_operand.hbm [shape: f32[128,128], index: 11, kind: output, shape index: {1}]
  %12 = xla_tuple %s10, %s11
  %s13 = sld [smem:[#allocation0]]
  $region58: #{tpu_custom_call.1} parent=0
    _
  %s15 = ssub.s32 1, %s13
  %s16 = scalar_select 0, %s15, %s13
  $region1: #{tpu_custom_call.1} parent=0
    #allocation2 [shape = 'u8[65536]{0}', space=vmem, size = 0x10000, scoped, tag = 'output window, operand 1, single buffered']
    #allocation3 [shape = 's32[1]{0}', space=sflag, size = 0x4, scoped, tag = 'scoped memory for tpu_custom_call.1']
    %17 = vsyncpa [#allocation3], 0
    // Predicated region
    $region2: #{tpu_custom_call.1} parent=1 // pred_check
      _
    $region3: #{tpu_custom_call.1} parent=1 // pred_check_branch
      %19 = sbr.rel (0) target = $region5
    $region4: #{tpu_custom_call.1} parent=1 // pred_region
      _
    $region5: #{tpu_custom_call.1} parent=1 // pred_fallthru
      _
    // Predicated region
    $region6: #{tpu_custom_call.1} parent=1 // pred_check
      _
    $region7: #{tpu_custom_call.1} parent=1 // pred_check_branch
      %21 = sbr.rel (0) target = $region9
    $region8: #{tpu_custom_call.1} parent=1 // pred_region
      _
    $region9: #{tpu_custom_call.1} parent=1 // pred_fallthru
      _
    // Predicated region
    $region10: #{tpu_custom_call.1} parent=1 // pred_check
      _
    $region11: #{tpu_custom_call.1} parent=1 // pred_check_branch
      %23 = sbr.rel (0) target = $region13
    $region12: #{tpu_custom_call.1} parent=1 // pred_region
      _
    $region13: #{tpu_custom_call.1} parent=1 // pred_fallthru
      _
    // Predicated region
    $region14: #{tpu_custom_call.1} parent=1 // pred_check
      _
    $region15: #{tpu_custom_call.1} parent=1 // pred_check_branch
      %25 = sbr.rel (0) target = $region17
    $region16: #{tpu_custom_call.1} parent=1 // pred_region
      _
    $region17: #{tpu_custom_call.1} parent=1 // pred_fallthru
      _
    // Predicated region
    $region18: #{tpu_custom_call.1} parent=1 // pred_check
      _
    $region19: #{tpu_custom_call.1} parent=1 // pred_check_branch
      %27 = sbr.rel (0) target = $region21
    $region20: #{tpu_custom_call.1} parent=1 // pred_region
      _
    $region21: #{tpu_custom_call.1} parent=1 // pred_fallthru
      _
    // Predicated region
    $region22: #{tpu_custom_call.1} parent=1 // pred_check
      _
    $region23: #{tpu_custom_call.1} parent=1 // pred_check_branch
      %29 = sbr.rel (0) target = $region25
    $region24: #{tpu_custom_call.1} parent=1 // pred_region
      _
    $region25: #{tpu_custom_call.1} parent=1 // pred_fallthru
      _
    // Predicated region
    $region26: #{tpu_custom_call.1} parent=1 // pred_check
      _
    $region27: #{tpu_custom_call.1} parent=1 // pred_check_branch
      %31 = sbr.rel (0) target = $region29
    $region28: #{tpu_custom_call.1} parent=1 // pred_region
      _
    $region29: #{tpu_custom_call.1} parent=1 // pred_fallthru
      _
    // Predicated region
    $region30: #{tpu_custom_call.1} parent=1 // pred_check
      _
    $region31: #{tpu_custom_call.1} parent=1 // pred_check_branch
      %33 = sbr.rel (0) target = $region33
    $region32: #{tpu_custom_call.1} parent=1 // pred_region
      _
    $region33: #{tpu_custom_call.1} parent=1 // pred_fallthru
      _
    // Predicated region
    $region34: #{tpu_custom_call.1} parent=1 // pred_check
      _
    $region35: #{tpu_custom_call.1} parent=1 // pred_check_branch
      %35 = sbr.rel (0) target = $region37
    $region36: #{tpu_custom_call.1} parent=1 // pred_region
      _
    $region37: #{tpu_custom_call.1} parent=1 // pred_fallthru
      _
    // Predicated region
    $region38: #{tpu_custom_call.1} parent=1 // pred_check
      _
    $region39: #{tpu_custom_call.1} parent=1 // pred_check_branch
      %37 = sbr.rel (0) target = $region41
    $region40: #{tpu_custom_call.1} parent=1 // pred_region
      _
    $region41: #{tpu_custom_call.1} parent=1 // pred_fallthru
      _
    %v39 = vld [vmem:[%s0] sm:$0xff]
    %v40 = vld [vmem:[%s0 + $0x8] sm:$0xff]
    %v41 = vld [vmem:[%s0 + $0x10] sm:$0xff]
    %v42 = vld [vmem:[%s0 + $0x18] sm:$0xf]
    %v43 = vld [vmem:[%s0 + $0x1c] sm:$0xff]
    %v44 = vld [vmem:[%s0 + $0x24] sm:$0xff]
    %v45 = vld [vmem:[%s0 + $0x2c] sm:$0xff]
    %v46 = vld [vmem:[%s0 + $0x34] sm:$0xf]
    %v47 = vld [vmem:[%s0 + $0x38] sm:$0xff]
    %v48 = vld [vmem:[%s0 + $0x40] sm:$0xff]
    %v49 = vld [vmem:[%s0 + $0x48] sm:$0xff]
    %v50 = vld [vmem:[%s0 + $0x50] sm:$0xf]
    %v51 = vld [vmem:[%s0 + $0x54] sm:$0xff]
    %v52 = vld [vmem:[%s0 + $0x5c] sm:$0xff]
    %v53 = vld [vmem:[%s0 + $0x64] sm:$0xff]
    %v54 = vld [vmem:[%s0 + $0x6c] sm:$0xf]
    %v55 = vld [vmem:[%s0 + $0x70] sm:$0xff]
    %v56 = vld [vmem:[%s0 + $0x78] sm:$0xff]
    %v57 = vld [vmem:[%s0 + $0x80] sm:$0xff]
    %v58 = vld [vmem:[%s0 + $0x88] sm:$0xf]
    %v59 = vld [vmem:[%s0 + $0x8c] sm:$0xff]
    %v60 = vld [vmem:[%s0 + $0x94] sm:$0xff]
    %v61 = vld [vmem:[%s0 + $0x9c] sm:$0xff]
    %v62 = vld [vmem:[%s0 + $0xa4] sm:$0xf]
    %v63 = vld [vmem:[%s0 + $0xa8] sm:$0xff]
    %v64 = vld [vmem:[%s0 + $0xb0] sm:$0xff]
    %v65 = vld [vmem:[%s0 + $0xb8] sm:$0xff]
    %v66 = vld [vmem:[%s0 + $0xc0] sm:$0xf]
    %v67 = vld [vmem:[%s0 + $0xc4] sm:$0xff]
    %v68 = vld [vmem:[%s0 + $0xcc] sm:$0xff]
    %v69 = vld [vmem:[%s0 + $0xd4] sm:$0xff]
    %v70 = vld [vmem:[%s0 + $0xdc] sm:$0xf]
    %v71 = vld [vmem:[%s0 + $0xe0] sm:$0xff]
    %v72 = vld [vmem:[%s0 + $0xe8] sm:$0xff]
    %v73 = vld [vmem:[%s0 + $0xf0] sm:$0xff]
    %v74 = vld [vmem:[%s0 + $0xf8] sm:$0xf]
    %v75 = vld [vmem:[%s0 + $0xfc] sm:$0xff]
    %v76 = vld [vmem:[%s0 + $0x104] sm:$0xff]
    %v77 = vld [vmem:[%s0 + $0x10c] sm:$0xff]
    %v78 = vld [vmem:[%s0 + $0x114] sm:$0xf]
    %v79 = vld [vmem:[%s0 + $0x118] sm:$0xff]
    %v80 = vld [vmem:[%s0 + $0x120] sm:$0xff]
    %v81 = vld [vmem:[%s0 + $0x128] sm:$0xff]
    %v82 = vld [vmem:[%s0 + $0x130] sm:$0xf]
    %v83 = vld [vmem:[%s0 + $0x134] sm:$0xff]
    %v84 = vld [vmem:[%s0 + $0x13c] sm:$0xff]
    %v85 = vld [vmem:[%s0 + $0x144] sm:$0xff]
    %v86 = vld [vmem:[%s0 + $0x14c] sm:$0xf]
    %v87 = vld [vmem:[%s0 + $0x150] sm:$0xff]
    %v88 = vld [vmem:[%s0 + $0x158] sm:$0xff]
    %v89 = vld [vmem:[%s0 + $0x160] sm:$0xff]
    %v90 = vld [vmem:[%s0 + $0x168] sm:$0xf]
    %v91 = vld [vmem:[%s0 + $0x16c] sm:$0xff]
    %v92 = vld [vmem:[%s0 + $0x174] sm:$0xff]
    %v93 = vld [vmem:[%s0 + $0x17c] sm:$0xff]
    %v94 = vld [vmem:[%s0 + $0x184] sm:$0xf]
    %v95 = vld [vmem:[%s0 + $0x188] sm:$0xff]
    %v96 = vld [vmem:[%s0 + $0x190] sm:$0xff]
    %v97 = vld [vmem:[%s0 + $0x198] sm:$0xff]
    %v98 = vld [vmem:[%s0 + $0x1a0] sm:$0xf]
    %v99 = vld [vmem:[%s0 + $0x1a4] sm:$0xff]
    %v100 = vld [vmem:[%s0 + $0x1ac] sm:$0xff]
    %v101 = vld [vmem:[%s0 + $0x1b4] sm:$0xff]
    %v102 = vld [vmem:[%s0 + $0x1bc] sm:$0xf]
    %v103 = vld [vmem:[%s2] sm:$0xff]
    %v104 = vld [vmem:[%s2 + $0x8] sm:$0xff]
    %v105 = vld [vmem:[%s2 + $0x10] sm:$0xff]
    %v106 = vld [vmem:[%s2 + $0x18] sm:$0xff]
    %v107 = vld [vmem:[%s2 + $0x20] sm:$0xff]
    %v108 = vld [vmem:[%s2 + $0x28] sm:$0xff]
    %v109 = vld [vmem:[%s2 + $0x30] sm:$0xff]
    %v110 = vld [vmem:[%s2 + $0x38] sm:$0xff]
    %v111 = vld [vmem:[%s2 + $0x40] sm:$0xff]
    %v112 = vld [vmem:[%s2 + $0x48] sm:$0xff]
    %v113 = vld [vmem:[%s2 + $0x50] sm:$0xff]
    %v114 = vld [vmem:[%s2 + $0x58] sm:$0xff]
    %v115 = vld [vmem:[%s2 + $0x60] sm:$0xff]
    %v116 = vld [vmem:[%s2 + $0x68] sm:$0xff]
    %v117 = vld [vmem:[%s2 + $0x70] sm:$0xff]
    %v118 = vld [vmem:[%s2 + $0x78] sm:$0xff]
    %v119 = vld [vmem:[%s2 + $0x80] sm:$0xff]
    %v120 = vld [vmem:[%s2 + $0x88] sm:$0xff]
    %v121 = vld [vmem:[%s2 + $0x90] sm:$0xff]
    %v122 = vld [vmem:[%s2 + $0x98] sm:$0xff]
    %v123 = vld [vmem:[%s2 + $0xa0] sm:$0xff]
    %v124 = vld [vmem:[%s2 + $0xa8] sm:$0xff]
    %v125 = vld [vmem:[%s2 + $0xb0] sm:$0xff]
    %v126 = vld [vmem:[%s2 + $0xb8] sm:$0xff]
    %v127 = vld [vmem:[%s2 + $0xc0] sm:$0xff]
    %v128 = vld [vmem:[%s2 + $0xc8] sm:$0xff]
    %v129 = vld [vmem:[%s2 + $0xd0] sm:$0xff]
    %v130 = vld [vmem:[%s2 + $0xd8] sm:$0xff]
    %v131 = vld [vmem:[%s2 + $0xe0] sm:$0xff]
    %v132 = vld [vmem:[%s2 + $0xe8] sm:$0xff]
    %v133 = vld [vmem:[%s2 + $0xf0] sm:$0xff]
    %v134 = vld [vmem:[%s2 + $0xf8] sm:$0xff]
    %v135 = vld [vmem:[%s2 + $0x100] sm:$0xff]
    %v136 = vld [vmem:[%s2 + $0x108] sm:$0xff]
    %v137 = vld [vmem:[%s2 + $0x110] sm:$0xff]
    %v138 = vld [vmem:[%s2 + $0x118] sm:$0xff]
    %v139 = vld [vmem:[%s2 + $0x120] sm:$0xff]
    %v140 = vld [vmem:[%s2 + $0x128] sm:$0xff]
    %v141 = vld [vmem:[%s2 + $0x130] sm:$0xff]
    %v142 = vld [vmem:[%s2 + $0x138] sm:$0xff]
    %v143 = vld [vmem:[%s2 + $0x140] sm:$0xff]
    %v144 = vld [vmem:[%s2 + $0x148] sm:$0xff]
    %v145 = vld [vmem:[%s2 + $0x150] sm:$0xff]
    %v146 = vld [vmem:[%s2 + $0x158] sm:$0xff]
    %v147 = vld [vmem:[%s2 + $0x160] sm:$0xff]
    %v148 = vld [vmem:[%s2 + $0x168] sm:$0xff]
    %v149 = vld [vmem:[%s2 + $0x170] sm:$0xff]
    %v150 = vld [vmem:[%s2 + $0x178] sm:$0xff]
    %v151 = vld [vmem:[%s2 + $0x180] sm:$0xff]
    %v152 = vld [vmem:[%s2 + $0x188] sm:$0xff]
    %v153 = vld [vmem:[%s2 + $0x190] sm:$0xff]
    %v154 = vld [vmem:[%s2 + $0x198] sm:$0xff]
    %v155 = vld [vmem:[%s2 + $0x1a0] sm:$0xff]
    %v156 = vld [vmem:[%s2 + $0x1a8] sm:$0xff]
    %v157 = vld [vmem:[%s2 + $0x1b0] sm:$0xff]
    %v158 = vld [vmem:[%s2 + $0x1b8] sm:$0xff]
    %v159 = vld [vmem:[%s2 + $0x1c0] sm:$0xff]
    %v160 = vld [vmem:[%s2 + $0x1c8] sm:$0xff]
    %v161 = vld [vmem:[%s2 + $0x1d0] sm:$0xff]
    %v162 = vld [vmem:[%s2 + $0x1d8] sm:$0xff]
    %v163 = vld [vmem:[%s2 + $0x1e0] sm:$0xff]
    %v164 = vld [vmem:[%s2 + $0x1e8] sm:$0xff]
    %v165 = vld [vmem:[%s2 + $0x1f0] sm:$0xff]
    %v166 = vld [vmem:[%s2 + $0x1f8] sm:$0xff]
    %v167 = vld [vmem:[%s2 + $0x200] sm:$0xff]
    %v168 = vld [vmem:[%s2 + $0x208] sm:$0xff]
    %v169 = vld [vmem:[%s2 + $0x210] sm:$0xff]
    %v170 = vld [vmem:[%s2 + $0x218] sm:$0xff]
    %v171 = vld [vmem:[%s2 + $0x220] sm:$0xff]
    %v172 = vld [vmem:[%s2 + $0x228] sm:$0xff]
    %v173 = vld [vmem:[%s2 + $0x230] sm:$0xff]
    %v174 = vld [vmem:[%s2 + $0x238] sm:$0xff]
    %v175 = vld [vmem:[%s2 + $0x240] sm:$0xff]
    %v176 = vld [vmem:[%s2 + $0x248] sm:$0xff]
    %v177 = vld [vmem:[%s2 + $0x250] sm:$0xff]
    %v178 = vld [vmem:[%s2 + $0x258] sm:$0xff]
    %v179 = vld [vmem:[%s2 + $0x260] sm:$0xff]
    %v180 = vld [vmem:[%s2 + $0x268] sm:$0xff]
    %v181 = vld [vmem:[%s2 + $0x270] sm:$0xff]
    %v182 = vld [vmem:[%s2 + $0x278] sm:$0xff]
    %v183 = vld [vmem:[%s2 + $0x280] sm:$0xff]
    %v184 = vld [vmem:[%s2 + $0x288] sm:$0xff]
    %v185 = vld [vmem:[%s2 + $0x290] sm:$0xff]
    %v186 = vld [vmem:[%s2 + $0x298] sm:$0xff]
    %v187 = vld [vmem:[%s2 + $0x2a0] sm:$0xff]
    %v188 = vld [vmem:[%s2 + $0x2a8] sm:$0xff]
    %v189 = vld [vmem:[%s2 + $0x2b0] sm:$0xff]
    %v190 = vld [vmem:[%s2 + $0x2b8] sm:$0xff]
    %v191 = vld [vmem:[%s2 + $0x2c0] sm:$0xff]
    %v192 = vld [vmem:[%s2 + $0x2c8] sm:$0xff]
    %v193 = vld [vmem:[%s2 + $0x2d0] sm:$0xff]
    %v194 = vld [vmem:[%s2 + $0x2d8] sm:$0xff]
    %v195 = vld [vmem:[%s2 + $0x2e0] sm:$0xff]
    %v196 = vld [vmem:[%s2 + $0x2e8] sm:$0xff]
    %v197 = vld [vmem:[%s2 + $0x2f0] sm:$0xff]
    %v198 = vld [vmem:[%s2 + $0x2f8] sm:$0xff]
    %v199 = vld [vmem:[%s2 + $0x300] sm:$0xff]
    %v200 = vld [vmem:[%s2 + $0x308] sm:$0xff]
    %v201 = vld [vmem:[%s2 + $0x310] sm:$0xff]
    %v202 = vld [vmem:[%s2 + $0x318] sm:$0xff]
    %v203 = vld [vmem:[%s2 + $0x320] sm:$0xff]
    %v204 = vld [vmem:[%s2 + $0x328] sm:$0xff]
    %v205 = vld [vmem:[%s2 + $0x330] sm:$0xff]
    %v206 = vld [vmem:[%s2 + $0x338] sm:$0xff]
    %v207 = vld [vmem:[%s2 + $0x340] sm:$0xff]
    %v208 = vld [vmem:[%s2 + $0x348] sm:$0xff]
    %v209 = vld [vmem:[%s2 + $0x350] sm:$0xff]
    %v210 = vld [vmem:[%s2 + $0x358] sm:$0xff]
    %v211 = vld [vmem:[%s2 + $0x360] sm:$0xff]
    %v212 = vld [vmem:[%s2 + $0x368] sm:$0xff]
    %v213 = vld [vmem:[%s2 + $0x370] sm:$0xff]
    %v214 = vld [vmem:[%s2 + $0x378] sm:$0xff]
    %v215 = vld [vmem:[%s2 + $0x380] sm:$0xff]
    %v216 = vld [vmem:[%s2 + $0x388] sm:$0xff]
    %v217 = vld [vmem:[%s2 + $0x390] sm:$0xff]
    %v218 = vld [vmem:[%s2 + $0x398] sm:$0xff]
    %v219 = vld [vmem:[%s2 + $0x3a0] sm:$0xff]
    %v220 = vld [vmem:[%s2 + $0x3a8] sm:$0xff]
    %v221 = vld [vmem:[%s2 + $0x3b0] sm:$0xff]
    %v222 = vld [vmem:[%s2 + $0x3b8] sm:$0xff]
    %v223 = vld [vmem:[%s2 + $0x3c0] sm:$0xff]
    %v224 = vld [vmem:[%s2 + $0x3c8] sm:$0xff]
    %v225 = vld [vmem:[%s2 + $0x3d0] sm:$0xff]
    %v226 = vld [vmem:[%s2 + $0x3d8] sm:$0xff]
    %v227 = vld [vmem:[%s2 + $0x3e0] sm:$0xff]
    %v228 = vld [vmem:[%s2 + $0x3e8] sm:$0xff]
    %v229 = vld [vmem:[%s2 + $0x3f0] sm:$0xff]
    %v230 = vld [vmem:[%s2 + $0x3f8] sm:$0xff]
    %v231 = vld [vmem:[%s2 + $0x400] sm:$0xff]
    %v232 = vld [vmem:[%s2 + $0x408] sm:$0xff]
    %v233 = vld [vmem:[%s2 + $0x410] sm:$0xff]
    %v234 = vld [vmem:[%s2 + $0x418] sm:$0xff]
    %v235 = vld [vmem:[%s2 + $0x420] sm:$0xff]
    %v236 = vld [vmem:[%s2 + $0x428] sm:$0xff]
    %v237 = vld [vmem:[%s2 + $0x430] sm:$0xff]
    %v238 = vld [vmem:[%s2 + $0x438] sm:$0xff]
    %v239 = vld [vmem:[%s2 + $0x440] sm:$0xff]
    %v240 = vld [vmem:[%s2 + $0x448] sm:$0xff]
    %v241 = vld [vmem:[%s2 + $0x450] sm:$0xff]
    %v242 = vld [vmem:[%s2 + $0x458] sm:$0xff]
    %v243 = vld [vmem:[%s2 + $0x460] sm:$0xff]
    %v244 = vld [vmem:[%s2 + $0x468] sm:$0xff]
    %v245 = vld [vmem:[%s2 + $0x470] sm:$0xff]
    %v246 = vld [vmem:[%s2 + $0x478] sm:$0xff]
    %v247 = vld [vmem:[%s2 + $0x480] sm:$0xff]
    %v248 = vld [vmem:[%s2 + $0x488] sm:$0xff]
    %v249 = vld [vmem:[%s2 + $0x490] sm:$0xff]
    %v250 = vld [vmem:[%s2 + $0x498] sm:$0xff]
    %v251 = vld [vmem:[%s2 + $0x4a0] sm:$0xff]
    %v252 = vld [vmem:[%s2 + $0x4a8] sm:$0xff]
    %v253 = vld [vmem:[%s2 + $0x4b0] sm:$0xff]
    %v254 = vld [vmem:[%s2 + $0x4b8] sm:$0xff]
    %v255 = vld [vmem:[%s2 + $0x4c0] sm:$0xff]
    %v256 = vld [vmem:[%s2 + $0x4c8] sm:$0xff]
    %v257 = vld [vmem:[%s2 + $0x4d0] sm:$0xff]
    %v258 = vld [vmem:[%s2 + $0x4d8] sm:$0xff]
    %v259 = vld [vmem:[%s2 + $0x4e0] sm:$0xff]
    %v260 = vld [vmem:[%s2 + $0x4e8] sm:$0xff]
    %v261 = vld [vmem:[%s2 + $0x4f0] sm:$0xff]
    %v262 = vld [vmem:[%s2 + $0x4f8] sm:$0xff]
    %v263 = vld [vmem:[%s2 + $0x500] sm:$0xff]
    %v264 = vld [vmem:[%s2 + $0x508] sm:$0xff]
    %v265 = vld [vmem:[%s2 + $0x510] sm:$0xff]
    %v266 = vld [vmem:[%s2 + $0x518] sm:$0xff]
    %v267 = vld [vmem:[%s2 + $0x520] sm:$0xff]
    %v268 = vld [vmem:[%s2 + $0x528] sm:$0xff]
    %v269 = vld [vmem:[%s2 + $0x530] sm:$0xff]
    %v270 = vld [vmem:[%s2 + $0x538] sm:$0xff]
    %v271 = vld [vmem:[%s2 + $0x540] sm:$0xff]
    %v272 = vld [vmem:[%s2 + $0x548] sm:$0xff]
    %v273 = vld [vmem:[%s2 + $0x550] sm:$0xff]
    %v274 = vld [vmem:[%s2 + $0x558] sm:$0xff]
    %v275 = vld [vmem:[%s2 + $0x560] sm:$0xff]
    %v276 = vld [vmem:[%s2 + $0x568] sm:$0xff]
    %v277 = vld [vmem:[%s2 + $0x570] sm:$0xff]
    %v278 = vld [vmem:[%s2 + $0x578] sm:$0xff]
    %v279 = vld [vmem:[%s2 + $0x580] sm:$0xff]
    %v280 = vld [vmem:[%s2 + $0x588] sm:$0xff]
    %v281 = vld [vmem:[%s2 + $0x590] sm:$0xff]
    %v282 = vld [vmem:[%s2 + $0x598] sm:$0xff]
    %v283 = vld [vmem:[%s2 + $0x5a0] sm:$0xff]
    %v284 = vld [vmem:[%s2 + $0x5a8] sm:$0xff]
    %v285 = vld [vmem:[%s2 + $0x5b0] sm:$0xff]
    %v286 = vld [vmem:[%s2 + $0x5b8] sm:$0xff]
    %v287 = vld [vmem:[%s2 + $0x5c0] sm:$0xff]
    %v288 = vld [vmem:[%s2 + $0x5c8] sm:$0xff]
    %v289 = vld [vmem:[%s2 + $0x5d0] sm:$0xff]
    %v290 = vld [vmem:[%s2 + $0x5d8] sm:$0xff]
    %v291 = vld [vmem:[%s2 + $0x5e0] sm:$0xff]
    %v292 = vld [vmem:[%s2 + $0x5e8] sm:$0xff]
    %v293 = vld [vmem:[%s2 + $0x5f0] sm:$0xff]
    %v294 = vld [vmem:[%s2 + $0x5f8] sm:$0xff]
    %v295 = vld [vmem:[%s2 + $0x600] sm:$0xff]
    %v296 = vld [vmem:[%s2 + $0x608] sm:$0xff]
    %v297 = vld [vmem:[%s2 + $0x610] sm:$0xff]
    %v298 = vld [vmem:[%s2 + $0x618] sm:$0xff]
    %v299 = vld [vmem:[%s3] sm:$0xf]
    %v301 = vlaneseq
    %v302 = vshrl.u32 %v301, 7
    %v303 = vsub.s32 0, %v302
    %v304 = vrot.slane %v299, %v303
    %v305 = vlaneseq
    %v306 = vshrl.u32 %v305, 7
    %v307 = vsub.s32 1, %v306
    %v308 = vrot.slane %v299, %v307
    %v309 = vlaneseq
    %v310 = vshrl.u32 %v309, 7
    %v311 = vsub.s32 2, %v310
    %v312 = vrot.slane %v299, %v311
    %v313 = vlaneseq
    %v314 = vshrl.u32 %v313, 7
    %v315 = vsub.s32 3, %v314
    %v316 = vrot.slane %v299, %v315
    %v385 = vunpack.c.l.b16 %v39
    %v386 = vunpack.c.h.b16 %v39
    %v387 = vunpack.c.l.b16 %v40
    %v388 = vunpack.c.h.b16 %v40
    %v389 = vunpack.c.l.b16 %v41
    %v390 = vunpack.c.h.b16 %v41
    %v391 = vunpack.c.l.b16 %v42
    %v392 = vunpack.c.l.b16 %v43
    %v393 = vunpack.c.h.b16 %v43
    %v394 = vunpack.c.l.b16 %v44
    %v395 = vunpack.c.h.b16 %v44
    %v396 = vunpack.c.l.b16 %v45
    %v397 = vunpack.c.h.b16 %v45
    %v398 = vunpack.c.l.b16 %v46
    %v399 = vunpack.c.l.b16 %v47
    %v400 = vunpack.c.h.b16 %v47
    %v401 = vunpack.c.l.b16 %v48
    %v402 = vunpack.c.h.b16 %v48
    %v403 = vunpack.c.l.b16 %v49
    %v404 = vunpack.c.h.b16 %v49
    %v405 = vunpack.c.l.b16 %v50
    %v406 = vunpack.c.l.b16 %v51
    %v407 = vunpack.c.h.b16 %v51
    %v408 = vunpack.c.l.b16 %v52
    %v409 = vunpack.c.h.b16 %v52
    %v410 = vunpack.c.l.b16 %v53
    %v411 = vunpack.c.h.b16 %v53
    %v412 = vunpack.c.l.b16 %v54
    %v413 = vunpack.c.l.b16 %v55
    %v414 = vunpack.c.h.b16 %v55
    %v415 = vunpack.c.l.b16 %v56
    %v416 = vunpack.c.h.b16 %v56
    %v417 = vunpack.c.l.b16 %v57
    %v418 = vunpack.c.h.b16 %v57
    %v419 = vunpack.c.l.b16 %v58
    %v420 = vunpack.c.l.b16 %v59
    %v421 = vunpack.c.h.b16 %v59
    %v422 = vunpack.c.l.b16 %v60
    %v423 = vunpack.c.h.b16 %v60
    %v424 = vunpack.c.l.b16 %v61
    %v425 = vunpack.c.h.b16 %v61
    %v426 = vunpack.c.l.b16 %v62
    %v427 = vunpack.c.l.b16 %v63
    %v428 = vunpack.c.h.b16 %v63
    %v429 = vunpack.c.l.b16 %v64
    %v430 = vunpack.c.h.b16 %v64
    %v431 = vunpack.c.l.b16 %v65
    %v432 = vunpack.c.h.b16 %v65
    %v433 = vunpack.c.l.b16 %v66
    %v434 = vunpack.c.l.b16 %v67
    %v435 = vunpack.c.h.b16 %v67
    %v436 = vunpack.c.l.b16 %v68
    %v437 = vunpack.c.h.b16 %v68
    %v438 = vunpack.c.l.b16 %v69
    %v439 = vunpack.c.h.b16 %v69
    %v440 = vunpack.c.l.b16 %v70
    %v441 = vunpack.c.l.b16 %v71
    %v442 = vunpack.c.h.b16 %v71
    %v443 = vunpack.c.l.b16 %v72
    %v444 = vunpack.c.h.b16 %v72
    %v445 = vunpack.c.l.b16 %v73
    %v446 = vunpack.c.h.b16 %v73
    %v447 = vunpack.c.l.b16 %v74
    %v448 = vunpack.c.l.b16 %v75
    %v449 = vunpack.c.h.b16 %v75
    %v450 = vunpack.c.l.b16 %v76
    %v451 = vunpack.c.h.b16 %v76
    %v452 = vunpack.c.l.b16 %v77
    %v453 = vunpack.c.h.b16 %v77
    %v454 = vunpack.c.l.b16 %v78
    %v455 = vunpack.c.l.b16 %v79
    %v456 = vunpack.c.h.b16 %v79
    %v457 = vunpack.c.l.b16 %v80
    %v458 = vunpack.c.h.b16 %v80
    %v459 = vunpack.c.l.b16 %v81
    %v460 = vunpack.c.h.b16 %v81
    %v461 = vunpack.c.l.b16 %v82
    %v462 = vunpack.c.l.b16 %v83
    %v463 = vunpack.c.h.b16 %v83
    %v464 = vunpack.c.l.b16 %v84
    %v465 = vunpack.c.h.b16 %v84
    %v466 = vunpack.c.l.b16 %v85
    %v467 = vunpack.c.h.b16 %v85
    %v468 = vunpack.c.l.b16 %v86
    %v469 = vunpack.c.l.b16 %v87
    %v470 = vunpack.c.h.b16 %v87
    %v471 = vunpack.c.l.b16 %v88
    %v472 = vunpack.c.h.b16 %v88
    %v473 = vunpack.c.l.b16 %v89
    %v474 = vunpack.c.h.b16 %v89
    %v475 = vunpack.c.l.b16 %v90
    %v476 = vunpack.c.l.b16 %v91
    %v477 = vunpack.c.h.b16 %v91
    %v478 = vunpack.c.l.b16 %v92
    %v479 = vunpack.c.h.b16 %v92
    %v480 = vunpack.c.l.b16 %v93
    %v481 = vunpack.c.h.b16 %v93
    %v482 = vunpack.c.l.b16 %v94
    %v483 = vunpack.c.l.b16 %v95
    %v484 = vunpack.c.h.b16 %v95
    %v485 = vunpack.c.l.b16 %v96
    %v486 = vunpack.c.h.b16 %v96
    %v487 = vunpack.c.l.b16 %v97
    %v488 = vunpack.c.h.b16 %v97
    %v489 = vunpack.c.l.b16 %v98
    %v490 = vunpack.c.l.b16 %v99
    %v491 = vunpack.c.h.b16 %v99
    %v492 = vunpack.c.l.b16 %v100
    %v493 = vunpack.c.h.b16 %v100
    %v494 = vunpack.c.l.b16 %v101
    %v495 = vunpack.c.h.b16 %v101
    %v496 = vunpack.c.l.b16 %v102
    %v497 = vpack.c.b16 %v392, %v385
    %v498 = vpack.c.b16 %v393, %v386
    %v499 = vpack.c.b16 %v394, %v387
    %v500 = vpack.c.b16 %v395, %v388
    %v501 = vpack.c.b16 %v396, %v389
    %v502 = vpack.c.b16 %v397, %v390
    %v503 = vpack.c.b16 %v398, %v391
    %v504 = vpack.c.b16 %v406, %v399
    %v505 = vpack.c.b16 %v407, %v400
    %v506 = vpack.c.b16 %v408, %v401
    %v507 = vpack.c.b16 %v409, %v402
    %v508 = vpack.c.b16 %v410, %v403
    %v509 = vpack.c.b16 %v411, %v404
    %v510 = vpack.c.b16 %v412, %v405
    %v511 = vpack.c.b16 %v420, %v413
    %v512 = vpack.c.b16 %v421, %v414
    %v513 = vpack.c.b16 %v422, %v415
    %v514 = vpack.c.b16 %v423, %v416
    %v515 = vpack.c.b16 %v424, %v417
    %v516 = vpack.c.b16 %v425, %v418
    %v517 = vpack.c.b16 %v426, %v419
    %v518 = vpack.c.b16 %v434, %v427
    %v519 = vpack.c.b16 %v435, %v428
    %v520 = vpack.c.b16 %v436, %v429
    %v521 = vpack.c.b16 %v437, %v430
    %v522 = vpack.c.b16 %v438, %v431
    %v523 = vpack.c.b16 %v439, %v432
    %v524 = vpack.c.b16 %v440, %v433
    %v525 = vpack.c.b16 %v448, %v441
    %v526 = vpack.c.b16 %v449, %v442
    %v527 = vpack.c.b16 %v450, %v443
    %v528 = vpack.c.b16 %v451, %v444
    %v529 = vpack.c.b16 %v452, %v445
    %v530 = vpack.c.b16 %v453, %v446
    %v531 = vpack.c.b16 %v454, %v447
    %v532 = vpack.c.b16 %v462, %v455
    %v533 = vpack.c.b16 %v463, %v456
    %v534 = vpack.c.b16 %v464, %v457
    %v535 = vpack.c.b16 %v465, %v458
    %v536 = vpack.c.b16 %v466, %v459
    %v537 = vpack.c.b16 %v467, %v460
    %v538 = vpack.c.b16 %v468, %v461
    %v539 = vpack.c.b16 %v476, %v469
    %v540 = vpack.c.b16 %v477, %v470
    %v541 = vpack.c.b16 %v478, %v471
    %v542 = vpack.c.b16 %v479, %v472
    %v543 = vpack.c.b16 %v480, %v473
    %v544 = vpack.c.b16 %v481, %v474
    %v545 = vpack.c.b16 %v482, %v475
    %v546 = vpack.c.b16 %v490, %v483
    %v547 = vpack.c.b16 %v491, %v484
    %v548 = vpack.c.b16 %v492, %v485
    %v549 = vpack.c.b16 %v493, %v486
    %v550 = vpack.c.b16 %v494, %v487
    %v551 = vpack.c.b16 %v495, %v488
    %v552 = vpack.c.b16 %v496, %v489
    %v797 = vunpack.c.l.b16 %v103
    %v798 = vunpack.c.h.b16 %v103
    %v799 = vunpack.c.l.b16 %v104
    %v800 = vunpack.c.h.b16 %v104
    %v801 = vunpack.c.l.b16 %v105
    %v802 = vunpack.c.h.b16 %v105
    %v803 = vunpack.c.l.b16 %v106
    %v804 = vunpack.c.h.b16 %v106
    %v805 = vunpack.c.l.b16 %v107
    %v806 = vunpack.c.h.b16 %v107
    %v807 = vunpack.c.l.b16 %v108
    %v808 = vunpack.c.h.b16 %v108
    %v809 = vunpack.c.l.b16 %v109
    %v810 = vunpack.c.h.b16 %v109
    %v811 = vunpack.c.l.b16 %v110
    %v812 = vunpack.c.h.b16 %v110
    %v813 = vunpack.c.l.b16 %v111
    %v814 = vunpack.c.h.b16 %v111
    %v815 = vunpack.c.l.b16 %v112
    %v816 = vunpack.c.h.b16 %v112
    %v817 = vunpack.c.l.b16 %v113
    %v818 = vunpack.c.h.b16 %v113
    %v819 = vunpack.c.l.b16 %v114
    %v820 = vunpack.c.h.b16 %v114
    %v821 = vunpack.c.l.b16 %v115
    %v822 = vunpack.c.h.b16 %v115
    %v823 = vunpack.c.l.b16 %v116
    %v824 = vunpack.c.h.b16 %v116
    %v825 = vunpack.c.l.b16 %v117
    %v826 = vunpack.c.h.b16 %v117
    %v827 = vunpack.c.l.b16 %v118
    %v828 = vunpack.c.h.b16 %v118
    %v829 = vunpack.c.l.b16 %v119
    %v830 = vunpack.c.h.b16 %v119
    %v831 = vunpack.c.l.b16 %v120
    %v832 = vunpack.c.h.b16 %v120
    %v833 = vunpack.c.l.b16 %v121
    %v834 = vunpack.c.h.b16 %v121
    %v835 = vunpack.c.l.b16 %v122
    %v836 = vunpack.c.h.b16 %v122
    %v837 = vunpack.c.l.b16 %v123
    %v838 = vunpack.c.h.b16 %v123
    %v839 = vunpack.c.l.b16 %v124
    %v840 = vunpack.c.h.b16 %v124
    %v841 = vunpack.c.l.b16 %v125
    %v842 = vunpack.c.h.b16 %v125
    %v843 = vunpack.c.l.b16 %v126
    %v844 = vunpack.c.h.b16 %v126
    %v845 = vunpack.c.l.b16 %v127
    %v846 = vunpack.c.h.b16 %v127
    %v847 = vunpack.c.l.b16 %v128
    %v848 = vunpack.c.h.b16 %v128
    %v849 = vunpack.c.l.b16 %v129
    %v850 = vunpack.c.h.b16 %v129
    %v851 = vunpack.c.l.b16 %v130
    %v852 = vunpack.c.h.b16 %v130
    %v853 = vunpack.c.l.b16 %v131
    %v854 = vunpack.c.h.b16 %v131
    %v855 = vunpack.c.l.b16 %v132
    %v856 = vunpack.c.h.b16 %v132
    %v857 = vunpack.c.l.b16 %v133
    %v858 = vunpack.c.h.b16 %v133
    %v859 = vunpack.c.l.b16 %v134
    %v860 = vunpack.c.h.b16 %v134
    %v861 = vunpack.c.l.b16 %v135
    %v862 = vunpack.c.h.b16 %v135
    %v863 = vunpack.c.l.b16 %v136
    %v864 = vunpack.c.h.b16 %v136
    %v865 = vunpack.c.l.b16 %v137
    %v866 = vunpack.c.h.b16 %v137
    %v867 = vunpack.c.l.b16 %v138
    %v868 = vunpack.c.h.b16 %v138
    %v869 = vunpack.c.l.b16 %v139
    %v870 = vunpack.c.h.b16 %v139
    %v871 = vunpack.c.l.b16 %v140
    %v872 = vunpack.c.h.b16 %v140
    %v873 = vunpack.c.l.b16 %v141
    %v874 = vunpack.c.h.b16 %v141
    %v875 = vunpack.c.l.b16 %v142
    %v876 = vunpack.c.h.b16 %v142
    %v877 = vunpack.c.l.b16 %v143
    %v878 = vunpack.c.h.b16 %v143
    %v879 = vunpack.c.l.b16 %v144
    %v880 = vunpack.c.h.b16 %v144
    %v881 = vunpack.c.l.b16 %v145
    %v882 = vunpack.c.h.b16 %v145
    %v883 = vunpack.c.l.b16 %v146
    %v884 = vunpack.c.h.b16 %v146
    %v885 = vunpack.c.l.b16 %v147
    %v886 = vunpack.c.h.b16 %v147
    %v887 = vunpack.c.l.b16 %v148
    %v888 = vunpack.c.h.b16 %v148
    %v889 = vunpack.c.l.b16 %v149
    %v890 = vunpack.c.h.b16 %v149
    %v891 = vunpack.c.l.b16 %v150
    %v892 = vunpack.c.h.b16 %v150
    %v893 = vunpack.c.l.b16 %v151
    %v894 = vunpack.c.h.b16 %v151
    %v895 = vunpack.c.l.b16 %v152
    %v896 = vunpack.c.h.b16 %v152
    %v897 = vunpack.c.l.b16 %v153
    %v898 = vunpack.c.h.b16 %v153
    %v899 = vunpack.c.l.b16 %v154
    %v900 = vunpack.c.h.b16 %v154
    %v901 = vunpack.c.l.b16 %v155
    %v902 = vunpack.c.h.b16 %v155
    %v903 = vunpack.c.l.b16 %v156
    %v904 = vunpack.c.h.b16 %v156
    %v905 = vunpack.c.l.b16 %v157
    %v906 = vunpack.c.h.b16 %v157
    %v907 = vunpack.c.l.b16 %v158
    %v908 = vunpack.c.h.b16 %v158
    %v909 = vunpack.c.l.b16 %v159
    %v910 = vunpack.c.h.b16 %v159
    %v911 = vunpack.c.l.b16 %v160
    %v912 = vunpack.c.h.b16 %v160
    %v913 = vunpack.c.l.b16 %v161
    %v914 = vunpack.c.h.b16 %v161
    %v915 = vunpack.c.l.b16 %v162
    %v916 = vunpack.c.h.b16 %v162
    %v917 = vunpack.c.l.b16 %v163
    %v918 = vunpack.c.h.b16 %v163
    %v919 = vunpack.c.l.b16 %v164
    %v920 = vunpack.c.h.b16 %v164
    %v921 = vunpack.c.l.b16 %v165
    %v922 = vunpack.c.h.b16 %v165
    %v923 = vunpack.c.l.b16 %v166
    %v924 = vunpack.c.h.b16 %v166
    %v925 = vunpack.c.l.b16 %v167
    %v926 = vunpack.c.h.b16 %v167
    %v927 = vunpack.c.l.b16 %v168
    %v928 = vunpack.c.h.b16 %v168
    %v929 = vunpack.c.l.b16 %v169
    %v930 = vunpack.c.h.b16 %v169
    %v931 = vunpack.c.l.b16 %v170
    %v932 = vunpack.c.h.b16 %v170
    %v933 = vunpack.c.l.b16 %v171
    %v934 = vunpack.c.h.b16 %v171
    %v935 = vunpack.c.l.b16 %v172
    %v936 = vunpack.c.h.b16 %v172
    %v937 = vunpack.c.l.b16 %v173
    %v938 = vunpack.c.h.b16 %v173
    %v939 = vunpack.c.l.b16 %v174
    %v940 = vunpack.c.h.b16 %v174
    %v941 = vunpack.c.l.b16 %v175
    %v942 = vunpack.c.h.b16 %v175
    %v943 = vunpack.c.l.b16 %v176
    %v944 = vunpack.c.h.b16 %v176
    %v945 = vunpack.c.l.b16 %v177
    %v946 = vunpack.c.h.b16 %v177
    %v947 = vunpack.c.l.b16 %v178
    %v948 = vunpack.c.h.b16 %v178
    %v949 = vunpack.c.l.b16 %v179
    %v950 = vunpack.c.h.b16 %v179
    %v951 = vunpack.c.l.b16 %v180
    %v952 = vunpack.c.h.b16 %v180
    %v953 = vunpack.c.l.b16 %v181
    %v954 = vunpack.c.h.b16 %v181
    %v955 = vunpack.c.l.b16 %v182
    %v956 = vunpack.c.h.b16 %v182
    %v957 = vunpack.c.l.b16 %v183
    %v958 = vunpack.c.h.b16 %v183
    %v959 = vunpack.c.l.b16 %v184
    %v960 = vunpack.c.h.b16 %v184
    %v961 = vunpack.c.l.b16 %v185
    %v962 = vunpack.c.h.b16 %v185
    %v963 = vunpack.c.l.b16 %v186
    %v964 = vunpack.c.h.b16 %v186
    %v965 = vunpack.c.l.b16 %v187
    %v966 = vunpack.c.h.b16 %v187
    %v967 = vunpack.c.l.b16 %v188
    %v968 = vunpack.c.h.b16 %v188
    %v969 = vunpack.c.l.b16 %v189
    %v970 = vunpack.c.h.b16 %v189
    %v971 = vunpack.c.l.b16 %v190
    %v972 = vunpack.c.h.b16 %v190
    %v973 = vunpack.c.l.b16 %v191
    %v974 = vunpack.c.h.b16 %v191
    %v975 = vunpack.c.l.b16 %v192
    %v976 = vunpack.c.h.b16 %v192
    %v977 = vunpack.c.l.b16 %v193
    %v978 = vunpack.c.h.b16 %v193
    %v979 = vunpack.c.l.b16 %v194
    %v980 = vunpack.c.h.b16 %v194
    %v981 = vunpack.c.l.b16 %v195
    %v982 = vunpack.c.h.b16 %v195
    %v983 = vunpack.c.l.b16 %v196
    %v984 = vunpack.c.h.b16 %v196
    %v985 = vunpack.c.l.b16 %v197
    %v986 = vunpack.c.h.b16 %v197
    %v987 = vunpack.c.l.b16 %v198
    %v988 = vunpack.c.h.b16 %v198
    %v989 = vunpack.c.l.b16 %v199
    %v990 = vunpack.c.h.b16 %v199
    %v991 = vunpack.c.l.b16 %v200
    %v992 = vunpack.c.h.b16 %v200
    %v993 = vunpack.c.l.b16 %v201
    %v994 = vunpack.c.h.b16 %v201
    %v995 = vunpack.c.l.b16 %v202
    %v996 = vunpack.c.h.b16 %v202
    %v997 = vunpack.c.l.b16 %v203
    %v998 = vunpack.c.h.b16 %v203
    %v999 = vunpack.c.l.b16 %v204
    %v1000 = vunpack.c.h.b16 %v204
    %v1001 = vunpack.c.l.b16 %v205
    %v1002 = vunpack.c.h.b16 %v205
    %v1003 = vunpack.c.l.b16 %v206
    %v1004 = vunpack.c.h.b16 %v206
    %v1005 = vunpack.c.l.b16 %v207
    %v1006 = vunpack.c.h.b16 %v207
    %v1007 = vunpack.c.l.b16 %v208
    %v1008 = vunpack.c.h.b16 %v208
    %v1009 = vunpack.c.l.b16 %v209
    %v1010 = vunpack.c.h.b16 %v209
    %v1011 = vunpack.c.l.b16 %v210
    %v1012 = vunpack.c.h.b16 %v210
    %v1013 = vunpack.c.l.b16 %v211
    %v1014 = vunpack.c.h.b16 %v211
    %v1015 = vunpack.c.l.b16 %v212
    %v1016 = vunpack.c.h.b16 %v212
    %v1017 = vunpack.c.l.b16 %v213
    %v1018 = vunpack.c.h.b16 %v213
    %v1019 = vunpack.c.l.b16 %v214
    %v1020 = vunpack.c.h.b16 %v214
    %v1021 = vunpack.c.l.b16 %v215
    %v1022 = vunpack.c.h.b16 %v215
    %v1023 = vunpack.c.l.b16 %v216
    %v1024 = vunpack.c.h.b16 %v216
    %v1025 = vunpack.c.l.b16 %v217
    %v1026 = vunpack.c.h.b16 %v217
    %v1027 = vunpack.c.l.b16 %v218
    %v1028 = vunpack.c.h.b16 %v218
    %v1029 = vunpack.c.l.b16 %v219
    %v1030 = vunpack.c.h.b16 %v219
    %v1031 = vunpack.c.l.b16 %v220
    %v1032 = vunpack.c.h.b16 %v220
    %v1033 = vunpack.c.l.b16 %v221
    %v1034 = vunpack.c.h.b16 %v221
    %v1035 = vunpack.c.l.b16 %v222
    %v1036 = vunpack.c.h.b16 %v222
    %v1037 = vunpack.c.l.b16 %v223
    %v1038 = vunpack.c.h.b16 %v223
    %v1039 = vunpack.c.l.b16 %v224
    %v1040 = vunpack.c.h.b16 %v224
    %v1041 = vunpack.c.l.b16 %v225
    %v1042 = vunpack.c.h.b16 %v225
    %v1043 = vunpack.c.l.b16 %v226
    %v1044 = vunpack.c.h.b16 %v226
    %v1045 = vunpack.c.l.b16 %v227
    %v1046 = vunpack.c.h.b16 %v227
    %v1047 = vunpack.c.l.b16 %v228
    %v1048 = vunpack.c.h.b16 %v228
    %v1049 = vunpack.c.l.b16 %v229
    %v1050 = vunpack.c.h.b16 %v229
    %v1051 = vunpack.c.l.b16 %v230
    %v1052 = vunpack.c.h.b16 %v230
    %v1053 = vunpack.c.l.b16 %v231
    %v1054 = vunpack.c.h.b16 %v231
    %v1055 = vunpack.c.l.b16 %v232
    %v1056 = vunpack.c.h.b16 %v232
    %v1057 = vunpack.c.l.b16 %v233
    %v1058 = vunpack.c.h.b16 %v233
    %v1059 = vunpack.c.l.b16 %v234
    %v1060 = vunpack.c.h.b16 %v234
    %v1061 = vunpack.c.l.b16 %v235
    %v1062 = vunpack.c.h.b16 %v235
    %v1063 = vunpack.c.l.b16 %v236
    %v1064 = vunpack.c.h.b16 %v236
    %v1065 = vunpack.c.l.b16 %v237
    %v1066 = vunpack.c.h.b16 %v237
    %v1067 = vunpack.c.l.b16 %v238
    %v1068 = vunpack.c.h.b16 %v238
    %v1069 = vunpack.c.l.b16 %v239
    %v1070 = vunpack.c.h.b16 %v239
    %v1071 = vunpack.c.l.b16 %v240
    %v1072 = vunpack.c.h.b16 %v240
    %v1073 = vunpack.c.l.b16 %v241
    %v1074 = vunpack.c.h.b16 %v241
    %v1075 = vunpack.c.l.b16 %v242
    %v1076 = vunpack.c.h.b16 %v242
    %v1077 = vunpack.c.l.b16 %v243
    %v1078 = vunpack.c.h.b16 %v243
    %v1079 = vunpack.c.l.b16 %v244
    %v1080 = vunpack.c.h.b16 %v244
    %v1081 = vunpack.c.l.b16 %v245
    %v1082 = vunpack.c.h.b16 %v245
    %v1083 = vunpack.c.l.b16 %v246
    %v1084 = vunpack.c.h.b16 %v246
    %v1085 = vunpack.c.l.b16 %v247
    %v1086 = vunpack.c.h.b16 %v247
    %v1087 = vunpack.c.l.b16 %v248
    %v1088 = vunpack.c.h.b16 %v248
    %v1089 = vunpack.c.l.b16 %v249
    %v1090 = vunpack.c.h.b16 %v249
    %v1091 = vunpack.c.l.b16 %v250
    %v1092 = vunpack.c.h.b16 %v250
    %v1093 = vunpack.c.l.b16 %v251
    %v1094 = vunpack.c.h.b16 %v251
    %v1095 = vunpack.c.l.b16 %v252
    %v1096 = vunpack.c.h.b16 %v252
    %v1097 = vunpack.c.l.b16 %v253
    %v1098 = vunpack.c.h.b16 %v253
    %v1099 = vunpack.c.l.b16 %v254
    %v1100 = vunpack.c.h.b16 %v254
    %v1101 = vunpack.c.l.b16 %v255
    %v1102 = vunpack.c.h.b16 %v255
    %v1103 = vunpack.c.l.b16 %v256
    %v1104 = vunpack.c.h.b16 %v256
    %v1105 = vunpack.c.l.b16 %v257
    %v1106 = vunpack.c.h.b16 %v257
    %v1107 = vunpack.c.l.b16 %v258
    %v1108 = vunpack.c.h.b16 %v258
    %v1109 = vunpack.c.l.b16 %v259
    %v1110 = vunpack.c.h.b16 %v259
    %v1111 = vunpack.c.l.b16 %v260
    %v1112 = vunpack.c.h.b16 %v260
    %v1113 = vunpack.c.l.b16 %v261
    %v1114 = vunpack.c.h.b16 %v261
    %v1115 = vunpack.c.l.b16 %v262
    %v1116 = vunpack.c.h.b16 %v262
    %v1117 = vunpack.c.l.b16 %v263
    %v1118 = vunpack.c.h.b16 %v263
    %v1119 = vunpack.c.l.b16 %v264
    %v1120 = vunpack.c.h.b16 %v264
    %v1121 = vunpack.c.l.b16 %v265
    %v1122 = vunpack.c.h.b16 %v265
    %v1123 = vunpack.c.l.b16 %v266
    %v1124 = vunpack.c.h.b16 %v266
    %v1125 = vunpack.c.l.b16 %v267
    %v1126 = vunpack.c.h.b16 %v267
    %v1127 = vunpack.c.l.b16 %v268
    %v1128 = vunpack.c.h.b16 %v268
    %v1129 = vunpack.c.l.b16 %v269
    %v1130 = vunpack.c.h.b16 %v269
    %v1131 = vunpack.c.l.b16 %v270
    %v1132 = vunpack.c.h.b16 %v270
    %v1133 = vunpack.c.l.b16 %v271
    %v1134 = vunpack.c.h.b16 %v271
    %v1135 = vunpack.c.l.b16 %v272
    %v1136 = vunpack.c.h.b16 %v272
    %v1137 = vunpack.c.l.b16 %v273
    %v1138 = vunpack.c.h.b16 %v273
    %v1139 = vunpack.c.l.b16 %v274
    %v1140 = vunpack.c.h.b16 %v274
    %v1141 = vunpack.c.l.b16 %v275
    %v1142 = vunpack.c.h.b16 %v275
    %v1143 = vunpack.c.l.b16 %v276
    %v1144 = vunpack.c.h.b16 %v276
    %v1145 = vunpack.c.l.b16 %v277
    %v1146 = vunpack.c.h.b16 %v277
    %v1147 = vunpack.c.l.b16 %v278
    %v1148 = vunpack.c.h.b16 %v278
    %v1149 = vunpack.c.l.b16 %v279
    %v1150 = vunpack.c.h.b16 %v279
    %v1151 = vunpack.c.l.b16 %v280
    %v1152 = vunpack.c.h.b16 %v280
    %v1153 = vunpack.c.l.b16 %v281
    %v1154 = vunpack.c.h.b16 %v281
    %v1155 = vunpack.c.l.b16 %v282
    %v1156 = vunpack.c.h.b16 %v282
    %v1157 = vunpack.c.l.b16 %v283
    %v1158 = vunpack.c.h.b16 %v283
    %v1159 = vunpack.c.l.b16 %v284
    %v1160 = vunpack.c.h.b16 %v284
    %v1161 = vunpack.c.l.b16 %v285
    %v1162 = vunpack.c.h.b16 %v285
    %v1163 = vunpack.c.l.b16 %v286
    %v1164 = vunpack.c.h.b16 %v286
    %v1165 = vunpack.c.l.b16 %v287
    %v1166 = vunpack.c.h.b16 %v287
    %v1167 = vunpack.c.l.b16 %v288
    %v1168 = vunpack.c.h.b16 %v288
    %v1169 = vunpack.c.l.b16 %v289
    %v1170 = vunpack.c.h.b16 %v289
    %v1171 = vunpack.c.l.b16 %v290
    %v1172 = vunpack.c.h.b16 %v290
    %v1173 = vunpack.c.l.b16 %v291
    %v1174 = vunpack.c.h.b16 %v291
    %v1175 = vunpack.c.l.b16 %v292
    %v1176 = vunpack.c.h.b16 %v292
    %v1177 = vunpack.c.l.b16 %v293
    %v1178 = vunpack.c.h.b16 %v293
    %v1179 = vunpack.c.l.b16 %v294
    %v1180 = vunpack.c.h.b16 %v294
    %v1181 = vunpack.c.l.b16 %v295
    %v1182 = vunpack.c.h.b16 %v295
    %v1183 = vunpack.c.l.b16 %v296
    %v1184 = vunpack.c.h.b16 %v296
    %v1185 = vunpack.c.l.b16 %v297
    %v1186 = vunpack.c.h.b16 %v297
    %v1187 = vunpack.c.l.b16 %v298
    %v1188 = vunpack.c.h.b16 %v298
    %v1189 = vpack.c.b16 %v801, %v797
    %v1190 = vpack.c.b16 %v802, %v798
    %v1191 = vpack.c.b16 %v803, %v799
    %v1192 = vpack.c.b16 %v804, %v800
    %v1193 = vpack.c.b16 %v809, %v805
    %v1194 = vpack.c.b16 %v810, %v806
    %v1195 = vpack.c.b16 %v811, %v807
    %v1196 = vpack.c.b16 %v812, %v808
    %v1197 = vpack.c.b16 %v817, %v813
    %v1198 = vpack.c.b16 %v818, %v814
    %v1199 = vpack.c.b16 %v819, %v815
    %v1200 = vpack.c.b16 %v820, %v816
    %v1201 = vpack.c.b16 %v825, %v821
    %v1202 = vpack.c.b16 %v826, %v822
    %v1203 = vpack.c.b16 %v827, %v823
    %v1204 = vpack.c.b16 %v828, %v824
    %v1205 = vpack.c.b16 %v833, %v829
    %v1206 = vpack.c.b16 %v834, %v830
    %v1207 = vpack.c.b16 %v835, %v831
    %v1208 = vpack.c.b16 %v836, %v832
    %v1209 = vpack.c.b16 %v841, %v837
    %v1210 = vpack.c.b16 %v842, %v838
    %v1211 = vpack.c.b16 %v843, %v839
    %v1212 = vpack.c.b16 %v844, %v840
    %v1213 = vpack.c.b16 %v849, %v845
    %v1214 = vpack.c.b16 %v850, %v846
    %v1215 = vpack.c.b16 %v851, %v847
    %v1216 = vpack.c.b16 %v852, %v848
    %v1217 = vpack.c.b16 %v857, %v853
    %v1218 = vpack.c.b16 %v858, %v854
    %v1219 = vpack.c.b16 %v859, %v855
    %v1220 = vpack.c.b16 %v860, %v856
    %v1221 = vpack.c.b16 %v865, %v861
    %v1222 = vpack.c.b16 %v866, %v862
    %v1223 = vpack.c.b16 %v867, %v863
    %v1224 = vpack.c.b16 %v868, %v864
    %v1225 = vpack.c.b16 %v873, %v869
    %v1226 = vpack.c.b16 %v874, %v870
    %v1227 = vpack.c.b16 %v875, %v871
    %v1228 = vpack.c.b16 %v876, %v872
    %v1229 = vpack.c.b16 %v881, %v877
    %v1230 = vpack.c.b16 %v882, %v878
    %v1231 = vpack.c.b16 %v883, %v879
    %v1232 = vpack.c.b16 %v884, %v880
    %v1233 = vpack.c.b16 %v889, %v885
    %v1234 = vpack.c.b16 %v890, %v886
    %v1235 = vpack.c.b16 %v891, %v887
    %v1236 = vpack.c.b16 %v892, %v888
    %v1237 = vpack.c.b16 %v897, %v893
    %v1238 = vpack.c.b16 %v898, %v894
    %v1239 = vpack.c.b16 %v899, %v895
    %v1240 = vpack.c.b16 %v900, %v896
    %v1241 = vpack.c.b16 %v905, %v901
    %v1242 = vpack.c.b16 %v906, %v902
    %v1243 = vpack.c.b16 %v907, %v903
    %v1244 = vpack.c.b16 %v908, %v904
    %v1245 = vpack.c.b16 %v913, %v909
    %v1246 = vpack.c.b16 %v914, %v910
    %v1247 = vpack.c.b16 %v915, %v911
    %v1248 = vpack.c.b16 %v916, %v912
    %v1249 = vpack.c.b16 %v921, %v917
    %v1250 = vpack.c.b16 %v922, %v918
    %v1251 = vpack.c.b16 %v923, %v919
    %v1252 = vpack.c.b16 %v924, %v920
    %v1253 = vpack.c.b16 %v929, %v925
    %v1254 = vpack.c.b16 %v930, %v926
    %v1255 = vpack.c.b16 %v931, %v927
    %v1256 = vpack.c.b16 %v932, %v928
    %v1257 = vpack.c.b16 %v937, %v933
    %v1258 = vpack.c.b16 %v938, %v934
    %v1259 = vpack.c.b16 %v939, %v935
    %v1260 = vpack.c.b16 %v940, %v936
    %v1261 = vpack.c.b16 %v945, %v941
    %v1262 = vpack.c.b16 %v946, %v942
    %v1263 = vpack.c.b16 %v947, %v943
    %v1264 = vpack.c.b16 %v948, %v944
    %v1265 = vpack.c.b16 %v953, %v949
    %v1266 = vpack.c.b16 %v954, %v950
    %v1267 = vpack.c.b16 %v955, %v951
    %v1268 = vpack.c.b16 %v956, %v952
    %v1269 = vpack.c.b16 %v961, %v957
    %v1270 = vpack.c.b16 %v962, %v958
    %v1271 = vpack.c.b16 %v963, %v959
    %v1272 = vpack.c.b16 %v964, %v960
    %v1273 = vpack.c.b16 %v969, %v965
    %v1274 = vpack.c.b16 %v970, %v966
    %v1275 = vpack.c.b16 %v971, %v967
    %v1276 = vpack.c.b16 %v972, %v968
    %v1277 = vpack.c.b16 %v977, %v973
    %v1278 = vpack.c.b16 %v978, %v974
    %v1279 = vpack.c.b16 %v979, %v975
    %v1280 = vpack.c.b16 %v980, %v976
    %v1281 = vpack.c.b16 %v985, %v981
    %v1282 = vpack.c.b16 %v986, %v982
    %v1283 = vpack.c.b16 %v987, %v983
    %v1284 = vpack.c.b16 %v988, %v984
    %v1285 = vpack.c.b16 %v993, %v989
    %v1286 = vpack.c.b16 %v994, %v990
    %v1287 = vpack.c.b16 %v995, %v991
    %v1288 = vpack.c.b16 %v996, %v992
    %v1289 = vpack.c.b16 %v1001, %v997
    %v1290 = vpack.c.b16 %v1002, %v998
    %v1291 = vpack.c.b16 %v1003, %v999
    %v1292 = vpack.c.b16 %v1004, %v1000
    %v1293 = vpack.c.b16 %v1009, %v1005
    %v1294 = vpack.c.b16 %v1010, %v1006
    %v1295 = vpack.c.b16 %v1011, %v1007
    %v1296 = vpack.c.b16 %v1012, %v1008
    %v1297 = vpack.c.b16 %v1017, %v1013
    %v1298 = vpack.c.b16 %v1018, %v1014
    %v1299 = vpack.c.b16 %v1019, %v1015
    %v1300 = vpack.c.b16 %v1020, %v1016
    %v1301 = vpack.c.b16 %v1025, %v1021
    %v1302 = vpack.c.b16 %v1026, %v1022
    %v1303 = vpack.c.b16 %v1027, %v1023
    %v1304 = vpack.c.b16 %v1028, %v1024
    %v1305 = vpack.c.b16 %v1033, %v1029
    %v1306 = vpack.c.b16 %v1034, %v1030
    %v1307 = vpack.c.b16 %v1035, %v1031
    %v1308 = vpack.c.b16 %v1036, %v1032
    %v1309 = vpack.c.b16 %v1041, %v1037
    %v1310 = vpack.c.b16 %v1042, %v1038
    %v1311 = vpack.c.b16 %v1043, %v1039
    %v1312 = vpack.c.b16 %v1044, %v1040
    %v1313 = vpack.c.b16 %v1049, %v1045
    %v1314 = vpack.c.b16 %v1050, %v1046
    %v1315 = vpack.c.b16 %v1051, %v1047
    %v1316 = vpack.c.b16 %v1052, %v1048
    %v1317 = vpack.c.b16 %v1057, %v1053
    %v1318 = vpack.c.b16 %v1058, %v1054
    %v1319 = vpack.c.b16 %v1059, %v1055
    %v1320 = vpack.c.b16 %v1060, %v1056
    %v1321 = vpack.c.b16 %v1065, %v1061
    %v1322 = vpack.c.b16 %v1066, %v1062
    %v1323 = vpack.c.b16 %v1067, %v1063
    %v1324 = vpack.c.b16 %v1068, %v1064
    %v1325 = vpack.c.b16 %v1073, %v1069
    %v1326 = vpack.c.b16 %v1074, %v1070
    %v1327 = vpack.c.b16 %v1075, %v1071
    %v1328 = vpack.c.b16 %v1076, %v1072
    %v1329 = vpack.c.b16 %v1081, %v1077
    %v1330 = vpack.c.b16 %v1082, %v1078
    %v1331 = vpack.c.b16 %v1083, %v1079
    %v1332 = vpack.c.b16 %v1084, %v1080
    %v1333 = vpack.c.b16 %v1089, %v1085
    %v1334 = vpack.c.b16 %v1090, %v1086
    %v1335 = vpack.c.b16 %v1091, %v1087
    %v1336 = vpack.c.b16 %v1092, %v1088
    %v1337 = vpack.c.b16 %v1097, %v1093
    %v1338 = vpack.c.b16 %v1098, %v1094
    %v1339 = vpack.c.b16 %v1099, %v1095
    %v1340 = vpack.c.b16 %v1100, %v1096
    %v1341 = vpack.c.b16 %v1105, %v1101
    %v1342 = vpack.c.b16 %v1106, %v1102
    %v1343 = vpack.c.b16 %v1107, %v1103
    %v1344 = vpack.c.b16 %v1108, %v1104
    %v1345 = vpack.c.b16 %v1113, %v1109
    %v1346 = vpack.c.b16 %v1114, %v1110
    %v1347 = vpack.c.b16 %v1115, %v1111
    %v1348 = vpack.c.b16 %v1116, %v1112
    %v1349 = vpack.c.b16 %v1121, %v1117
    %v1350 = vpack.c.b16 %v1122, %v1118
    %v1351 = vpack.c.b16 %v1123, %v1119
    %v1352 = vpack.c.b16 %v1124, %v1120
    %v1353 = vpack.c.b16 %v1129, %v1125
    %v1354 = vpack.c.b16 %v1130, %v1126
    %v1355 = vpack.c.b16 %v1131, %v1127
    %v1356 = vpack.c.b16 %v1132, %v1128
    %v1357 = vpack.c.b16 %v1137, %v1133
    %v1358 = vpack.c.b16 %v1138, %v1134
    %v1359 = vpack.c.b16 %v1139, %v1135
    %v1360 = vpack.c.b16 %v1140, %v1136
    %v1361 = vpack.c.b16 %v1145, %v1141
    %v1362 = vpack.c.b16 %v1146, %v1142
    %v1363 = vpack.c.b16 %v1147, %v1143
    %v1364 = vpack.c.b16 %v1148, %v1144
    %v1365 = vpack.c.b16 %v1153, %v1149
    %v1366 = vpack.c.b16 %v1154, %v1150
    %v1367 = vpack.c.b16 %v1155, %v1151
    %v1368 = vpack.c.b16 %v1156, %v1152
    %v1369 = vpack.c.b16 %v1161, %v1157
    %v1370 = vpack.c.b16 %v1162, %v1158
    %v1371 = vpack.c.b16 %v1163, %v1159
    %v1372 = vpack.c.b16 %v1164, %v1160
    %v1373 = vpack.c.b16 %v1169, %v1165
    %v1374 = vpack.c.b16 %v1170, %v1166
    %v1375 = vpack.c.b16 %v1171, %v1167
    %v1376 = vpack.c.b16 %v1172, %v1168
    %v1377 = vpack.c.b16 %v1177, %v1173
    %v1378 = vpack.c.b16 %v1178, %v1174
    %v1379 = vpack.c.b16 %v1179, %v1175
    %v1380 = vpack.c.b16 %v1180, %v1176
    %v1381 = vpack.c.b16 %v1185, %v1181
    %v1382 = vpack.c.b16 %v1186, %v1182
    %v1383 = vpack.c.b16 %v1187, %v1183
    %v1384 = vpack.c.b16 %v1188, %v1184
    %vm1581 = vcmask 130048
    %v1583 = vsel %vm1581, %v503, 0
    %v1586 = vsel %vm1581, %v510, 0
    %v1589 = vsel %vm1581, %v517, 0
    %v1592 = vsel %vm1581, %v524, 0
    %v1595 = vsel %vm1581, %v531, 0
    %v1598 = vsel %vm1581, %v538, 0
    %v1601 = vsel %vm1581, %v545, 0
    %v1604 = vsel %vm1581, %v552, 0
    %1606 = vmatprep.subr.bf16.mxu0 %v1190
    %1607 = vmatpush1.bf16.msra.mxu0 %v1189
    %1608 = vmatprep.subr.bf16.mxu0 %v1194
    %1609 = vmatpush1.bf16.msra.mxu0 %v1193
    %1610 = vmatprep.subr.bf16.mxu0 %v1198
    %1611 = vmatpush1.bf16.msra.mxu0 %v1197
    %1612 = vmatprep.subr.bf16.mxu0 %v1202
    %1613 = vmatpush1.bf16.msra.mxu0 %v1201
    %1614 = vmatprep.subr.bf16.mxu0 %v1206
    %1615 = vmatpush1.bf16.msra.mxu0 %v1205
    %1616 = vmatprep.subr.bf16.mxu0 %v1210
    %1617 = vmatpush1.bf16.msra.mxu0 %v1209
    %1618 = vmatprep.subr.bf16.mxu0 %v1214
    %1619 = vmatpush1.bf16.msra.mxu0 %v1213
    %1620 = vmatprep.subr.bf16.mxu0 %v1218
    %1621 = vmatpush1.bf16.msra.mxu0 %v1217
    %1622 = vmatprep.subr.bf16.mxu0 %v1222
    %1623 = vmatpush1.bf16.msra.mxu0 %v1221
    %1624 = vmatprep.subr.bf16.mxu0 %v1226
    %1625 = vmatpush1.bf16.msra.mxu0 %v1225
    %1626 = vmatprep.subr.bf16.mxu0 %v1230
    %1627 = vmatpush1.bf16.msra.mxu0 %v1229
    %1628 = vmatprep.subr.bf16.mxu0 %v1234
    %1629 = vmatpush1.bf16.msra.mxu0 %v1233
    %1630 = vmatprep.subr.bf16.mxu0 %v1238
    %1631 = vmatpush1.bf16.msra.mxu0 %v1237
    %1632 = vmatprep.subr.bf16.mxu0 %v1242
    %1633 = vmatpush1.bf16.msra.mxu0 %v1241
    %1634 = vmatprep.subr.bf16.mxu0 %v1246
    %1635 = vmatpush1.bf16.msra.mxu0 %v1245
    %1636 = vmatprep.subr.bf16.mxu0 %v1250
    %1637 = vmatpush1.bf16.msra.mxu0 %v1249
    %1638 = vmatprep.mubr.bf16.mxu0 %v498
    %1639 = vmatmul.mubr.bf16.gmra.mrb[0].mxu0 %v497
    %v1640 = vpop.f32.mrb[0].mxu0
    %v1641 = vadd.f32 %v304, %v1640
    %v1642 = vpop.f32.mrb[0].mxu0
    %v1643 = vadd.f32 %v308, %v1642
    %v1644 = vpop.f32.mrb[0].mxu0
    %v1645 = vadd.f32 %v304, %v1644
    %v1646 = vpop.f32.mrb[0].mxu0
    %v1647 = vadd.f32 %v308, %v1646
    %1648 = vmatprep.mubr.bf16.mxu0 %v505
    %1649 = vmatmul.mubr.bf16.gmra.mrb[0].mxu0 %v504
    %v1650 = vpop.f32.mrb[0].mxu0
    %v1651 = vadd.f32 %v304, %v1650
    %v1652 = vpop.f32.mrb[0].mxu0
    %v1653 = vadd.f32 %v308, %v1652
    %v1654 = vpop.f32.mrb[0].mxu0
    %v1655 = vadd.f32 %v304, %v1654
    %v1656 = vpop.f32.mrb[0].mxu0
    %v1657 = vadd.f32 %v308, %v1656
    %1658 = vmatprep.mubr.bf16.mxu0 %v512
    %1659 = vmatmul.mubr.bf16.gmra.mrb[0].mxu0 %v511
    %v1660 = vpop.f32.mrb[0].mxu0
    %v1661 = vadd.f32 %v304, %v1660
    %v1662 = vpop.f32.mrb[0].mxu0
    %v1663 = vadd.f32 %v308, %v1662
    %v1664 = vpop.f32.mrb[0].mxu0
    %v1665 = vadd.f32 %v304, %v1664
    %v1666 = vpop.f32.mrb[0].mxu0
    %v1667 = vadd.f32 %v308, %v1666
    %1668 = vmatprep.mubr.bf16.mxu0 %v519
    %1669 = vmatmul.mubr.bf16.gmra.mrb[0].mxu0 %v518
    %v1670 = vpop.f32.mrb[0].mxu0
    %v1671 = vadd.f32 %v304, %v1670
    %v1672 = vpop.f32.mrb[0].mxu0
    %v1673 = vadd.f32 %v308, %v1672
    %v1674 = vpop.f32.mrb[0].mxu0
    %v1675 = vadd.f32 %v304, %v1674
    %v1676 = vpop.f32.mrb[0].mxu0
    %v1677 = vadd.f32 %v308, %v1676
    %1678 = vmatprep.mubr.bf16.mxu0 %v526
    %1679 = vmatmul.mubr.bf16.gmra.mrb[0].mxu0 %v525
    %v1680 = vpop.f32.mrb[0].mxu0
    %v1681 = vadd.f32 %v304, %v1680
    %v1682 = vpop.f32.mrb[0].mxu0
    %v1683 = vadd.f32 %v308, %v1682
    %v1684 = vpop.f32.mrb[0].mxu0
    %v1685 = vadd.f32 %v304, %v1684
    %v1686 = vpop.f32.mrb[0].mxu0
    %v1687 = vadd.f32 %v308, %v1686
    %1688 = vmatprep.mubr.bf16.mxu0 %v533
    %1689 = vmatmul.mubr.bf16.gmra.mrb[0].mxu0 %v532
    %v1690 = vpop.f32.mrb[0].mxu0
    %v1691 = vadd.f32 %v304, %v1690
    %v1692 = vpop.f32.mrb[0].mxu0
    %v1693 = vadd.f32 %v308, %v1692
    %v1694 = vpop.f32.mrb[0].mxu0
    %v1695 = vadd.f32 %v304, %v1694
    %v1696 = vpop.f32.mrb[0].mxu0
    %v1697 = vadd.f32 %v308, %v1696
    %1698 = vmatprep.mubr.bf16.mxu0 %v540
    %1699 = vmatmul.mubr.bf16.gmra.mrb[0].mxu0 %v539
    %v1700 = vpop.f32.mrb[0].mxu0
    %v1701 = vadd.f32 %v304, %v1700
    %v1702 = vpop.f32.mrb[0].mxu0
    %v1703 = vadd.f32 %v308, %v1702
    %v1704 = vpop.f32.mrb[0].mxu0
    %v1705 = vadd.f32 %v304, %v1704
    %v1706 = vpop.f32.mrb[0].mxu0
    %v1707 = vadd.f32 %v308, %v1706
    %1708 = vmatprep.mubr.bf16.mxu0 %v547
    %1709 = vmatmul.mubr.bf16.gmra.mrb[0].mxu0 %v546
    %v1710 = vpop.f32.mrb[0].mxu0
    %v1711 = vadd.f32 %v304, %v1710
    %v1712 = vpop.f32.mrb[0].mxu0
    %v1713 = vadd.f32 %v308, %v1712
    %v1714 = vpop.f32.mrb[0].mxu0
    %v1715 = vadd.f32 %v304, %v1714
    %v1716 = vpop.f32.mrb[0].mxu0
    %v1717 = vadd.f32 %v308, %v1716
    %1718 = vdwg.mxu0
    %1719 = vmatprep.subr.bf16.mxu0 %v1254
    %1720 = vmatpush1.bf16.msra.mxu0 %v1253
    %1721 = vmatprep.subr.bf16.mxu0 %v1258
    %1722 = vmatpush1.bf16.msra.mxu0 %v1257
    %1723 = vmatprep.subr.bf16.mxu0 %v1262
    %1724 = vmatpush1.bf16.msra.mxu0 %v1261
    %1725 = vmatprep.subr.bf16.mxu0 %v1266
    %1726 = vmatpush1.bf16.msra.mxu0 %v1265
    %1727 = vmatprep.subr.bf16.mxu0 %v1270
    %1728 = vmatpush1.bf16.msra.mxu0 %v1269
    %1729 = vmatprep.subr.bf16.mxu0 %v1274
    %1730 = vmatpush1.bf16.msra.mxu0 %v1273
    %1731 = vmatprep.subr.bf16.mxu0 %v1278
    %1732 = vmatpush1.bf16.msra.mxu0 %v1277
    %1733 = vmatprep.subr.bf16.mxu0 %v1282
    %1734 = vmatpush1.bf16.msra.mxu0 %v1281
    %1735 = vmatprep.subr.bf16.mxu0 %v1286
    %1736 = vmatpush1.bf16.msra.mxu0 %v1285
    %1737 = vmatprep.subr.bf16.mxu0 %v1290
    %1738 = vmatpush1.bf16.msra.mxu0 %v1289
    %1739 = vmatprep.subr.bf16.mxu0 %v1294
    %1740 = vmatpush1.bf16.msra.mxu0 %v1293
    %1741 = vmatprep.subr.bf16.mxu0 %v1298
    %1742 = vmatpush1.bf16.msra.mxu0 %v1297
    %1743 = vmatprep.subr.bf16.mxu0 %v1302
    %1744 = vmatpush1.bf16.msra.mxu0 %v1301
    %1745 = vmatprep.subr.bf16.mxu0 %v1306
    %1746 = vmatpush1.bf16.msra.mxu0 %v1305
    %1747 = vmatprep.subr.bf16.mxu0 %v1310
    %1748 = vmatpush1.bf16.msra.mxu0 %v1309
    %1749 = vmatprep.subr.bf16.mxu0 %v1314
    %1750 = vmatpush1.bf16.msra.mxu0 %v1313
    %1751 = vmatprep.mubr.bf16.mxu0 %v500
    %1752 = vmatmul.mubr.bf16.gmra.mrb[0].mxu0 %v499
    %v1753 = vpop.f32.mrb[0].mxu0
    %v1754 = vadd.f32 %v1641, %v1753
    %v1755 = vpop.f32.mrb[0].mxu0
    %v1756 = vadd.f32 %v1643, %v1755
    %v1757 = vpop.f32.mrb[0].mxu0
    %v1758 = vadd.f32 %v1645, %v1757
    %v1759 = vpop.f32.mrb[0].mxu0
    %v1760 = vadd.f32 %v1647, %v1759
    %1761 = vmatprep.mubr.bf16.mxu0 %v507
    %1762 = vmatmul.mubr.bf16.gmra.mrb[0].mxu0 %v506
    %v1763 = vpop.f32.mrb[0].mxu0
    %v1764 = vadd.f32 %v1651, %v1763
    %v1765 = vpop.f32.mrb[0].mxu0
    %v1766 = vadd.f32 %v1653, %v1765
    %v1767 = vpop.f32.mrb[0].mxu0
    %v1768 = vadd.f32 %v1655, %v1767
    %v1769 = vpop.f32.mrb[0].mxu0
    %v1770 = vadd.f32 %v1657, %v1769
    %1771 = vmatprep.mubr.bf16.mxu0 %v514
    %1772 = vmatmul.mubr.bf16.gmra.mrb[0].mxu0 %v513
    %v1773 = vpop.f32.mrb[0].mxu0
    %v1774 = vadd.f32 %v1661, %v1773
    %v1775 = vpop.f32.mrb[0].mxu0
    %v1776 = vadd.f32 %v1663, %v1775
    %v1777 = vpop.f32.mrb[0].mxu0
    %v1778 = vadd.f32 %v1665, %v1777
    %v1779 = vpop.f32.mrb[0].mxu0
    %v1780 = vadd.f32 %v1667, %v1779
    %1781 = vmatprep.mubr.bf16.mxu0 %v521
    %1782 = vmatmul.mubr.bf16.gmra.mrb[0].mxu0 %v520
    %v1783 = vpop.f32.mrb[0].mxu0
    %v1784 = vadd.f32 %v1671, %v1783
    %v1785 = vpop.f32.mrb[0].mxu0
    %v1786 = vadd.f32 %v1673, %v1785
    %v1787 = vpop.f32.mrb[0].mxu0
    %v1788 = vadd.f32 %v1675, %v1787
    %v1789 = vpop.f32.mrb[0].mxu0
    %v1790 = vadd.f32 %v1677, %v1789
    %1791 = vmatprep.mubr.bf16.mxu0 %v528
    %1792 = vmatmul.mubr.bf16.gmra.mrb[0].mxu0 %v527
    %v1793 = vpop.f32.mrb[0].mxu0
    %v1794 = vadd.f32 %v1681, %v1793
    %v1795 = vpop.f32.mrb[0].mxu0
    %v1796 = vadd.f32 %v1683, %v1795
    %v1797 = vpop.f32.mrb[0].mxu0
    %v1798 = vadd.f32 %v1685, %v1797
    %v1799 = vpop.f32.mrb[0].mxu0
    %v1800 = vadd.f32 %v1687, %v1799
    %1801 = vmatprep.mubr.bf16.mxu0 %v535
    %1802 = vmatmul.mubr.bf16.gmra.mrb[0].mxu0 %v534
    %v1803 = vpop.f32.mrb[0].mxu0
    %v1804 = vadd.f32 %v1691, %v1803
    %v1805 = vpop.f32.mrb[0].mxu0
    %v1806 = vadd.f32 %v1693, %v1805
    %v1807 = vpop.f32.mrb[0].mxu0
    %v1808 = vadd.f32 %v1695, %v1807
    %v1809 = vpop.f32.mrb[0].mxu0
    %v1810 = vadd.f32 %v1697, %v1809
    %1811 = vmatprep.mubr.bf16.mxu0 %v542
    %1812 = vmatmul.mubr.bf16.gmra.mrb[0].mxu0 %v541
    %v1813 = vpop.f32.mrb[0].mxu0
    %v1814 = vadd.f32 %v1701, %v1813
    %v1815 = vpop.f32.mrb[0].mxu0
    %v1816 = vadd.f32 %v1703, %v1815
    %v1817 = vpop.f32.mrb[0].mxu0
    %v1818 = vadd.f32 %v1705, %v1817
    %v1819 = vpop.f32.mrb[0].mxu0
    %v1820 = vadd.f32 %v1707, %v1819
    %1821 = vmatprep.mubr.bf16.mxu0 %v549
    %1822 = vmatmul.mubr.bf16.gmra.mrb[0].mxu0 %v548
    %v1823 = vpop.f32.mrb[0].mxu0
    %v1824 = vadd.f32 %v1711, %v1823
    %v1825 = vpop.f32.mrb[0].mxu0
    %v1826 = vadd.f32 %v1713, %v1825
    %v1827 = vpop.f32.mrb[0].mxu0
    %v1828 = vadd.f32 %v1715, %v1827
    %v1829 = vpop.f32.mrb[0].mxu0
    %v1830 = vadd.f32 %v1717, %v1829
    %1831 = vdwg.mxu0
    %1832 = vmatprep.subr.bf16.mxu0 %v1318
    %1833 = vmatpush1.bf16.msra.mxu0 %v1317
    %1834 = vmatprep.subr.bf16.mxu0 %v1322
    %1835 = vmatpush1.bf16.msra.mxu0 %v1321
    %1836 = vmatprep.subr.bf16.mxu0 %v1326
    %1837 = vmatpush1.bf16.msra.mxu0 %v1325
    %1838 = vmatprep.subr.bf16.mxu0 %v1330
    %1839 = vmatpush1.bf16.msra.mxu0 %v1329
    %1840 = vmatprep.subr.bf16.mxu0 %v1334
    %1841 = vmatpush1.bf16.msra.mxu0 %v1333
    %1842 = vmatprep.subr.bf16.mxu0 %v1338
    %1843 = vmatpush1.bf16.msra.mxu0 %v1337
    %1844 = vmatprep.subr.bf16.mxu0 %v1342
    %1845 = vmatpush1.bf16.msra.mxu0 %v1341
    %1846 = vmatprep.subr.bf16.mxu0 %v1346
    %1847 = vmatpush1.bf16.msra.mxu0 %v1345
    %1848 = vmatprep.subr.bf16.mxu0 %v1350
    %1849 = vmatpush1.bf16.msra.mxu0 %v1349
    %1850 = vmatprep.subr.bf16.mxu0 %v1354
    %1851 = vmatpush1.bf16.msra.mxu0 %v1353
    %1852 = vmatprep.subr.bf16.mxu0 %v1358
    %1853 = vmatpush1.bf16.msra.mxu0 %v1357
    %1854 = vmatprep.subr.bf16.mxu0 %v1362
    %1855 = vmatpush1.bf16.msra.mxu0 %v1361
    %1856 = vmatprep.subr.bf16.mxu0 %v1366
    %1857 = vmatpush1.bf16.msra.mxu0 %v1365
    %1858 = vmatprep.subr.bf16.mxu0 %v1370
    %1859 = vmatpush1.bf16.msra.mxu0 %v1369
    %1860 = vmatprep.subr.bf16.mxu0 %v1374
    %1861 = vmatpush1.bf16.msra.mxu0 %v1373
    %1862 = vmatprep.subr.bf16.mxu0 %v1378
    %1863 = vmatpush1.bf16.msra.mxu0 %v1377
    %1864 = vmatprep.mubr.bf16.mxu0 %v502
    %1865 = vmatmul.mubr.bf16.gmra.mrb[0].mxu0 %v501
    %v1866 = vpop.f32.mrb[0].mxu0
    %v1867 = vadd.f32 %v1754, %v1866
    %v1868 = vpop.f32.mrb[0].mxu0
    %v1869 = vadd.f32 %v1756, %v1868
    %v1870 = vpop.f32.mrb[0].mxu0
    %v1871 = vadd.f32 %v1758, %v1870
    %v1872 = vpop.f32.mrb[0].mxu0
    %v1873 = vadd.f32 %v1760, %v1872
    %1874 = vmatprep.mubr.bf16.mxu0 %v509
    %1875 = vmatmul.mubr.bf16.gmra.mrb[0].mxu0 %v508
    %v1876 = vpop.f32.mrb[0].mxu0
    %v1877 = vadd.f32 %v1764, %v1876
    %v1878 = vpop.f32.mrb[0].mxu0
    %v1879 = vadd.f32 %v1766, %v1878
    %v1880 = vpop.f32.mrb[0].mxu0
    %v1881 = vadd.f32 %v1768, %v1880
    %v1882 = vpop.f32.mrb[0].mxu0
    %v1883 = vadd.f32 %v1770, %v1882
    %1884 = vmatprep.mubr.bf16.mxu0 %v516
    %1885 = vmatmul.mubr.bf16.gmra.mrb[0].mxu0 %v515
    %v1886 = vpop.f32.mrb[0].mxu0
    %v1887 = vadd.f32 %v1774, %v1886
    %v1888 = vpop.f32.mrb[0].mxu0
    %v1889 = vadd.f32 %v1776, %v1888
    %v1890 = vpop.f32.mrb[0].mxu0
    %v1891 = vadd.f32 %v1778, %v1890
    %v1892 = vpop.f32.mrb[0].mxu0
    %v1893 = vadd.f32 %v1780, %v1892
    %1894 = vmatprep.mubr.bf16.mxu0 %v523
    %1895 = vmatmul.mubr.bf16.gmra.mrb[0].mxu0 %v522
    %v1896 = vpop.f32.mrb[0].mxu0
    %v1897 = vadd.f32 %v1784, %v1896
    %v1898 = vpop.f32.mrb[0].mxu0
    %v1899 = vadd.f32 %v1786, %v1898
    %v1900 = vpop.f32.mrb[0].mxu0
    %v1901 = vadd.f32 %v1788, %v1900
    %v1902 = vpop.f32.mrb[0].mxu0
    %v1903 = vadd.f32 %v1790, %v1902
    %1904 = vmatprep.mubr.bf16.mxu0 %v530
    %1905 = vmatmul.mubr.bf16.gmra.mrb[0].mxu0 %v529
    %v1906 = vpop.f32.mrb[0].mxu0
    %v1907 = vadd.f32 %v1794, %v1906
    %v1908 = vpop.f32.mrb[0].mxu0
    %v1909 = vadd.f32 %v1796, %v1908
    %v1910 = vpop.f32.mrb[0].mxu0
    %v1911 = vadd.f32 %v1798, %v1910
    %v1912 = vpop.f32.mrb[0].mxu0
    %v1913 = vadd.f32 %v1800, %v1912
    %1914 = vmatprep.mubr.bf16.mxu0 %v537
    %1915 = vmatmul.mubr.bf16.gmra.mrb[0].mxu0 %v536
    %v1916 = vpop.f32.mrb[0].mxu0
    %v1917 = vadd.f32 %v1804, %v1916
    %v1918 = vpop.f32.mrb[0].mxu0
    %v1919 = vadd.f32 %v1806, %v1918
    %v1920 = vpop.f32.mrb[0].mxu0
    %v1921 = vadd.f32 %v1808, %v1920
    %v1922 = vpop.f32.mrb[0].mxu0
    %v1923 = vadd.f32 %v1810, %v1922
    %1924 = vmatprep.mubr.bf16.mxu0 %v544
    %1925 = vmatmul.mubr.bf16.gmra.mrb[0].mxu0 %v543
    %v1926 = vpop.f32.mrb[0].mxu0
    %v1927 = vadd.f32 %v1814, %v1926
    %v1928 = vpop.f32.mrb[0].mxu0
    %v1929 = vadd.f32 %v1816, %v1928
    %v1930 = vpop.f32.mrb[0].mxu0
    %v1931 = vadd.f32 %v1818, %v1930
    %v1932 = vpop.f32.mrb[0].mxu0
    %v1933 = vadd.f32 %v1820, %v1932
    %1934 = vmatprep.mubr.bf16.mxu0 %v551
    %1935 = vmatmul.mubr.bf16.gmra.mrb[0].mxu0 %v550
    %v1936 = vpop.f32.mrb[0].mxu0
    %v1937 = vadd.f32 %v1824, %v1936
    %v1938 = vpop.f32.mrb[0].mxu0
    %v1939 = vadd.f32 %v1826, %v1938
    %v1940 = vpop.f32.mrb[0].mxu0
    %v1941 = vadd.f32 %v1828, %v1940
    %v1942 = vpop.f32.mrb[0].mxu0
    %v1943 = vadd.f32 %v1830, %v1942
    %1944 = vdwg.mxu0
    %1945 = vmatprep.subr.bf16.mxu0 %v1382
    %1946 = vmatpush1.bf16.msra.mxu0 %v1381
    %1947 = vmatprep.subr.bf16.mxu0 0
    %1948 = vmatpush1.bf16.msra.mxu0 0
    %1949 = vmatprep.subr.bf16.mxu0 0
    %1950 = vmatpush1.bf16.msra.mxu0 0
    %1951 = vmatprep.subr.bf16.mxu0 0
    %1952 = vmatpush1.bf16.msra.mxu0 0
    %1953 = vmatprep.subr.bf16.mxu0 0
    %1954 = vmatpush1.bf16.msra.mxu0 0
    %1955 = vmatprep.subr.bf16.mxu0 0
    %1956 = vmatpush1.bf16.msra.mxu0 0
    %1957 = vmatprep.subr.bf16.mxu0 0
    %1958 = vmatpush1.bf16.msra.mxu0 0
    %1959 = vmatprep.subr.bf16.mxu0 0
    %1960 = vmatpush1.bf16.msra.mxu0 0
    %1961 = vmatprep.subr.bf16.mxu0 0
    %1962 = vmatpush1.bf16.msra.mxu0 0
    %1963 = vmatprep.subr.bf16.mxu0 0
    %1964 = vmatpush1.bf16.msra.mxu0 0
    %1965 = vmatprep.subr.bf16.mxu0 0
    %1966 = vmatpush1.bf16.msra.mxu0 0
    %1967 = vmatprep.subr.bf16.mxu0 0
    %1968 = vmatpush1.bf16.msra.mxu0 0
    %1969 = vmatprep.subr.bf16.mxu0 0
    %1970 = vmatpush1.bf16.msra.mxu0 0
    %1971 = vmatprep.subr.bf16.mxu0 0
    %1972 = vmatpush1.bf16.msra.mxu0 0
    %1973 = vmatprep.subr.bf16.mxu0 0
    %1974 = vmatpush1.bf16.msra.mxu0 0
    %1975 = vmatprep.subr.bf16.mxu0 0
    %1976 = vmatpush1.bf16.msra.mxu0 0
    %1977 = vmatprep.mubr.bf16.mxu0 0
    %1978 = vmatmul.mubr.bf16.gmra.mrb[0].mxu0 %v1583
    %v1979 = vpop.f32.mrb[0].mxu0
    %v1980 = vadd.f32 %v1867, %v1979
    %v1981 = vpop.f32.mrb[0].mxu0
    %v1982 = vadd.f32 %v1869, %v1981
    %v1983 = vpop.f32.mrb[0].mxu0
    %v1984 = vadd.f32 %v1871, %v1983
    %v1985 = vpop.f32.mrb[0].mxu0
    %v1986 = vadd.f32 %v1873, %v1985
    %1987 = vmatprep.mubr.bf16.mxu0 0
    %1988 = vmatmul.mubr.bf16.gmra.mrb[0].mxu0 %v1586
    %v1989 = vpop.f32.mrb[0].mxu0
    %v1990 = vadd.f32 %v1877, %v1989
    %v1991 = vpop.f32.mrb[0].mxu0
    %v1992 = vadd.f32 %v1879, %v1991
    %v1993 = vpop.f32.mrb[0].mxu0
    %v1994 = vadd.f32 %v1881, %v1993
    %v1995 = vpop.f32.mrb[0].mxu0
    %v1996 = vadd.f32 %v1883, %v1995
    %1997 = vmatprep.mubr.bf16.mxu0 0
    %1998 = vmatmul.mubr.bf16.gmra.mrb[0].mxu0 %v1589
    %v1999 = vpop.f32.mrb[0].mxu0
    %v2000 = vadd.f32 %v1887, %v1999
    %v2001 = vpop.f32.mrb[0].mxu0
    %v2002 = vadd.f32 %v1889, %v2001
    %v2003 = vpop.f32.mrb[0].mxu0
    %v2004 = vadd.f32 %v1891, %v2003
    %v2005 = vpop.f32.mrb[0].mxu0
    %v2006 = vadd.f32 %v1893, %v2005
    %2007 = vmatprep.mubr.bf16.mxu0 0
    %2008 = vmatmul.mubr.bf16.gmra.mrb[0].mxu0 %v1592
    %v2009 = vpop.f32.mrb[0].mxu0
    %v2010 = vadd.f32 %v1897, %v2009
    %v2011 = vpop.f32.mrb[0].mxu0
    %v2012 = vadd.f32 %v1899, %v2011
    %v2013 = vpop.f32.mrb[0].mxu0
    %v2014 = vadd.f32 %v1901, %v2013
    %v2015 = vpop.f32.mrb[0].mxu0
    %v2016 = vadd.f32 %v1903, %v2015
    %2017 = vmatprep.mubr.bf16.mxu0 0
    %2018 = vmatmul.mubr.bf16.gmra.mrb[0].mxu0 %v1595
    %v2019 = vpop.f32.mrb[0].mxu0
    %v2020 = vadd.f32 %v1907, %v2019
    %v2021 = vpop.f32.mrb[0].mxu0
    %v2022 = vadd.f32 %v1909, %v2021
    %v2023 = vpop.f32.mrb[0].mxu0
    %v2024 = vadd.f32 %v1911, %v2023
    %v2025 = vpop.f32.mrb[0].mxu0
    %v2026 = vadd.f32 %v1913, %v2025
    %2027 = vmatprep.mubr.bf16.mxu0 0
    %2028 = vmatmul.mubr.bf16.gmra.mrb[0].mxu0 %v1598
    %v2029 = vpop.f32.mrb[0].mxu0
    %v2030 = vadd.f32 %v1917, %v2029
    %v2031 = vpop.f32.mrb[0].mxu0
    %v2032 = vadd.f32 %v1919, %v2031
    %v2033 = vpop.f32.mrb[0].mxu0
    %v2034 = vadd.f32 %v1921, %v2033
    %v2035 = vpop.f32.mrb[0].mxu0
    %v2036 = vadd.f32 %v1923, %v2035
    %2037 = vmatprep.mubr.bf16.mxu0 0
    %2038 = vmatmul.mubr.bf16.gmra.mrb[0].mxu0 %v1601
    %v2039 = vpop.f32.mrb[0].mxu0
    %v2040 = vadd.f32 %v1927, %v2039
    %v2041 = vpop.f32.mrb[0].mxu0
    %v2042 = vadd.f32 %v1929, %v2041
    %v2043 = vpop.f32.mrb[0].mxu0
    %v2044 = vadd.f32 %v1931, %v2043
    %v2045 = vpop.f32.mrb[0].mxu0
    %v2046 = vadd.f32 %v1933, %v2045
    %2047 = vmatprep.mubr.bf16.mxu0 0
    %2048 = vmatmul.mubr.bf16.gmra.mrb[0].mxu0 %v1604
    %v2049 = vpop.f32.mrb[0].mxu0
    %v2050 = vadd.f32 %v1937, %v2049
    %v2051 = vpop.f32.mrb[0].mxu0
    %v2052 = vadd.f32 %v1939, %v2051
    %v2053 = vpop.f32.mrb[0].mxu0
    %v2054 = vadd.f32 %v1941, %v2053
    %v2055 = vpop.f32.mrb[0].mxu0
    %v2056 = vadd.f32 %v1943, %v2055
    %2057 = vdwg.mxu0
    %2058 = vmatprep.subr.bf16.mxu0 %v1192
    %2059 = vmatpush1.bf16.msra.mxu0 %v1191
    %2060 = vmatprep.subr.bf16.mxu0 %v1196
    %2061 = vmatpush1.bf16.msra.mxu0 %v1195
    %2062 = vmatprep.subr.bf16.mxu0 %v1200
    %2063 = vmatpush1.bf16.msra.mxu0 %v1199
    %2064 = vmatprep.subr.bf16.mxu0 %v1204
    %2065 = vmatpush1.bf16.msra.mxu0 %v1203
    %2066 = vmatprep.subr.bf16.mxu0 %v1208
    %2067 = vmatpush1.bf16.msra.mxu0 %v1207
    %2068 = vmatprep.subr.bf16.mxu0 %v1212
    %2069 = vmatpush1.bf16.msra.mxu0 %v1211
    %2070 = vmatprep.subr.bf16.mxu0 %v1216
    %2071 = vmatpush1.bf16.msra.mxu0 %v1215
    %2072 = vmatprep.subr.bf16.mxu0 %v1220
    %2073 = vmatpush1.bf16.msra.mxu0 %v1219
    %2074 = vmatprep.subr.bf16.mxu0 %v1224
    %2075 = vmatpush1.bf16.msra.mxu0 %v1223
    %2076 = vmatprep.subr.bf16.mxu0 %v1228
    %2077 = vmatpush1.bf16.msra.mxu0 %v1227
    %2078 = vmatprep.subr.bf16.mxu0 %v1232
    %2079 = vmatpush1.bf16.msra.mxu0 %v1231
    %2080 = vmatprep.subr.bf16.mxu0 %v1236
    %2081 = vmatpush1.bf16.msra.mxu0 %v1235
    %2082 = vmatprep.subr.bf16.mxu0 %v1240
    %2083 = vmatpush1.bf16.msra.mxu0 %v1239
    %2084 = vmatprep.subr.bf16.mxu0 %v1244
    %2085 = vmatpush1.bf16.msra.mxu0 %v1243
    %2086 = vmatprep.subr.bf16.mxu0 %v1248
    %2087 = vmatpush1.bf16.msra.mxu0 %v1247
    %2088 = vmatprep.subr.bf16.mxu0 %v1252
    %2089 = vmatpush1.bf16.msra.mxu0 %v1251
    %2090 = vmatprep.mubr.bf16.mxu0 %v498
    %2091 = vmatmul.mubr.bf16.gmra.mrb[0].mxu0 %v497
    %v2092 = vpop.f32.mrb[0].mxu0
    %v2093 = vadd.f32 %v312, %v2092
    %v2094 = vpop.f32.mrb[0].mxu0
    %v2095 = vadd.f32 %v316, %v2094
    %v2096 = vpop.f32.mrb[0].mxu0
    %v2097 = vadd.f32 %v312, %v2096
    %v2098 = vpop.f32.mrb[0].mxu0
    %v2099 = vadd.f32 %v316, %v2098
    %2100 = vmatprep.mubr.bf16.mxu0 %v505
    %2101 = vmatmul.mubr.bf16.gmra.mrb[0].mxu0 %v504
    %v2102 = vpop.f32.mrb[0].mxu0
    %v2103 = vadd.f32 %v312, %v2102
    %v2104 = vpop.f32.mrb[0].mxu0
    %v2105 = vadd.f32 %v316, %v2104
    %v2106 = vpop.f32.mrb[0].mxu0
    %v2107 = vadd.f32 %v312, %v2106
    %v2108 = vpop.f32.mrb[0].mxu0
    %v2109 = vadd.f32 %v316, %v2108
    %2110 = vmatprep.mubr.bf16.mxu0 %v512
    %2111 = vmatmul.mubr.bf16.gmra.mrb[0].mxu0 %v511
    %v2112 = vpop.f32.mrb[0].mxu0
    %v2113 = vadd.f32 %v312, %v2112
    %v2114 = vpop.f32.mrb[0].mxu0
    %v2115 = vadd.f32 %v316, %v2114
    %v2116 = vpop.f32.mrb[0].mxu0
    %v2117 = vadd.f32 %v312, %v2116
    %v2118 = vpop.f32.mrb[0].mxu0
    %v2119 = vadd.f32 %v316, %v2118
    %2120 = vmatprep.mubr.bf16.mxu0 %v519
    %2121 = vmatmul.mubr.bf16.gmra.mrb[0].mxu0 %v518
    %v2122 = vpop.f32.mrb[0].mxu0
    %v2123 = vadd.f32 %v312, %v2122
    %v2124 = vpop.f32.mrb[0].mxu0
    %v2125 = vadd.f32 %v316, %v2124
    %v2126 = vpop.f32.mrb[0].mxu0
    %v2127 = vadd.f32 %v312, %v2126
    %v2128 = vpop.f32.mrb[0].mxu0
    %v2129 = vadd.f32 %v316, %v2128
    %2130 = vmatprep.mubr.bf16.mxu0 %v526
    %2131 = vmatmul.mubr.bf16.gmra.mrb[0].mxu0 %v525
    %v2132 = vpop.f32.mrb[0].mxu0
    %v2133 = vadd.f32 %v312, %v2132
    %v2134 = vpop.f32.mrb[0].mxu0
    %v2135 = vadd.f32 %v316, %v2134
    %v2136 = vpop.f32.mrb[0].mxu0
    %v2137 = vadd.f32 %v312, %v2136
    %v2138 = vpop.f32.mrb[0].mxu0
    %v2139 = vadd.f32 %v316, %v2138
    %2140 = vmatprep.mubr.bf16.mxu0 %v533
    %2141 = vmatmul.mubr.bf16.gmra.mrb[0].mxu0 %v532
    %v2142 = vpop.f32.mrb[0].mxu0
    %v2143 = vadd.f32 %v312, %v2142
    %v2144 = vpop.f32.mrb[0].mxu0
    %v2145 = vadd.f32 %v316, %v2144
    %v2146 = vpop.f32.mrb[0].mxu0
    %v2147 = vadd.f32 %v312, %v2146
    %v2148 = vpop.f32.mrb[0].mxu0
    %v2149 = vadd.f32 %v316, %v2148
    %2150 = vmatprep.mubr.bf16.mxu0 %v540
    %2151 = vmatmul.mubr.bf16.gmra.mrb[0].mxu0 %v539
    %v2152 = vpop.f32.mrb[0].mxu0
    %v2153 = vadd.f32 %v312, %v2152
    %v2154 = vpop.f32.mrb[0].mxu0
    %v2155 = vadd.f32 %v316, %v2154
    %v2156 = vpop.f32.mrb[0].mxu0
    %v2157 = vadd.f32 %v312, %v2156
    %v2158 = vpop.f32.mrb[0].mxu0
    %v2159 = vadd.f32 %v316, %v2158
    %2160 = vmatprep.mubr.bf16.mxu0 %v547
    %2161 = vmatmul.mubr.bf16.gmra.mrb[0].mxu0 %v546
    %v2162 = vpop.f32.mrb[0].mxu0
    %v2163 = vadd.f32 %v312, %v2162
    %v2164 = vpop.f32.mrb[0].mxu0
    %v2165 = vadd.f32 %v316, %v2164
    %v2166 = vpop.f32.mrb[0].mxu0
    %v2167 = vadd.f32 %v312, %v2166
    %v2168 = vpop.f32.mrb[0].mxu0
    %v2169 = vadd.f32 %v316, %v2168
    %2170 = vdwg.mxu0
    %2171 = vmatprep.subr.bf16.mxu0 %v1256
    %2172 = vmatpush1.bf16.msra.mxu0 %v1255
    %2173 = vmatprep.subr.bf16.mxu0 %v1260
    %2174 = vmatpush1.bf16.msra.mxu0 %v1259
    %2175 = vmatprep.subr.bf16.mxu0 %v1264
    %2176 = vmatpush1.bf16.msra.mxu0 %v1263
    %2177 = vmatprep.subr.bf16.mxu0 %v1268
    %2178 = vmatpush1.bf16.msra.mxu0 %v1267
    %2179 = vmatprep.subr.bf16.mxu0 %v1272
    %2180 = vmatpush1.bf16.msra.mxu0 %v1271
    %2181 = vmatprep.subr.bf16.mxu0 %v1276
    %2182 = vmatpush1.bf16.msra.mxu0 %v1275
    %2183 = vmatprep.subr.bf16.mxu0 %v1280
    %2184 = vmatpush1.bf16.msra.mxu0 %v1279
    %2185 = vmatprep.subr.bf16.mxu0 %v1284
    %2186 = vmatpush1.bf16.msra.mxu0 %v1283
    %2187 = vmatprep.subr.bf16.mxu0 %v1288
    %2188 = vmatpush1.bf16.msra.mxu0 %v1287
    %2189 = vmatprep.subr.bf16.mxu0 %v1292
    %2190 = vmatpush1.bf16.msra.mxu0 %v1291
    %2191 = vmatprep.subr.bf16.mxu0 %v1296
    %2192 = vmatpush1.bf16.msra.mxu0 %v1295
    %2193 = vmatprep.subr.bf16.mxu0 %v1300
    %2194 = vmatpush1.bf16.msra.mxu0 %v1299
    %2195 = vmatprep.subr.bf16.mxu0 %v1304
    %2196 = vmatpush1.bf16.msra.mxu0 %v1303
    %2197 = vmatprep.subr.bf16.mxu0 %v1308
    %2198 = vmatpush1.bf16.msra.mxu0 %v1307
    %2199 = vmatprep.subr.bf16.mxu0 %v1312
    %2200 = vmatpush1.bf16.msra.mxu0 %v1311
    %2201 = vmatprep.subr.bf16.mxu0 %v1316
    %2202 = vmatpush1.bf16.msra.mxu0 %v1315
    %2203 = vmatprep.mubr.bf16.mxu0 %v500
    %2204 = vmatmul.mubr.bf16.gmra.mrb[0].mxu0 %v499
    %v2205 = vpop.f32.mrb[0].mxu0
    %v2206 = vadd.f32 %v2093, %v2205
    %v2207 = vpop.f32.mrb[0].mxu0
    %v2208 = vadd.f32 %v2095, %v2207
    %v2209 = vpop.f32.mrb[0].mxu0
    %v2210 = vadd.f32 %v2097, %v2209
    %v2211 = vpop.f32.mrb[0].mxu0
    %v2212 = vadd.f32 %v2099, %v2211
    %2213 = vmatprep.mubr.bf16.mxu0 %v507
    %2214 = vmatmul.mubr.bf16.gmra.mrb[0].mxu0 %v506
    %v2215 = vpop.f32.mrb[0].mxu0
    %v2216 = vadd.f32 %v2103, %v2215
    %v2217 = vpop.f32.mrb[0].mxu0
    %v2218 = vadd.f32 %v2105, %v2217
    %v2219 = vpop.f32.mrb[0].mxu0
    %v2220 = vadd.f32 %v2107, %v2219
    %v2221 = vpop.f32.mrb[0].mxu0
    %v2222 = vadd.f32 %v2109, %v2221
    %2223 = vmatprep.mubr.bf16.mxu0 %v514
    %2224 = vmatmul.mubr.bf16.gmra.mrb[0].mxu0 %v513
    %v2225 = vpop.f32.mrb[0].mxu0
    %v2226 = vadd.f32 %v2113, %v2225
    %v2227 = vpop.f32.mrb[0].mxu0
    %v2228 = vadd.f32 %v2115, %v2227
    %v2229 = vpop.f32.mrb[0].mxu0
    %v2230 = vadd.f32 %v2117, %v2229
    %v2231 = vpop.f32.mrb[0].mxu0
    %v2232 = vadd.f32 %v2119, %v2231
    %2233 = vmatprep.mubr.bf16.mxu0 %v521
    %2234 = vmatmul.mubr.bf16.gmra.mrb[0].mxu0 %v520
    %v2235 = vpop.f32.mrb[0].mxu0
    %v2236 = vadd.f32 %v2123, %v2235
    %v2237 = vpop.f32.mrb[0].mxu0
    %v2238 = vadd.f32 %v2125, %v2237
    %v2239 = vpop.f32.mrb[0].mxu0
    %v2240 = vadd.f32 %v2127, %v2239
    %v2241 = vpop.f32.mrb[0].mxu0
    %v2242 = vadd.f32 %v2129, %v2241
    %2243 = vmatprep.mubr.bf16.mxu0 %v528
    %2244 = vmatmul.mubr.bf16.gmra.mrb[0].mxu0 %v527
    %v2245 = vpop.f32.mrb[0].mxu0
    %v2246 = vadd.f32 %v2133, %v2245
    %v2247 = vpop.f32.mrb[0].mxu0
    %v2248 = vadd.f32 %v2135, %v2247
    %v2249 = vpop.f32.mrb[0].mxu0
    %v2250 = vadd.f32 %v2137, %v2249
    %v2251 = vpop.f32.mrb[0].mxu0
    %v2252 = vadd.f32 %v2139, %v2251
    %2253 = vmatprep.mubr.bf16.mxu0 %v535
    %2254 = vmatmul.mubr.bf16.gmra.mrb[0].mxu0 %v534
    %v2255 = vpop.f32.mrb[0].mxu0
    %v2256 = vadd.f32 %v2143, %v2255
    %v2257 = vpop.f32.mrb[0].mxu0
    %v2258 = vadd.f32 %v2145, %v2257
    %v2259 = vpop.f32.mrb[0].mxu0
    %v2260 = vadd.f32 %v2147, %v2259
    %v2261 = vpop.f32.mrb[0].mxu0
    %v2262 = vadd.f32 %v2149, %v2261
    %2263 = vmatprep.mubr.bf16.mxu0 %v542
    %2264 = vmatmul.mubr.bf16.gmra.mrb[0].mxu0 %v541
    %v2265 = vpop.f32.mrb[0].mxu0
    %v2266 = vadd.f32 %v2153, %v2265
    %v2267 = vpop.f32.mrb[0].mxu0
    %v2268 = vadd.f32 %v2155, %v2267
    %v2269 = vpop.f32.mrb[0].mxu0
    %v2270 = vadd.f32 %v2157, %v2269
    %v2271 = vpop.f32.mrb[0].mxu0
    %v2272 = vadd.f32 %v2159, %v2271
    %2273 = vmatprep.mubr.bf16.mxu0 %v549
    %2274 = vmatmul.mubr.bf16.gmra.mrb[0].mxu0 %v548
    %v2275 = vpop.f32.mrb[0].mxu0
    %v2276 = vadd.f32 %v2163, %v2275
    %v2277 = vpop.f32.mrb[0].mxu0
    %v2278 = vadd.f32 %v2165, %v2277
    %v2279 = vpop.f32.mrb[0].mxu0
    %v2280 = vadd.f32 %v2167, %v2279
    %v2281 = vpop.f32.mrb[0].mxu0
    %v2282 = vadd.f32 %v2169, %v2281
    %2283 = vdwg.mxu0
    %2284 = vmatprep.subr.bf16.mxu0 %v1320
    %2285 = vmatpush1.bf16.msra.mxu0 %v1319
    %2286 = vmatprep.subr.bf16.mxu0 %v1324
    %2287 = vmatpush1.bf16.msra.mxu0 %v1323
    %2288 = vmatprep.subr.bf16.mxu0 %v1328
    %2289 = vmatpush1.bf16.msra.mxu0 %v1327
    %2290 = vmatprep.subr.bf16.mxu0 %v1332
    %2291 = vmatpush1.bf16.msra.mxu0 %v1331
    %2292 = vmatprep.subr.bf16.mxu0 %v1336
    %2293 = vmatpush1.bf16.msra.mxu0 %v1335
    %2294 = vmatprep.subr.bf16.mxu0 %v1340
    %2295 = vmatpush1.bf16.msra.mxu0 %v1339
    %2296 = vmatprep.subr.bf16.mxu0 %v1344
    %2297 = vmatpush1.bf16.msra.mxu0 %v1343
    %2298 = vmatprep.subr.bf16.mxu0 %v1348
    %2299 = vmatpush1.bf16.msra.mxu0 %v1347
    %2300 = vmatprep.subr.bf16.mxu0 %v1352
    %2301 = vmatpush1.bf16.msra.mxu0 %v1351
    %2302 = vmatprep.subr.bf16.mxu0 %v1356
    %2303 = vmatpush1.bf16.msra.mxu0 %v1355
    %2304 = vmatprep.subr.bf16.mxu0 %v1360
    %2305 = vmatpush1.bf16.msra.mxu0 %v1359
    %2306 = vmatprep.subr.bf16.mxu0 %v1364
    %2307 = vmatpush1.bf16.msra.mxu0 %v1363
    %2308 = vmatprep.subr.bf16.mxu0 %v1368
    %2309 = vmatpush1.bf16.msra.mxu0 %v1367
    %2310 = vmatprep.subr.bf16.mxu0 %v1372
    %2311 = vmatpush1.bf16.msra.mxu0 %v1371
    %2312 = vmatprep.subr.bf16.mxu0 %v1376
    %2313 = vmatpush1.bf16.msra.mxu0 %v1375
    %2314 = vmatprep.subr.bf16.mxu0 %v1380
    %2315 = vmatpush1.bf16.msra.mxu0 %v1379
    %2316 = vmatprep.mubr.bf16.mxu0 %v502
    %2317 = vmatmul.mubr.bf16.gmra.mrb[0].mxu0 %v501
    %v2318 = vpop.f32.mrb[0].mxu0
    %v2319 = vadd.f32 %v2206, %v2318
    %v2320 = vpop.f32.mrb[0].mxu0
    %v2321 = vadd.f32 %v2208, %v2320
    %v2322 = vpop.f32.mrb[0].mxu0
    %v2323 = vadd.f32 %v2210, %v2322
    %v2324 = vpop.f32.mrb[0].mxu0
    %v2325 = vadd.f32 %v2212, %v2324
    %2326 = vmatprep.mubr.bf16.mxu0 %v509
    %2327 = vmatmul.mubr.bf16.gmra.mrb[0].mxu0 %v508
    %v2328 = vpop.f32.mrb[0].mxu0
    %v2329 = vadd.f32 %v2216, %v2328
    %v2330 = vpop.f32.mrb[0].mxu0
    %v2331 = vadd.f32 %v2218, %v2330
    %v2332 = vpop.f32.mrb[0].mxu0
    %v2333 = vadd.f32 %v2220, %v2332
    %v2334 = vpop.f32.mrb[0].mxu0
    %v2335 = vadd.f32 %v2222, %v2334
    %2336 = vmatprep.mubr.bf16.mxu0 %v516
    %2337 = vmatmul.mubr.bf16.gmra.mrb[0].mxu0 %v515
    %v2338 = vpop.f32.mrb[0].mxu0
    %v2339 = vadd.f32 %v2226, %v2338
    %v2340 = vpop.f32.mrb[0].mxu0
    %v2341 = vadd.f32 %v2228, %v2340
    %v2342 = vpop.f32.mrb[0].mxu0
    %v2343 = vadd.f32 %v2230, %v2342
    %v2344 = vpop.f32.mrb[0].mxu0
    %v2345 = vadd.f32 %v2232, %v2344
    %2346 = vmatprep.mubr.bf16.mxu0 %v523
    %2347 = vmatmul.mubr.bf16.gmra.mrb[0].mxu0 %v522
    %v2348 = vpop.f32.mrb[0].mxu0
    %v2349 = vadd.f32 %v2236, %v2348
    %v2350 = vpop.f32.mrb[0].mxu0
    %v2351 = vadd.f32 %v2238, %v2350
    %v2352 = vpop.f32.mrb[0].mxu0
    %v2353 = vadd.f32 %v2240, %v2352
    %v2354 = vpop.f32.mrb[0].mxu0
    %v2355 = vadd.f32 %v2242, %v2354
    %2356 = vmatprep.mubr.bf16.mxu0 %v530
    %2357 = vmatmul.mubr.bf16.gmra.mrb[0].mxu0 %v529
    %v2358 = vpop.f32.mrb[0].mxu0
    %v2359 = vadd.f32 %v2246, %v2358
    %v2360 = vpop.f32.mrb[0].mxu0
    %v2361 = vadd.f32 %v2248, %v2360
    %v2362 = vpop.f32.mrb[0].mxu0
    %v2363 = vadd.f32 %v2250, %v2362
    %v2364 = vpop.f32.mrb[0].mxu0
    %v2365 = vadd.f32 %v2252, %v2364
    %2366 = vmatprep.mubr.bf16.mxu0 %v537
    %2367 = vmatmul.mubr.bf16.gmra.mrb[0].mxu0 %v536
    %v2368 = vpop.f32.mrb[0].mxu0
    %v2369 = vadd.f32 %v2256, %v2368
    %v2370 = vpop.f32.mrb[0].mxu0
    %v2371 = vadd.f32 %v2258, %v2370
    %v2372 = vpop.f32.mrb[0].mxu0
    %v2373 = vadd.f32 %v2260, %v2372
    %v2374 = vpop.f32.mrb[0].mxu0
    %v2375 = vadd.f32 %v2262, %v2374
    %2376 = vmatprep.mubr.bf16.mxu0 %v544
    %2377 = vmatmul.mubr.bf16.gmra.mrb[0].mxu0 %v543
    %v2378 = vpop.f32.mrb[0].mxu0
    %v2379 = vadd.f32 %v2266, %v2378
    %v2380 = vpop.f32.mrb[0].mxu0
    %v2381 = vadd.f32 %v2268, %v2380
    %v2382 = vpop.f32.mrb[0].mxu0
    %v2383 = vadd.f32 %v2270, %v2382
    %v2384 = vpop.f32.mrb[0].mxu0
    %v2385 = vadd.f32 %v2272, %v2384
    %2386 = vmatprep.mubr.bf16.mxu0 %v551
    %2387 = vmatmul.mubr.bf16.gmra.mrb[0].mxu0 %v550
    %v2388 = vpop.f32.mrb[0].mxu0
    %v2389 = vadd.f32 %v2276, %v2388
    %v2390 = vpop.f32.mrb[0].mxu0
    %v2391 = vadd.f32 %v2278, %v2390
    %v2392 = vpop.f32.mrb[0].mxu0
    %v2393 = vadd.f32 %v2280, %v2392
    %v2394 = vpop.f32.mrb[0].mxu0
    %v2395 = vadd.f32 %v2282, %v2394
    %2396 = vdwg.mxu0
    %2397 = vmatprep.subr.bf16.mxu0 %v1384
    %2398 = vmatpush1.bf16.msra.mxu0 %v1383
    %2399 = vmatprep.subr.bf16.mxu0 0
    %2400 = vmatpush1.bf16.msra.mxu0 0
    %2401 = vmatprep.subr.bf16.mxu0 0
    %2402 = vmatpush1.bf16.msra.mxu0 0
    %2403 = vmatprep.subr.bf16.mxu0 0
    %2404 = vmatpush1.bf16.msra.mxu0 0
    %2405 = vmatprep.subr.bf16.mxu0 0
    %2406 = vmatpush1.bf16.msra.mxu0 0
    %2407 = vmatprep.subr.bf16.mxu0 0
    %2408 = vmatpush1.bf16.msra.mxu0 0
    %2409 = vmatprep.subr.bf16.mxu0 0
    %2410 = vmatpush1.bf16.msra.mxu0 0
    %2411 = vmatprep.subr.bf16.mxu0 0
    %2412 = vmatpush1.bf16.msra.mxu0 0
    %2413 = vmatprep.subr.bf16.mxu0 0
    %2414 = vmatpush1.bf16.msra.mxu0 0
    %2415 = vmatprep.subr.bf16.mxu0 0
    %2416 = vmatpush1.bf16.msra.mxu0 0
    %2417 = vmatprep.subr.bf16.mxu0 0
    %2418 = vmatpush1.bf16.msra.mxu0 0
    %2419 = vmatprep.subr.bf16.mxu0 0
    %2420 = vmatpush1.bf16.msra.mxu0 0
    %2421 = vmatprep.subr.bf16.mxu0 0
    %2422 = vmatpush1.bf16.msra.mxu0 0
    %2423 = vmatprep.subr.bf16.mxu0 0
    %2424 = vmatpush1.bf16.msra.mxu0 0
    %2425 = vmatprep.subr.bf16.mxu0 0
    %2426 = vmatpush1.bf16.msra.mxu0 0
    %2427 = vmatprep.subr.bf16.mxu0 0
    %2428 = vmatpush1.bf16.msra.mxu0 0
    %2429 = vmatprep.mubr.bf16.mxu0 0
    %2430 = vmatmul.mubr.bf16.gmra.mrb[0].mxu0 %v1583
    %v2431 = vpop.f32.mrb[0].mxu0
    %v2432 = vadd.f32 %v2319, %v2431
    %v2433 = vpop.f32.mrb[0].mxu0
    %v2434 = vadd.f32 %v2321, %v2433
    %v2435 = vpop.f32.mrb[0].mxu0
    %v2436 = vadd.f32 %v2323, %v2435
    %v2437 = vpop.f32.mrb[0].mxu0
    %v2438 = vadd.f32 %v2325, %v2437
    %2439 = vmatprep.mubr.bf16.mxu0 0
    %2440 = vmatmul.mubr.bf16.gmra.mrb[0].mxu0 %v1586
    %v2441 = vpop.f32.mrb[0].mxu0
    %v2442 = vadd.f32 %v2329, %v2441
    %v2443 = vpop.f32.mrb[0].mxu0
    %v2444 = vadd.f32 %v2331, %v2443
    %v2445 = vpop.f32.mrb[0].mxu0
    %v2446 = vadd.f32 %v2333, %v2445
    %v2447 = vpop.f32.mrb[0].mxu0
    %v2448 = vadd.f32 %v2335, %v2447
    %2449 = vmatprep.mubr.bf16.mxu0 0
    %2450 = vmatmul.mubr.bf16.gmra.mrb[0].mxu0 %v1589
    %v2451 = vpop.f32.mrb[0].mxu0
    %v2452 = vadd.f32 %v2339, %v2451
    %v2453 = vpop.f32.mrb[0].mxu0
    %v2454 = vadd.f32 %v2341, %v2453
    %v2455 = vpop.f32.mrb[0].mxu0
    %v2456 = vadd.f32 %v2343, %v2455
    %v2457 = vpop.f32.mrb[0].mxu0
    %v2458 = vadd.f32 %v2345, %v2457
    %2459 = vmatprep.mubr.bf16.mxu0 0
    %2460 = vmatmul.mubr.bf16.gmra.mrb[0].mxu0 %v1592
    %v2461 = vpop.f32.mrb[0].mxu0
    %v2462 = vadd.f32 %v2349, %v2461
    %v2463 = vpop.f32.mrb[0].mxu0
    %v2464 = vadd.f32 %v2351, %v2463
    %v2465 = vpop.f32.mrb[0].mxu0
    %v2466 = vadd.f32 %v2353, %v2465
    %v2467 = vpop.f32.mrb[0].mxu0
    %v2468 = vadd.f32 %v2355, %v2467
    %2469 = vmatprep.mubr.bf16.mxu0 0
    %2470 = vmatmul.mubr.bf16.gmra.mrb[0].mxu0 %v1595
    %v2471 = vpop.f32.mrb[0].mxu0
    %v2472 = vadd.f32 %v2359, %v2471
    %v2473 = vpop.f32.mrb[0].mxu0
    %v2474 = vadd.f32 %v2361, %v2473
    %v2475 = vpop.f32.mrb[0].mxu0
    %v2476 = vadd.f32 %v2363, %v2475
    %v2477 = vpop.f32.mrb[0].mxu0
    %v2478 = vadd.f32 %v2365, %v2477
    %2479 = vmatprep.mubr.bf16.mxu0 0
    %2480 = vmatmul.mubr.bf16.gmra.mrb[0].mxu0 %v1598
    %v2481 = vpop.f32.mrb[0].mxu0
    %v2482 = vadd.f32 %v2369, %v2481
    %v2483 = vpop.f32.mrb[0].mxu0
    %v2484 = vadd.f32 %v2371, %v2483
    %v2485 = vpop.f32.mrb[0].mxu0
    %v2486 = vadd.f32 %v2373, %v2485
    %v2487 = vpop.f32.mrb[0].mxu0
    %v2488 = vadd.f32 %v2375, %v2487
    %2489 = vmatprep.mubr.bf16.mxu0 0
    %2490 = vmatmul.mubr.bf16.gmra.mrb[0].mxu0 %v1601
    %v2491 = vpop.f32.mrb[0].mxu0
    %v2492 = vadd.f32 %v2379, %v2491
    %v2493 = vpop.f32.mrb[0].mxu0
    %v2494 = vadd.f32 %v2381, %v2493
    %v2495 = vpop.f32.mrb[0].mxu0
    %v2496 = vadd.f32 %v2383, %v2495
    %v2497 = vpop.f32.mrb[0].mxu0
    %v2498 = vadd.f32 %v2385, %v2497
    %2499 = vmatprep.mubr.bf16.mxu0 0
    %2500 = vmatmul.mubr.bf16.gmra.mrb[0].mxu0 %v1604
    %v2501 = vpop.f32.mrb[0].mxu0
    %v2502 = vadd.f32 %v2389, %v2501
    %v2503 = vpop.f32.mrb[0].mxu0
    %v2504 = vadd.f32 %v2391, %v2503
    %v2505 = vpop.f32.mrb[0].mxu0
    %v2506 = vadd.f32 %v2393, %v2505
    %v2507 = vpop.f32.mrb[0].mxu0
    %v2508 = vadd.f32 %v2395, %v2507
    %2509 = vdwg.mxu0
    %v2510 = vmax.f32 %v1980, 0.0
    %v2511 = vmax.f32 %v1982, 0.0
    %v2512 = vmax.f32 %v2432, 0.0
    %v2513 = vmax.f32 %v2434, 0.0
    %v2514 = vmax.f32 %v1984, 0.0
    %v2515 = vmax.f32 %v1986, 0.0
    %v2516 = vmax.f32 %v2436, 0.0
    %v2517 = vmax.f32 %v2438, 0.0
    %v2518 = vmax.f32 %v1990, 0.0
    %v2519 = vmax.f32 %v1992, 0.0
    %v2520 = vmax.f32 %v2442, 0.0
    %v2521 = vmax.f32 %v2444, 0.0
    %v2522 = vmax.f32 %v1994, 0.0
    %v2523 = vmax.f32 %v1996, 0.0
    %v2524 = vmax.f32 %v2446, 0.0
    %v2525 = vmax.f32 %v2448, 0.0
    %v2526 = vmax.f32 %v2000, 0.0
    %v2527 = vmax.f32 %v2002, 0.0
    %v2528 = vmax.f32 %v2452, 0.0
    %v2529 = vmax.f32 %v2454, 0.0
    %v2530 = vmax.f32 %v2004, 0.0
    %v2531 = vmax.f32 %v2006, 0.0
    %v2532 = vmax.f32 %v2456, 0.0
    %v2533 = vmax.f32 %v2458, 0.0
    %v2534 = vmax.f32 %v2010, 0.0
    %v2535 = vmax.f32 %v2012, 0.0
    %v2536 = vmax.f32 %v2462, 0.0
    %v2537 = vmax.f32 %v2464, 0.0
    %v2538 = vmax.f32 %v2014, 0.0
    %v2539 = vmax.f32 %v2016, 0.0
    %v2540 = vmax.f32 %v2466, 0.0
    %v2541 = vmax.f32 %v2468, 0.0
    %v2542 = vmax.f32 %v2020, 0.0
    %v2543 = vmax.f32 %v2022, 0.0
    %v2544 = vmax.f32 %v2472, 0.0
    %v2545 = vmax.f32 %v2474, 0.0
    %v2546 = vmax.f32 %v2024, 0.0
    %v2547 = vmax.f32 %v2026, 0.0
    %v2548 = vmax.f32 %v2476, 0.0
    %v2549 = vmax.f32 %v2478, 0.0
    %v2550 = vmax.f32 %v2030, 0.0
    %v2551 = vmax.f32 %v2032, 0.0
    %v2552 = vmax.f32 %v2482, 0.0
    %v2553 = vmax.f32 %v2484, 0.0
    %v2554 = vmax.f32 %v2034, 0.0
    %v2555 = vmax.f32 %v2036, 0.0
    %v2556 = vmax.f32 %v2486, 0.0
    %v2557 = vmax.f32 %v2488, 0.0
    %v2558 = vmax.f32 %v2040, 0.0
    %v2559 = vmax.f32 %v2042, 0.0
    %v2560 = vmax.f32 %v2492, 0.0
    %v2561 = vmax.f32 %v2494, 0.0
    %v2562 = vmax.f32 %v2044, 0.0
    %v2563 = vmax.f32 %v2046, 0.0
    %v2564 = vmax.f32 %v2496, 0.0
    %v2565 = vmax.f32 %v2498, 0.0
    %v2566 = vmax.f32 %v2050, 0.0
    %v2567 = vmax.f32 %v2052, 0.0
    %v2568 = vmax.f32 %v2502, 0.0
    %v2569 = vmax.f32 %v2504, 0.0
    %v2570 = vmax.f32 %v2054, 0.0
    %v2571 = vmax.f32 %v2056, 0.0
    %v2572 = vmax.f32 %v2506, 0.0
    %v2573 = vmax.f32 %v2508, 0.0
    %v2574 = vpack.c.bf16 %v2514, %v2510
    %v2575 = vpack.c.bf16 %v2515, %v2511
    %v2576 = vpack.c.bf16 %v2516, %v2512
    %v2577 = vpack.c.bf16 %v2517, %v2513
    %v2578 = vpack.c.bf16 %v2522, %v2518
    %v2579 = vpack.c.bf16 %v2523, %v2519
    %v2580 = vpack.c.bf16 %v2524, %v2520
    %v2581 = vpack.c.bf16 %v2525, %v2521
    %v2582 = vpack.c.bf16 %v2530, %v2526
    %v2583 = vpack.c.bf16 %v2531, %v2527
    %v2584 = vpack.c.bf16 %v2532, %v2528
    %v2585 = vpack.c.bf16 %v2533, %v2529
    %v2586 = vpack.c.bf16 %v2538, %v2534
    %v2587 = vpack.c.bf16 %v2539, %v2535
    %v2588 = vpack.c.bf16 %v2540, %v2536
    %v2589 = vpack.c.bf16 %v2541, %v2537
    %v2590 = vpack.c.bf16 %v2546, %v2542
    %v2591 = vpack.c.bf16 %v2547, %v2543
    %v2592 = vpack.c.bf16 %v2548, %v2544
    %v2593 = vpack.c.bf16 %v2549, %v2545
    %v2594 = vpack.c.bf16 %v2554, %v2550
    %v2595 = vpack.c.bf16 %v2555, %v2551
    %v2596 = vpack.c.bf16 %v2556, %v2552
    %v2597 = vpack.c.bf16 %v2557, %v2553
    %v2598 = vpack.c.bf16 %v2562, %v2558
    %v2599 = vpack.c.bf16 %v2563, %v2559
    %v2600 = vpack.c.bf16 %v2564, %v2560
    %v2601 = vpack.c.bf16 %v2565, %v2561
    %v2602 = vpack.c.bf16 %v2570, %v2566
    %v2603 = vpack.c.bf16 %v2571, %v2567
    %v2604 = vpack.c.bf16 %v2572, %v2568
    %v2605 = vpack.c.bf16 %v2573, %v2569
    %v2606 = vld [vmem:[%s4] sm:$0xf]
    %v2607 = vld [vmem:[%s4 + $0x4] sm:$0xf]
    %v2608 = vld [vmem:[%s4 + $0x8] sm:$0xf]
    %v2609 = vld [vmem:[%s4 + $0xc] sm:$0xf]
    %v2610 = vld [vmem:[%s4 + $0x10] sm:$0xf]
    %v2611 = vld [vmem:[%s4 + $0x14] sm:$0xf]
    %v2612 = vld [vmem:[%s4 + $0x18] sm:$0xf]
    %v2613 = vld [vmem:[%s4 + $0x1c] sm:$0xf]
    %v2614 = vld [vmem:[%s4 + $0x20] sm:$0xf]
    %v2615 = vld [vmem:[%s4 + $0x24] sm:$0xf]
    %v2616 = vld [vmem:[%s4 + $0x28] sm:$0xf]
    %v2617 = vld [vmem:[%s4 + $0x2c] sm:$0xf]
    %v2618 = vld [vmem:[%s4 + $0x30] sm:$0xf]
    %v2619 = vld [vmem:[%s4 + $0x34] sm:$0xf]
    %v2620 = vld [vmem:[%s4 + $0x38] sm:$0xf]
    %v2621 = vld [vmem:[%s4 + $0x3c] sm:$0xf]
    %v2622 = vld [vmem:[%s4 + $0x40] sm:$0xf]
    %v2623 = vld [vmem:[%s4 + $0x44] sm:$0xf]
    %v2624 = vld [vmem:[%s4 + $0x48] sm:$0xf]
    %v2625 = vld [vmem:[%s4 + $0x4c] sm:$0xf]
    %v2626 = vld [vmem:[%s4 + $0x50] sm:$0xf]
    %v2627 = vld [vmem:[%s4 + $0x54] sm:$0xf]
    %v2628 = vld [vmem:[%s4 + $0x58] sm:$0xf]
    %v2629 = vld [vmem:[%s4 + $0x5c] sm:$0xf]
    %v2630 = vld [vmem:[%s4 + $0x60] sm:$0xf]
    %v2631 = vld [vmem:[%s4 + $0x64] sm:$0xf]
    %v2632 = vld [vmem:[%s4 + $0x68] sm:$0xf]
    %v2633 = vld [vmem:[%s4 + $0x6c] sm:$0xf]
    %v2634 = vld [vmem:[%s4 + $0x70] sm:$0xf]
    %v2635 = vld [vmem:[%s4 + $0x74] sm:$0xf]
    %v2636 = vld [vmem:[%s4 + $0x78] sm:$0xf]
    %v2637 = vld [vmem:[%s4 + $0x7c] sm:$0xf]
    %v2638 = vld [vmem:[%s4 + $0x80] sm:$0xf]
    %v2639 = vld [vmem:[%s4 + $0x84] sm:$0xf]
    %v2640 = vld [vmem:[%s4 + $0x88] sm:$0xf]
    %v2641 = vld [vmem:[%s4 + $0x8c] sm:$0xf]
    %v2642 = vld [vmem:[%s4 + $0x90] sm:$0xf]
    %v2643 = vld [vmem:[%s4 + $0x94] sm:$0xf]
    %v2644 = vld [vmem:[%s4 + $0x98] sm:$0xf]
    %v2645 = vld [vmem:[%s4 + $0x9c] sm:$0xf]
    %v2646 = vld [vmem:[%s4 + $0xa0] sm:$0xf]
    %v2647 = vld [vmem:[%s4 + $0xa4] sm:$0xf]
    %v2648 = vld [vmem:[%s4 + $0xa8] sm:$0xf]
    %v2649 = vld [vmem:[%s4 + $0xac] sm:$0xf]
    %v2650 = vld [vmem:[%s4 + $0xb0] sm:$0xf]
    %v2651 = vld [vmem:[%s4 + $0xb4] sm:$0xf]
    %v2652 = vld [vmem:[%s4 + $0xb8] sm:$0xf]
    %v2653 = vld [vmem:[%s4 + $0xbc] sm:$0xf]
    %v2654 = vld [vmem:[%s4 + $0xc0] sm:$0xf]
    %v2655 = vld [vmem:[%s4 + $0xc4] sm:$0xf]
    %v2656 = vld [vmem:[%s4 + $0xc8] sm:$0xf]
    %v2657 = vld [vmem:[%s4 + $0xcc] sm:$0xf]
    %v2658 = vld [vmem:[%s4 + $0xd0] sm:$0xf]
    %v2659 = vld [vmem:[%s4 + $0xd4] sm:$0xf]
    %v2660 = vld [vmem:[%s4 + $0xd8] sm:$0xf]
    %v2661 = vld [vmem:[%s4 + $0xdc] sm:$0xf]
    %v2662 = vld [vmem:[%s4 + $0xe0] sm:$0xf]
    %v2663 = vld [vmem:[%s4 + $0xe4] sm:$0xf]
    %v2664 = vld [vmem:[%s4 + $0xe8] sm:$0xf]
    %v2665 = vld [vmem:[%s4 + $0xec] sm:$0xf]
    %v2666 = vld [vmem:[%s4 + $0xf0] sm:$0xf]
    %v2667 = vld [vmem:[%s4 + $0xf4] sm:$0xf]
    %v2668 = vld [vmem:[%s4 + $0xf8] sm:$0xf]
    %v2669 = vld [vmem:[%s4 + $0xfc] sm:$0xf]
    %v2670 = vld [vmem:[%s5] sm:$0x1]
    %v2672 = vlaneseq
    %v2673 = vshrl.u32 %v2672, 7
    %v2674 = vsub.s32 0, %v2673
    %v2675 = vrot.slane %v2670, %v2674
    %v2741 = vunpack.c.l.b16 %v2606
    %v2742 = vunpack.c.l.b16 %v2607
    %v2743 = vunpack.c.l.b16 %v2608
    %v2744 = vunpack.c.l.b16 %v2609
    %v2745 = vunpack.c.l.b16 %v2610
    %v2746 = vunpack.c.l.b16 %v2611
    %v2747 = vunpack.c.l.b16 %v2612
    %v2748 = vunpack.c.l.b16 %v2613
    %v2749 = vunpack.c.l.b16 %v2614
    %v2750 = vunpack.c.l.b16 %v2615
    %v2751 = vunpack.c.l.b16 %v2616
    %v2752 = vunpack.c.l.b16 %v2617
    %v2753 = vunpack.c.l.b16 %v2618
    %v2754 = vunpack.c.l.b16 %v2619
    %v2755 = vunpack.c.l.b16 %v2620
    %v2756 = vunpack.c.l.b16 %v2621
    %v2757 = vunpack.c.l.b16 %v2622
    %v2758 = vunpack.c.l.b16 %v2623
    %v2759 = vunpack.c.l.b16 %v2624
    %v2760 = vunpack.c.l.b16 %v2625
    %v2761 = vunpack.c.l.b16 %v2626
    %v2762 = vunpack.c.l.b16 %v2627
    %v2763 = vunpack.c.l.b16 %v2628
    %v2764 = vunpack.c.l.b16 %v2629
    %v2765 = vunpack.c.l.b16 %v2630
    %v2766 = vunpack.c.l.b16 %v2631
    %v2767 = vunpack.c.l.b16 %v2632
    %v2768 = vunpack.c.l.b16 %v2633
    %v2769 = vunpack.c.l.b16 %v2634
    %v2770 = vunpack.c.l.b16 %v2635
    %v2771 = vunpack.c.l.b16 %v2636
    %v2772 = vunpack.c.l.b16 %v2637
    %v2773 = vunpack.c.l.b16 %v2638
    %v2774 = vunpack.c.l.b16 %v2639
    %v2775 = vunpack.c.l.b16 %v2640
    %v2776 = vunpack.c.l.b16 %v2641
    %v2777 = vunpack.c.l.b16 %v2642
    %v2778 = vunpack.c.l.b16 %v2643
    %v2779 = vunpack.c.l.b16 %v2644
    %v2780 = vunpack.c.l.b16 %v2645
    %v2781 = vunpack.c.l.b16 %v2646
    %v2782 = vunpack.c.l.b16 %v2647
    %v2783 = vunpack.c.l.b16 %v2648
    %v2784 = vunpack.c.l.b16 %v2649
    %v2785 = vunpack.c.l.b16 %v2650
    %v2786 = vunpack.c.l.b16 %v2651
    %v2787 = vunpack.c.l.b16 %v2652
    %v2788 = vunpack.c.l.b16 %v2653
    %v2789 = vunpack.c.l.b16 %v2654
    %v2790 = vunpack.c.l.b16 %v2655
    %v2791 = vunpack.c.l.b16 %v2656
    %v2792 = vunpack.c.l.b16 %v2657
    %v2793 = vunpack.c.l.b16 %v2658
    %v2794 = vunpack.c.l.b16 %v2659
    %v2795 = vunpack.c.l.b16 %v2660
    %v2796 = vunpack.c.l.b16 %v2661
    %v2797 = vunpack.c.l.b16 %v2662
    %v2798 = vunpack.c.l.b16 %v2663
    %v2799 = vunpack.c.l.b16 %v2664
    %v2800 = vunpack.c.l.b16 %v2665
    %v2801 = vunpack.c.l.b16 %v2666
    %v2802 = vunpack.c.l.b16 %v2667
    %v2803 = vunpack.c.l.b16 %v2668
    %v2804 = vunpack.c.l.b16 %v2669
    %v2805 = vpack.c.b16 %v2742, %v2741
    %v2806 = vpack.c.b16 %v2744, %v2743
    %v2807 = vpack.c.b16 %v2746, %v2745
    %v2808 = vpack.c.b16 %v2748, %v2747
    %v2809 = vpack.c.b16 %v2750, %v2749
    %v2810 = vpack.c.b16 %v2752, %v2751
    %v2811 = vpack.c.b16 %v2754, %v2753
    %v2812 = vpack.c.b16 %v2756, %v2755
    %v2813 = vpack.c.b16 %v2758, %v2757
    %v2814 = vpack.c.b16 %v2760, %v2759
    %v2815 = vpack.c.b16 %v2762, %v2761
    %v2816 = vpack.c.b16 %v2764, %v2763
    %v2817 = vpack.c.b16 %v2766, %v2765
    %v2818 = vpack.c.b16 %v2768, %v2767
    %v2819 = vpack.c.b16 %v2770, %v2769
    %v2820 = vpack.c.b16 %v2772, %v2771
    %v2821 = vpack.c.b16 %v2774, %v2773
    %v2822 = vpack.c.b16 %v2776, %v2775
    %v2823 = vpack.c.b16 %v2778, %v2777
    %v2824 = vpack.c.b16 %v2780, %v2779
    %v2825 = vpack.c.b16 %v2782, %v2781
    %v2826 = vpack.c.b16 %v2784, %v2783
    %v2827 = vpack.c.b16 %v2786, %v2785
    %v2828 = vpack.c.b16 %v2788, %v2787
    %v2829 = vpack.c.b16 %v2790, %v2789
    %v2830 = vpack.c.b16 %v2792, %v2791
    %v2831 = vpack.c.b16 %v2794, %v2793
    %v2832 = vpack.c.b16 %v2796, %v2795
    %v2833 = vpack.c.b16 %v2798, %v2797
    %v2834 = vpack.c.b16 %v2800, %v2799
    %v2835 = vpack.c.b16 %v2802, %v2801
    %v2836 = vpack.c.b16 %v2804, %v2803
    %2869 = vmatprep.subr.bf16.mxu0 0
    %2870 = vmatpush1.bf16.msra.mxu0 %v2805
    %2871 = vmatprep.subr.bf16.mxu0 0
    %2872 = vmatpush1.bf16.msra.mxu0 %v2806
    %2873 = vmatprep.subr.bf16.mxu0 0
    %2874 = vmatpush1.bf16.msra.mxu0 %v2807
    %2875 = vmatprep.subr.bf16.mxu0 0
    %2876 = vmatpush1.bf16.msra.mxu0 %v2808
    %2877 = vmatprep.subr.bf16.mxu0 0
    %2878 = vmatpush1.bf16.msra.mxu0 %v2809
    %2879 = vmatprep.subr.bf16.mxu0 0
    %2880 = vmatpush1.bf16.msra.mxu0 %v2810
    %2881 = vmatprep.subr.bf16.mxu0 0
    %2882 = vmatpush1.bf16.msra.mxu0 %v2811
    %2883 = vmatprep.subr.bf16.mxu0 0
    %2884 = vmatpush1.bf16.msra.mxu0 %v2812
    %2885 = vmatprep.subr.bf16.mxu0 0
    %2886 = vmatpush1.bf16.msra.mxu0 %v2813
    %2887 = vmatprep.subr.bf16.mxu0 0
    %2888 = vmatpush1.bf16.msra.mxu0 %v2814
    %2889 = vmatprep.subr.bf16.mxu0 0
    %2890 = vmatpush1.bf16.msra.mxu0 %v2815
    %2891 = vmatprep.subr.bf16.mxu0 0
    %2892 = vmatpush1.bf16.msra.mxu0 %v2816
    %2893 = vmatprep.subr.bf16.mxu0 0
    %2894 = vmatpush1.bf16.msra.mxu0 %v2817
    %2895 = vmatprep.subr.bf16.mxu0 0
    %2896 = vmatpush1.bf16.msra.mxu0 %v2818
    %2897 = vmatprep.subr.bf16.mxu0 0
    %2898 = vmatpush1.bf16.msra.mxu0 %v2819
    %2899 = vmatprep.subr.bf16.mxu0 0
    %2900 = vmatpush1.bf16.msra.mxu0 %v2820
    %2901 = vmatprep.mubr.bf16.mxu0 %v2575
    %2902 = vmatmul.mubr.bf16.gmra.mrb[0].mxu0 %v2574
    %v2903 = vpop.f32.mrb[0].mxu0
    %v2904 = vadd.f32 %v2675, %v2903
    %v2905 = vpop.f32.mrb[0].mxu0
    %v2906 = vpop.f32.mrb[0].mxu0
    %v2907 = vadd.f32 %v2675, %v2906
    %v2908 = vpop.f32.mrb[0].mxu0
    %2909 = vmatprep.mubr.bf16.mxu0 %v2579
    %2910 = vmatmul.mubr.bf16.gmra.mrb[0].mxu0 %v2578
    %v2911 = vpop.f32.mrb[0].mxu0
    %v2912 = vadd.f32 %v2675, %v2911
    %v2913 = vpop.f32.mrb[0].mxu0
    %v2914 = vpop.f32.mrb[0].mxu0
    %v2915 = vadd.f32 %v2675, %v2914
    %v2916 = vpop.f32.mrb[0].mxu0
    %2917 = vmatprep.mubr.bf16.mxu0 %v2583
    %2918 = vmatmul.mubr.bf16.gmra.mrb[0].mxu0 %v2582
    %v2919 = vpop.f32.mrb[0].mxu0
    %v2920 = vadd.f32 %v2675, %v2919
    %v2921 = vpop.f32.mrb[0].mxu0
    %v2922 = vpop.f32.mrb[0].mxu0
    %v2923 = vadd.f32 %v2675, %v2922
    %v2924 = vpop.f32.mrb[0].mxu0
    %2925 = vmatprep.mubr.bf16.mxu0 %v2587
    %2926 = vmatmul.mubr.bf16.gmra.mrb[0].mxu0 %v2586
    %v2927 = vpop.f32.mrb[0].mxu0
    %v2928 = vadd.f32 %v2675, %v2927
    %v2929 = vpop.f32.mrb[0].mxu0
    %v2930 = vpop.f32.mrb[0].mxu0
    %v2931 = vadd.f32 %v2675, %v2930
    %v2932 = vpop.f32.mrb[0].mxu0
    %2933 = vmatprep.mubr.bf16.mxu0 %v2591
    %2934 = vmatmul.mubr.bf16.gmra.mrb[0].mxu0 %v2590
    %v2935 = vpop.f32.mrb[0].mxu0
    %v2936 = vadd.f32 %v2675, %v2935
    %v2937 = vpop.f32.mrb[0].mxu0
    %v2938 = vpop.f32.mrb[0].mxu0
    %v2939 = vadd.f32 %v2675, %v2938
    %v2940 = vpop.f32.mrb[0].mxu0
    %2941 = vmatprep.mubr.bf16.mxu0 %v2595
    %2942 = vmatmul.mubr.bf16.gmra.mrb[0].mxu0 %v2594
    %v2943 = vpop.f32.mrb[0].mxu0
    %v2944 = vadd.f32 %v2675, %v2943
    %v2945 = vpop.f32.mrb[0].mxu0
    %v2946 = vpop.f32.mrb[0].mxu0
    %v2947 = vadd.f32 %v2675, %v2946
    %v2948 = vpop.f32.mrb[0].mxu0
    %2949 = vmatprep.mubr.bf16.mxu0 %v2599
    %2950 = vmatmul.mubr.bf16.gmra.mrb[0].mxu0 %v2598
    %v2951 = vpop.f32.mrb[0].mxu0
    %v2952 = vadd.f32 %v2675, %v2951
    %v2953 = vpop.f32.mrb[0].mxu0
    %v2954 = vpop.f32.mrb[0].mxu0
    %v2955 = vadd.f32 %v2675, %v2954
    %v2956 = vpop.f32.mrb[0].mxu0
    %2957 = vmatprep.mubr.bf16.mxu0 %v2603
    %2958 = vmatmul.mubr.bf16.gmra.mrb[0].mxu0 %v2602
    %v2959 = vpop.f32.mrb[0].mxu0
    %v2960 = vadd.f32 %v2675, %v2959
    %v2961 = vpop.f32.mrb[0].mxu0
    %v2962 = vpop.f32.mrb[0].mxu0
    %v2963 = vadd.f32 %v2675, %v2962
    %v2964 = vpop.f32.mrb[0].mxu0
    %2965 = vdwg.mxu0
    %2966 = vmatprep.subr.bf16.mxu0 0
    %2967 = vmatpush1.bf16.msra.mxu0 %v2821
    %2968 = vmatprep.subr.bf16.mxu0 0
    %2969 = vmatpush1.bf16.msra.mxu0 %v2822
    %2970 = vmatprep.subr.bf16.mxu0 0
    %2971 = vmatpush1.bf16.msra.mxu0 %v2823
    %2972 = vmatprep.subr.bf16.mxu0 0
    %2973 = vmatpush1.bf16.msra.mxu0 %v2824
    %2974 = vmatprep.subr.bf16.mxu0 0
    %2975 = vmatpush1.bf16.msra.mxu0 %v2825
    %2976 = vmatprep.subr.bf16.mxu0 0
    %2977 = vmatpush1.bf16.msra.mxu0 %v2826
    %2978 = vmatprep.subr.bf16.mxu0 0
    %2979 = vmatpush1.bf16.msra.mxu0 %v2827
    %2980 = vmatprep.subr.bf16.mxu0 0
    %2981 = vmatpush1.bf16.msra.mxu0 %v2828
    %2982 = vmatprep.subr.bf16.mxu0 0
    %2983 = vmatpush1.bf16.msra.mxu0 %v2829
    %2984 = vmatprep.subr.bf16.mxu0 0
    %2985 = vmatpush1.bf16.msra.mxu0 %v2830
    %2986 = vmatprep.subr.bf16.mxu0 0
    %2987 = vmatpush1.bf16.msra.mxu0 %v2831
    %2988 = vmatprep.subr.bf16.mxu0 0
    %2989 = vmatpush1.bf16.msra.mxu0 %v2832
    %2990 = vmatprep.subr.bf16.mxu0 0
    %2991 = vmatpush1.bf16.msra.mxu0 %v2833
    %2992 = vmatprep.subr.bf16.mxu0 0
    %2993 = vmatpush1.bf16.msra.mxu0 %v2834
    %2994 = vmatprep.subr.bf16.mxu0 0
    %2995 = vmatpush1.bf16.msra.mxu0 %v2835
    %2996 = vmatprep.subr.bf16.mxu0 0
    %2997 = vmatpush1.bf16.msra.mxu0 %v2836
    %2998 = vmatprep.mubr.bf16.mxu0 %v2577
    %2999 = vmatmul.mubr.bf16.gmra.mrb[0].mxu0 %v2576
    %v3000 = vpop.f32.mrb[0].mxu0
    %v3001 = vadd.f32 %v2904, %v3000
    %v3002 = vpop.f32.mrb[0].mxu0
    %v3003 = vpop.f32.mrb[0].mxu0
    %v3004 = vadd.f32 %v2907, %v3003
    %v3005 = vpop.f32.mrb[0].mxu0
    %3006 = vmatprep.mubr.bf16.mxu0 %v2581
    %3007 = vmatmul.mubr.bf16.gmra.mrb[0].mxu0 %v2580
    %v3008 = vpop.f32.mrb[0].mxu0
    %v3009 = vadd.f32 %v2912, %v3008
    %v3010 = vpop.f32.mrb[0].mxu0
    %v3011 = vpop.f32.mrb[0].mxu0
    %v3012 = vadd.f32 %v2915, %v3011
    %v3013 = vpop.f32.mrb[0].mxu0
    %3014 = vmatprep.mubr.bf16.mxu0 %v2585
    %3015 = vmatmul.mubr.bf16.gmra.mrb[0].mxu0 %v2584
    %v3016 = vpop.f32.mrb[0].mxu0
    %v3017 = vadd.f32 %v2920, %v3016
    %v3018 = vpop.f32.mrb[0].mxu0
    %v3019 = vpop.f32.mrb[0].mxu0
    %v3020 = vadd.f32 %v2923, %v3019
    %v3021 = vpop.f32.mrb[0].mxu0
    %3022 = vmatprep.mubr.bf16.mxu0 %v2589
    %3023 = vmatmul.mubr.bf16.gmra.mrb[0].mxu0 %v2588
    %v3024 = vpop.f32.mrb[0].mxu0
    %v3025 = vadd.f32 %v2928, %v3024
    %v3026 = vpop.f32.mrb[0].mxu0
    %v3027 = vpop.f32.mrb[0].mxu0
    %v3028 = vadd.f32 %v2931, %v3027
    %v3029 = vpop.f32.mrb[0].mxu0
    %3030 = vmatprep.mubr.bf16.mxu0 %v2593
    %3031 = vmatmul.mubr.bf16.gmra.mrb[0].mxu0 %v2592
    %v3032 = vpop.f32.mrb[0].mxu0
    %v3033 = vadd.f32 %v2936, %v3032
    %v3034 = vpop.f32.mrb[0].mxu0
    %v3035 = vpop.f32.mrb[0].mxu0
    %v3036 = vadd.f32 %v2939, %v3035
    %v3037 = vpop.f32.mrb[0].mxu0
    %3038 = vmatprep.mubr.bf16.mxu0 %v2597
    %3039 = vmatmul.mubr.bf16.gmra.mrb[0].mxu0 %v2596
    %v3040 = vpop.f32.mrb[0].mxu0
    %v3041 = vadd.f32 %v2944, %v3040
    %v3042 = vpop.f32.mrb[0].mxu0
    %v3043 = vpop.f32.mrb[0].mxu0
    %v3044 = vadd.f32 %v2947, %v3043
    %v3045 = vpop.f32.mrb[0].mxu0
    %3046 = vmatprep.mubr.bf16.mxu0 %v2601
    %3047 = vmatmul.mubr.bf16.gmra.mrb[0].mxu0 %v2600
    %v3048 = vpop.f32.mrb[0].mxu0
    %v3049 = vadd.f32 %v2952, %v3048
    %v3050 = vpop.f32.mrb[0].mxu0
    %v3051 = vpop.f32.mrb[0].mxu0
    %v3052 = vadd.f32 %v2955, %v3051
    %v3053 = vpop.f32.mrb[0].mxu0
    %3054 = vmatprep.mubr.bf16.mxu0 %v2605
    %3055 = vmatmul.mubr.bf16.gmra.mrb[0].mxu0 %v2604
    %v3056 = vpop.f32.mrb[0].mxu0
    %v3057 = vadd.f32 %v2960, %v3056
    %v3058 = vpop.f32.mrb[0].mxu0
    %v3059 = vpop.f32.mrb[0].mxu0
    %v3060 = vadd.f32 %v2963, %v3059
    %v3061 = vpop.f32.mrb[0].mxu0
    %3062 = vdwg.mxu0
    %3063 = vst [vmem:[#allocation2] sm:$0xff] %v3001
    %3064 = vst [vmem:[#allocation2 + $0x8] sm:$0xff] %v3004
    %3065 = vst [vmem:[#allocation2 + $0x10] sm:$0xff] %v3009
    %3066 = vst [vmem:[#allocation2 + $0x18] sm:$0xff] %v3012
    %3067 = vst [vmem:[#allocation2 + $0x20] sm:$0xff] %v3017
    %3068 = vst [vmem:[#allocation2 + $0x28] sm:$0xff] %v3020
    %3069 = vst [vmem:[#allocation2 + $0x30] sm:$0xff] %v3025
    %3070 = vst [vmem:[#allocation2 + $0x38] sm:$0xff] %v3028
    %3071 = vst [vmem:[#allocation2 + $0x40] sm:$0xff] %v3033
    %3072 = vst [vmem:[#allocation2 + $0x48] sm:$0xff] %v3036
    %3073 = vst [vmem:[#allocation2 + $0x50] sm:$0xff] %v3041
    %3074 = vst [vmem:[#allocation2 + $0x58] sm:$0xff] %v3044
    %3075 = vst [vmem:[#allocation2 + $0x60] sm:$0xff] %v3049
    %3076 = vst [vmem:[#allocation2 + $0x68] sm:$0xff] %v3052
    %3077 = vst [vmem:[#allocation2 + $0x70] sm:$0xff] %v3057
    %3078 = vst [vmem:[#allocation2 + $0x78] sm:$0xff] %v3060
    %3079 = vrot.lane.b32.xlu0 %v3001, 108
    %v3080 = vpop.permute.xlu0 %3079
    %3081 = vrot.lane.b32.xlu0 %v3004, 108
    %v3082 = vpop.permute.xlu0 %3081
    %3083 = vrot.lane.b32.xlu0 %v3009, 108
    %v3084 = vpop.permute.xlu0 %3083
    %3085 = vrot.lane.b32.xlu0 %v3012, 108
    %v3086 = vpop.permute.xlu0 %3085
    %3087 = vrot.lane.b32.xlu0 %v3017, 108
    %v3088 = vpop.permute.xlu0 %3087
    %3089 = vrot.lane.b32.xlu0 %v3020, 108
    %v3090 = vpop.permute.xlu0 %3089
    %3091 = vrot.lane.b32.xlu0 %v3025, 108
    %v3092 = vpop.permute.xlu0 %3091
    %3093 = vrot.lane.b32.xlu0 %v3028, 108
    %v3094 = vpop.permute.xlu0 %3093
    %3095 = vrot.lane.b32.xlu0 %v3033, 108
    %v3096 = vpop.permute.xlu0 %3095
    %3097 = vrot.lane.b32.xlu0 %v3036, 108
    %v3098 = vpop.permute.xlu0 %3097
    %3099 = vrot.lane.b32.xlu0 %v3041, 108
    %v3100 = vpop.permute.xlu0 %3099
    %3101 = vrot.lane.b32.xlu0 %v3044, 108
    %v3102 = vpop.permute.xlu0 %3101
    %3103 = vrot.lane.b32.xlu0 %v3049, 108
    %v3104 = vpop.permute.xlu0 %3103
    %3105 = vrot.lane.b32.xlu0 %v3052, 108
    %v3106 = vpop.permute.xlu0 %3105
    %3107 = vrot.lane.b32.xlu0 %v3057, 108
    %v3108 = vpop.permute.xlu0 %3107
    %3109 = vrot.lane.b32.xlu0 %v3060, 108
    %v3110 = vpop.permute.xlu0 %3109
    %v3111 = vmin.f32 %v3080, 170.0
    %v3112 = vmin.f32 %v3082, 170.0
    %v3113 = vmin.f32 %v3084, 170.0
    %v3114 = vmin.f32 %v3086, 170.0
    %v3115 = vmin.f32 %v3088, 170.0
    %v3116 = vmin.f32 %v3090, 170.0
    %v3117 = vmin.f32 %v3092, 170.0
    %v3118 = vmin.f32 %v3094, 170.0
    %v3119 = vmin.f32 %v3096, 170.0
    %v3120 = vmin.f32 %v3098, 170.0
    %v3121 = vmin.f32 %v3100, 170.0
    %v3122 = vmin.f32 %v3102, 170.0
    %v3123 = vmin.f32 %v3104, 170.0
    %v3124 = vmin.f32 %v3106, 170.0
    %v3125 = vmin.f32 %v3108, 170.0
    %v3126 = vmin.f32 %v3110, 170.0
    %v3127 = vmul.f32 %v3111, 0.5
    %v3128 = vmul.f32 %v3112, 0.5
    %v3129 = vmul.f32 %v3113, 0.5
    %v3130 = vmul.f32 %v3114, 0.5
    %v3131 = vmul.f32 %v3115, 0.5
    %v3132 = vmul.f32 %v3116, 0.5
    %v3133 = vmul.f32 %v3117, 0.5
    %v3134 = vmul.f32 %v3118, 0.5
    %v3135 = vmul.f32 %v3119, 0.5
    %v3136 = vmul.f32 %v3120, 0.5
    %v3137 = vmul.f32 %v3121, 0.5
    %v3138 = vmul.f32 %v3122, 0.5
    %v3139 = vmul.f32 %v3123, 0.5
    %v3140 = vmul.f32 %v3124, 0.5
    %v3141 = vmul.f32 %v3125, 0.5
    %v3142 = vmul.f32 %v3126, 0.5
    %v3143 = vmul.f32 %v3127, 1.442695
    %v3144 = vpow.pop %v3143
    %v3145 = vmul.f32 %v3128, 1.442695
    %v3146 = vpow.pop %v3145
    %v3147 = vmul.f32 %v3129, 1.442695
    %v3148 = vpow.pop %v3147
    %v3149 = vmul.f32 %v3130, 1.442695
    %v3150 = vpow.pop %v3149
    %v3151 = vmul.f32 %v3131, 1.442695
    %v3152 = vpow.pop %v3151
    %v3153 = vmul.f32 %v3132, 1.442695
    %v3154 = vpow.pop %v3153
    %v3155 = vmul.f32 %v3133, 1.442695
    %v3156 = vpow.pop %v3155
    %v3157 = vmul.f32 %v3134, 1.442695
    %v3158 = vpow.pop %v3157
    %v3159 = vmul.f32 %v3135, 1.442695
    %v3160 = vpow.pop %v3159
    %v3161 = vmul.f32 %v3136, 1.442695
    %v3162 = vpow.pop %v3161
    %v3163 = vmul.f32 %v3137, 1.442695
    %v3164 = vpow.pop %v3163
    %v3165 = vmul.f32 %v3138, 1.442695
    %v3166 = vpow.pop %v3165
    %v3167 = vmul.f32 %v3139, 1.442695
    %v3168 = vpow.pop %v3167
    %v3169 = vmul.f32 %v3140, 1.442695
    %v3170 = vpow.pop %v3169
    %v3171 = vmul.f32 %v3141, 1.442695
    %v3172 = vpow.pop %v3171
    %v3173 = vmul.f32 %v3142, 1.442695
    %v3174 = vpow.pop %v3173
    %v3175 = vld [vmem:[%s1] sm:$0xf]
    %v3176 = vld [vmem:[%s1 + $0x4] sm:$0xf]
    %v3177 = vld [vmem:[%s1 + $0x8] sm:$0xf]
    %v3178 = vld [vmem:[%s1 + $0xc] sm:$0xf]
    %v3179 = vld [vmem:[%s1 + $0x10] sm:$0xf]
    %v3180 = vld [vmem:[%s1 + $0x14] sm:$0xf]
    %v3181 = vld [vmem:[%s1 + $0x18] sm:$0xf]
    %v3182 = vld [vmem:[%s1 + $0x1c] sm:$0xf]
    %v3183 = vld [vmem:[%s1 + $0x20] sm:$0xf]
    %v3184 = vld [vmem:[%s1 + $0x24] sm:$0xf]
    %v3185 = vld [vmem:[%s1 + $0x28] sm:$0xf]
    %v3186 = vld [vmem:[%s1 + $0x2c] sm:$0xf]
    %v3187 = vld [vmem:[%s1 + $0x30] sm:$0xf]
    %v3188 = vld [vmem:[%s1 + $0x34] sm:$0xf]
    %v3189 = vld [vmem:[%s1 + $0x38] sm:$0xf]
    %v3190 = vld [vmem:[%s1 + $0x3c] sm:$0xf]
    %v3191 = vunpack.c.l.bf16 %v3175
    %v3192 = vunpack.c.l.bf16 %v3176
    %v3193 = vunpack.c.l.bf16 %v3177
    %v3194 = vunpack.c.l.bf16 %v3178
    %v3195 = vunpack.c.l.bf16 %v3179
    %v3196 = vunpack.c.l.bf16 %v3180
    %v3197 = vunpack.c.l.bf16 %v3181
    %v3198 = vunpack.c.l.bf16 %v3182
    %v3199 = vunpack.c.l.bf16 %v3183
    %v3200 = vunpack.c.l.bf16 %v3184
    %v3201 = vunpack.c.l.bf16 %v3185
    %v3202 = vunpack.c.l.bf16 %v3186
    %v3203 = vunpack.c.l.bf16 %v3187
    %v3204 = vunpack.c.l.bf16 %v3188
    %v3205 = vunpack.c.l.bf16 %v3189
    %v3206 = vunpack.c.l.bf16 %v3190
    %v3207 = vmul.f32 %v3191, %v3144
    %v3208 = vmul.f32 %v3192, %v3146
    %v3209 = vmul.f32 %v3193, %v3148
    %v3210 = vmul.f32 %v3194, %v3150
    %v3211 = vmul.f32 %v3195, %v3152
    %v3212 = vmul.f32 %v3196, %v3154
    %v3213 = vmul.f32 %v3197, %v3156
    %v3214 = vmul.f32 %v3198, %v3158
    %v3215 = vmul.f32 %v3199, %v3160
    %v3216 = vmul.f32 %v3200, %v3162
    %v3217 = vmul.f32 %v3201, %v3164
    %v3218 = vmul.f32 %v3202, %v3166
    %v3219 = vmul.f32 %v3203, %v3168
    %v3220 = vmul.f32 %v3204, %v3170
    %v3221 = vmul.f32 %v3205, %v3172
    %v3222 = vmul.f32 %v3206, %v3174
    %v3223 = vadd.f32 %v3207, %v3001
    %v3224 = vadd.f32 %v3208, %v3004
    %v3225 = vadd.f32 %v3209, %v3009
    %v3226 = vadd.f32 %v3210, %v3012
    %v3227 = vadd.f32 %v3211, %v3017
    %v3228 = vadd.f32 %v3212, %v3020
    %v3229 = vadd.f32 %v3213, %v3025
    %v3230 = vadd.f32 %v3214, %v3028
    %v3231 = vadd.f32 %v3215, %v3033
    %v3232 = vadd.f32 %v3216, %v3036
    %v3233 = vadd.f32 %v3217, %v3041
    %v3234 = vadd.f32 %v3218, %v3044
    %v3235 = vadd.f32 %v3219, %v3049
    %v3236 = vadd.f32 %v3220, %v3052
    %v3237 = vadd.f32 %v3221, %v3057
    %v3238 = vadd.f32 %v3222, %v3060
    %v3239 = vpack.c.bf16 %v3224, %v3223
    %v3240 = vpack.c.bf16 %v3226, %v3225
    %v3241 = vpack.c.bf16 %v3228, %v3227
    %v3242 = vpack.c.bf16 %v3230, %v3229
    %v3243 = vpack.c.bf16 %v3232, %v3231
    %v3244 = vpack.c.bf16 %v3234, %v3233
    %v3245 = vpack.c.bf16 %v3236, %v3235
    %v3246 = vpack.c.bf16 %v3238, %v3237
    %v3247 = vld [vmem:[%s6] sm:$0xff]
    %v3248 = vld [vmem:[%s6 + $0x8] sm:$0xff]
    %v3249 = vld [vmem:[%s6 + $0x10] sm:$0xff]
    %v3250 = vld [vmem:[%s6 + $0x18] sm:$0xff]
    %v3251 = vld [vmem:[%s6 + $0x20] sm:$0xff]
    %v3252 = vld [vmem:[%s6 + $0x28] sm:$0xff]
    %v3253 = vld [vmem:[%s6 + $0x30] sm:$0xff]
    %v3254 = vld [vmem:[%s6 + $0x38] sm:$0xff]
    %v3255 = vld [vmem:[%s6 + $0x40] sm:$0xff]
    %v3256 = vld [vmem:[%s6 + $0x48] sm:$0xff]
    %v3257 = vld [vmem:[%s6 + $0x50] sm:$0xff]
    %v3258 = vld [vmem:[%s6 + $0x58] sm:$0xff]
    %v3259 = vld [vmem:[%s6 + $0x60] sm:$0xff]
    %v3260 = vld [vmem:[%s6 + $0x68] sm:$0xff]
    %v3261 = vld [vmem:[%s6 + $0x70] sm:$0xff]
    %v3262 = vld [vmem:[%s6 + $0x78] sm:$0xff]
    %v3263 = vld [vmem:[%s6 + $0x80] sm:$0xff]
    %v3264 = vld [vmem:[%s6 + $0x88] sm:$0xff]
    %v3265 = vld [vmem:[%s6 + $0x90] sm:$0xff]
    %v3266 = vld [vmem:[%s6 + $0x98] sm:$0xff]
    %v3267 = vld [vmem:[%s6 + $0xa0] sm:$0xff]
    %v3268 = vld [vmem:[%s6 + $0xa8] sm:$0xff]
    %v3269 = vld [vmem:[%s6 + $0xb0] sm:$0xff]
    %v3270 = vld [vmem:[%s6 + $0xb8] sm:$0xff]
    %v3271 = vld [vmem:[%s6 + $0xc0] sm:$0xff]
    %v3272 = vld [vmem:[%s6 + $0xc8] sm:$0xff]
    %v3273 = vld [vmem:[%s6 + $0xd0] sm:$0xff]
    %v3274 = vld [vmem:[%s6 + $0xd8] sm:$0xff]
    %v3275 = vld [vmem:[%s6 + $0xe0] sm:$0xff]
    %v3276 = vld [vmem:[%s6 + $0xe8] sm:$0xff]
    %v3277 = vld [vmem:[%s6 + $0xf0] sm:$0xff]
    %v3278 = vld [vmem:[%s6 + $0xf8] sm:$0xff]
    %v3279 = vld [vmem:[%s7] sm:$0xf]
    %v3281 = vlaneseq
    %v3282 = vshrl.u32 %v3281, 7
    %v3283 = vsub.s32 0, %v3282
    %v3284 = vrot.slane %v3279, %v3283
    %v3285 = vlaneseq
    %v3286 = vshrl.u32 %v3285, 7
    %v3287 = vsub.s32 1, %v3286
    %v3288 = vrot.slane %v3279, %v3287
    %v3289 = vlaneseq
    %v3290 = vshrl.u32 %v3289, 7
    %v3291 = vsub.s32 2, %v3290
    %v3292 = vrot.slane %v3279, %v3291
    %v3293 = vlaneseq
    %v3294 = vshrl.u32 %v3293, 7
    %v3295 = vsub.s32 3, %v3294
    %v3296 = vrot.slane %v3279, %v3295
    %v3333 = vunpack.c.l.b16 %v3247
    %v3334 = vunpack.c.h.b16 %v3247
    %v3335 = vunpack.c.l.b16 %v3248
    %v3336 = vunpack.c.h.b16 %v3248
    %v3337 = vunpack.c.l.b16 %v3249
    %v3338 = vunpack.c.h.b16 %v3249
    %v3339 = vunpack.c.l.b16 %v3250
    %v3340 = vunpack.c.h.b16 %v3250
    %v3341 = vunpack.c.l.b16 %v3251
    %v3342 = vunpack.c.h.b16 %v3251
    %v3343 = vunpack.c.l.b16 %v3252
    %v3344 = vunpack.c.h.b16 %v3252
    %v3345 = vunpack.c.l.b16 %v3253
    %v3346 = vunpack.c.h.b16 %v3253
    %v3347 = vunpack.c.l.b16 %v3254
    %v3348 = vunpack.c.h.b16 %v3254
    %v3349 = vunpack.c.l.b16 %v3255
    %v3350 = vunpack.c.h.b16 %v3255
    %v3351 = vunpack.c.l.b16 %v3256
    %v3352 = vunpack.c.h.b16 %v3256
    %v3353 = vunpack.c.l.b16 %v3257
    %v3354 = vunpack.c.h.b16 %v3257
    %v3355 = vunpack.c.l.b16 %v3258
    %v3356 = vunpack.c.h.b16 %v3258
    %v3357 = vunpack.c.l.b16 %v3259
    %v3358 = vunpack.c.h.b16 %v3259
    %v3359 = vunpack.c.l.b16 %v3260
    %v3360 = vunpack.c.h.b16 %v3260
    %v3361 = vunpack.c.l.b16 %v3261
    %v3362 = vunpack.c.h.b16 %v3261
    %v3363 = vunpack.c.l.b16 %v3262
    %v3364 = vunpack.c.h.b16 %v3262
    %v3365 = vunpack.c.l.b16 %v3263
    %v3366 = vunpack.c.h.b16 %v3263
    %v3367 = vunpack.c.l.b16 %v3264
    %v3368 = vunpack.c.h.b16 %v3264
    %v3369 = vunpack.c.l.b16 %v3265
    %v3370 = vunpack.c.h.b16 %v3265
    %v3371 = vunpack.c.l.b16 %v3266
    %v3372 = vunpack.c.h.b16 %v3266
    %v3373 = vunpack.c.l.b16 %v3267
    %v3374 = vunpack.c.h.b16 %v3267
    %v3375 = vunpack.c.l.b16 %v3268
    %v3376 = vunpack.c.h.b16 %v3268
    %v3377 = vunpack.c.l.b16 %v3269
    %v3378 = vunpack.c.h.b16 %v3269
    %v3379 = vunpack.c.l.b16 %v3270
    %v3380 = vunpack.c.h.b16 %v3270
    %v3381 = vunpack.c.l.b16 %v3271
    %v3382 = vunpack.c.h.b16 %v3271
    %v3383 = vunpack.c.l.b16 %v3272
    %v3384 = vunpack.c.h.b16 %v3272
    %v3385 = vunpack.c.l.b16 %v3273
    %v3386 = vunpack.c.h.b16 %v3273
    %v3387 = vunpack.c.l.b16 %v3274
    %v3388 = vunpack.c.h.b16 %v3274
    %v3389 = vunpack.c.l.b16 %v3275
    %v3390 = vunpack.c.h.b16 %v3275
    %v3391 = vunpack.c.l.b16 %v3276
    %v3392 = vunpack.c.h.b16 %v3276
    %v3393 = vunpack.c.l.b16 %v3277
    %v3394 = vunpack.c.h.b16 %v3277
    %v3395 = vunpack.c.l.b16 %v3278
    %v3396 = vunpack.c.h.b16 %v3278
    %v3397 = vpack.c.b16 %v3337, %v3333
    %v3398 = vpack.c.b16 %v3338, %v3334
    %v3399 = vpack.c.b16 %v3339, %v3335
    %v3400 = vpack.c.b16 %v3340, %v3336
    %v3401 = vpack.c.b16 %v3345, %v3341
    %v3402 = vpack.c.b16 %v3346, %v3342
    %v3403 = vpack.c.b16 %v3347, %v3343
    %v3404 = vpack.c.b16 %v3348, %v3344
    %v3405 = vpack.c.b16 %v3353, %v3349
    %v3406 = vpack.c.b16 %v3354, %v3350
    %v3407 = vpack.c.b16 %v3355, %v3351
    %v3408 = vpack.c.b16 %v3356, %v3352
    %v3409 = vpack.c.b16 %v3361, %v3357
    %v3410 = vpack.c.b16 %v3362, %v3358
    %v3411 = vpack.c.b16 %v3363, %v3359
    %v3412 = vpack.c.b16 %v3364, %v3360
    %v3413 = vpack.c.b16 %v3369, %v3365
    %v3414 = vpack.c.b16 %v3370, %v3366
    %v3415 = vpack.c.b16 %v3371, %v3367
    %v3416 = vpack.c.b16 %v3372, %v3368
    %v3417 = vpack.c.b16 %v3377, %v3373
    %v3418 = vpack.c.b16 %v3378, %v3374
    %v3419 = vpack.c.b16 %v3379, %v3375
    %v3420 = vpack.c.b16 %v3380, %v3376
    %v3421 = vpack.c.b16 %v3385, %v3381
    %v3422 = vpack.c.b16 %v3386, %v3382
    %v3423 = vpack.c.b16 %v3387, %v3383
    %v3424 = vpack.c.b16 %v3388, %v3384
    %v3425 = vpack.c.b16 %v3393, %v3389
    %v3426 = vpack.c.b16 %v3394, %v3390
    %v3427 = vpack.c.b16 %v3395, %v3391
    %v3428 = vpack.c.b16 %v3396, %v3392
    %3461 = vmatprep.subr.bf16.mxu0 %v3398
    %3462 = vmatpush1.bf16.msra.mxu0 %v3397
    %3463 = vmatprep.subr.bf16.mxu0 %v3402
    %3464 = vmatpush1.bf16.msra.mxu0 %v3401
    %3465 = vmatprep.subr.bf16.mxu0 %v3406
    %3466 = vmatpush1.bf16.msra.mxu0 %v3405
    %3467 = vmatprep.subr.bf16.mxu0 %v3410
    %3468 = vmatpush1.bf16.msra.mxu0 %v3409
    %3469 = vmatprep.subr.bf16.mxu0 %v3414
    %3470 = vmatpush1.bf16.msra.mxu0 %v3413
    %3471 = vmatprep.subr.bf16.mxu0 %v3418
    %3472 = vmatpush1.bf16.msra.mxu0 %v3417
    %3473 = vmatprep.subr.bf16.mxu0 %v3422
    %3474 = vmatpush1.bf16.msra.mxu0 %v3421
    %3475 = vmatprep.subr.bf16.mxu0 %v3426
    %3476 = vmatpush1.bf16.msra.mxu0 %v3425
    %3477 = vmatprep.subr.bf16.mxu0 0
    %3478 = vmatpush1.bf16.msra.mxu0 0
    %3479 = vmatprep.subr.bf16.mxu0 0
    %3480 = vmatpush1.bf16.msra.mxu0 0
    %3481 = vmatprep.subr.bf16.mxu0 0
    %3482 = vmatpush1.bf16.msra.mxu0 0
    %3483 = vmatprep.subr.bf16.mxu0 0
    %3484 = vmatpush1.bf16.msra.mxu0 0
    %3485 = vmatprep.subr.bf16.mxu0 0
    %3486 = vmatpush1.bf16.msra.mxu0 0
    %3487 = vmatprep.subr.bf16.mxu0 0
    %3488 = vmatpush1.bf16.msra.mxu0 0
    %3489 = vmatprep.subr.bf16.mxu0 0
    %3490 = vmatpush1.bf16.msra.mxu0 0
    %3491 = vmatprep.subr.bf16.mxu0 0
    %3492 = vmatpush1.bf16.msra.mxu0 0
    %3493 = vmatprep.mubr.bf16.mxu0 0
    %3494 = vmatmul.mubr.bf16.gmra.mrb[0].mxu0 %v3239
    %v3495 = vpop.f32.mrb[0].mxu0
    %v3496 = vadd.f32 %v3284, %v3495
    %v3497 = vpop.f32.mrb[0].mxu0
    %v3498 = vadd.f32 %v3288, %v3497
    %v3499 = vpop.f32.mrb[0].mxu0
    %v3500 = vadd.f32 %v3284, %v3499
    %v3501 = vpop.f32.mrb[0].mxu0
    %v3502 = vadd.f32 %v3288, %v3501
    %3503 = vmatprep.mubr.bf16.mxu0 0
    %3504 = vmatmul.mubr.bf16.gmra.mrb[0].mxu0 %v3240
    %v3505 = vpop.f32.mrb[0].mxu0
    %v3506 = vadd.f32 %v3284, %v3505
    %v3507 = vpop.f32.mrb[0].mxu0
    %v3508 = vadd.f32 %v3288, %v3507
    %v3509 = vpop.f32.mrb[0].mxu0
    %v3510 = vadd.f32 %v3284, %v3509
    %v3511 = vpop.f32.mrb[0].mxu0
    %v3512 = vadd.f32 %v3288, %v3511
    %3513 = vmatprep.mubr.bf16.mxu0 0
    %3514 = vmatmul.mubr.bf16.gmra.mrb[0].mxu0 %v3241
    %v3515 = vpop.f32.mrb[0].mxu0
    %v3516 = vadd.f32 %v3284, %v3515
    %v3517 = vpop.f32.mrb[0].mxu0
    %v3518 = vadd.f32 %v3288, %v3517
    %v3519 = vpop.f32.mrb[0].mxu0
    %v3520 = vadd.f32 %v3284, %v3519
    %v3521 = vpop.f32.mrb[0].mxu0
    %v3522 = vadd.f32 %v3288, %v3521
    %3523 = vmatprep.mubr.bf16.mxu0 0
    %3524 = vmatmul.mubr.bf16.gmra.mrb[0].mxu0 %v3242
    %v3525 = vpop.f32.mrb[0].mxu0
    %v3526 = vadd.f32 %v3284, %v3525
    %v3527 = vpop.f32.mrb[0].mxu0
    %v3528 = vadd.f32 %v3288, %v3527
    %v3529 = vpop.f32.mrb[0].mxu0
    %v3530 = vadd.f32 %v3284, %v3529
    %v3531 = vpop.f32.mrb[0].mxu0
    %v3532 = vadd.f32 %v3288, %v3531
    %3533 = vmatprep.mubr.bf16.mxu0 0
    %3534 = vmatmul.mubr.bf16.gmra.mrb[0].mxu0 %v3243
    %v3535 = vpop.f32.mrb[0].mxu0
    %v3536 = vadd.f32 %v3284, %v3535
    %v3537 = vpop.f32.mrb[0].mxu0
    %v3538 = vadd.f32 %v3288, %v3537
    %v3539 = vpop.f32.mrb[0].mxu0
    %v3540 = vadd.f32 %v3284, %v3539
    %v3541 = vpop.f32.mrb[0].mxu0
    %v3542 = vadd.f32 %v3288, %v3541
    %3543 = vmatprep.mubr.bf16.mxu0 0
    %3544 = vmatmul.mubr.bf16.gmra.mrb[0].mxu0 %v3244
    %v3545 = vpop.f32.mrb[0].mxu0
    %v3546 = vadd.f32 %v3284, %v3545
    %v3547 = vpop.f32.mrb[0].mxu0
    %v3548 = vadd.f32 %v3288, %v3547
    %v3549 = vpop.f32.mrb[0].mxu0
    %v3550 = vadd.f32 %v3284, %v3549
    %v3551 = vpop.f32.mrb[0].mxu0
    %v3552 = vadd.f32 %v3288, %v3551
    %3553 = vmatprep.mubr.bf16.mxu0 0
    %3554 = vmatmul.mubr.bf16.gmra.mrb[0].mxu0 %v3245
    %v3555 = vpop.f32.mrb[0].mxu0
    %v3556 = vadd.f32 %v3284, %v3555
    %v3557 = vpop.f32.mrb[0].mxu0
    %v3558 = vadd.f32 %v3288, %v3557
    %v3559 = vpop.f32.mrb[0].mxu0
    %v3560 = vadd.f32 %v3284, %v3559
    %v3561 = vpop.f32.mrb[0].mxu0
    %v3562 = vadd.f32 %v3288, %v3561
    %3563 = vmatprep.mubr.bf16.mxu0 0
    %3564 = vmatmul.mubr.bf16.gmra.mrb[0].mxu0 %v3246
    %v3565 = vpop.f32.mrb[0].mxu0
    %v3566 = vadd.f32 %v3284, %v3565
    %v3567 = vpop.f32.mrb[0].mxu0
    %v3568 = vadd.f32 %v3288, %v3567
    %v3569 = vpop.f32.mrb[0].mxu0
    %v3570 = vadd.f32 %v3284, %v3569
    %v3571 = vpop.f32.mrb[0].mxu0
    %v3572 = vadd.f32 %v3288, %v3571
    %3573 = vdwg.mxu0
    %3574 = vmatprep.subr.bf16.mxu0 %v3400
    %3575 = vmatpush1.bf16.msra.mxu0 %v3399
    %3576 = vmatprep.subr.bf16.mxu0 %v3404
    %3577 = vmatpush1.bf16.msra.mxu0 %v3403
    %3578 = vmatprep.subr.bf16.mxu0 %v3408
    %3579 = vmatpush1.bf16.msra.mxu0 %v3407
    %3580 = vmatprep.subr.bf16.mxu0 %v3412
    %3581 = vmatpush1.bf16.msra.mxu0 %v3411
    %3582 = vmatprep.subr.bf16.mxu0 %v3416
    %3583 = vmatpush1.bf16.msra.mxu0 %v3415
    %3584 = vmatprep.subr.bf16.mxu0 %v3420
    %3585 = vmatpush1.bf16.msra.mxu0 %v3419
    %3586 = vmatprep.subr.bf16.mxu0 %v3424
    %3587 = vmatpush1.bf16.msra.mxu0 %v3423
    %3588 = vmatprep.subr.bf16.mxu0 %v3428
    %3589 = vmatpush1.bf16.msra.mxu0 %v3427
    %3590 = vmatprep.subr.bf16.mxu0 0
    %3591 = vmatpush1.bf16.msra.mxu0 0
    %3592 = vmatprep.subr.bf16.mxu0 0
    %3593 = vmatpush1.bf16.msra.mxu0 0
    %3594 = vmatprep.subr.bf16.mxu0 0
    %3595 = vmatpush1.bf16.msra.mxu0 0
    %3596 = vmatprep.subr.bf16.mxu0 0
    %3597 = vmatpush1.bf16.msra.mxu0 0
    %3598 = vmatprep.subr.bf16.mxu0 0
    %3599 = vmatpush1.bf16.msra.mxu0 0
    %3600 = vmatprep.subr.bf16.mxu0 0
    %3601 = vmatpush1.bf16.msra.mxu0 0
    %3602 = vmatprep.subr.bf16.mxu0 0
    %3603 = vmatpush1.bf16.msra.mxu0 0
    %3604 = vmatprep.subr.bf16.mxu0 0
    %3605 = vmatpush1.bf16.msra.mxu0 0
    %3606 = vmatprep.mubr.bf16.mxu0 0
    %3607 = vmatmul.mubr.bf16.gmra.mrb[0].mxu0 %v3239
    %v3608 = vpop.f32.mrb[0].mxu0
    %v3609 = vadd.f32 %v3292, %v3608
    %v3610 = vpop.f32.mrb[0].mxu0
    %v3611 = vadd.f32 %v3296, %v3610
    %v3612 = vpop.f32.mrb[0].mxu0
    %v3613 = vadd.f32 %v3292, %v3612
    %v3614 = vpop.f32.mrb[0].mxu0
    %v3615 = vadd.f32 %v3296, %v3614
    %3616 = vmatprep.mubr.bf16.mxu0 0
    %3617 = vmatmul.mubr.bf16.gmra.mrb[0].mxu0 %v3240
    %v3618 = vpop.f32.mrb[0].mxu0
    %v3619 = vadd.f32 %v3292, %v3618
    %v3620 = vpop.f32.mrb[0].mxu0
    %v3621 = vadd.f32 %v3296, %v3620
    %v3622 = vpop.f32.mrb[0].mxu0
    %v3623 = vadd.f32 %v3292, %v3622
    %v3624 = vpop.f32.mrb[0].mxu0
    %v3625 = vadd.f32 %v3296, %v3624
    %3626 = vmatprep.mubr.bf16.mxu0 0
    %3627 = vmatmul.mubr.bf16.gmra.mrb[0].mxu0 %v3241
    %v3628 = vpop.f32.mrb[0].mxu0
    %v3629 = vadd.f32 %v3292, %v3628
    %v3630 = vpop.f32.mrb[0].mxu0
    %v3631 = vadd.f32 %v3296, %v3630
    %v3632 = vpop.f32.mrb[0].mxu0
    %v3633 = vadd.f32 %v3292, %v3632
    %v3634 = vpop.f32.mrb[0].mxu0
    %v3635 = vadd.f32 %v3296, %v3634
    %3636 = vmatprep.mubr.bf16.mxu0 0
    %3637 = vmatmul.mubr.bf16.gmra.mrb[0].mxu0 %v3242
    %v3638 = vpop.f32.mrb[0].mxu0
    %v3639 = vadd.f32 %v3292, %v3638
    %v3640 = vpop.f32.mrb[0].mxu0
    %v3641 = vadd.f32 %v3296, %v3640
    %v3642 = vpop.f32.mrb[0].mxu0
    %v3643 = vadd.f32 %v3292, %v3642
    %v3644 = vpop.f32.mrb[0].mxu0
    %v3645 = vadd.f32 %v3296, %v3644
    %3646 = vmatprep.mubr.bf16.mxu0 0
    %3647 = vmatmul.mubr.bf16.gmra.mrb[0].mxu0 %v3243
    %v3648 = vpop.f32.mrb[0].mxu0
    %v3649 = vadd.f32 %v3292, %v3648
    %v3650 = vpop.f32.mrb[0].mxu0
    %v3651 = vadd.f32 %v3296, %v3650
    %v3652 = vpop.f32.mrb[0].mxu0
    %v3653 = vadd.f32 %v3292, %v3652
    %v3654 = vpop.f32.mrb[0].mxu0
    %v3655 = vadd.f32 %v3296, %v3654
    %3656 = vmatprep.mubr.bf16.mxu0 0
    %3657 = vmatmul.mubr.bf16.gmra.mrb[0].mxu0 %v3244
    %v3658 = vpop.f32.mrb[0].mxu0
    %v3659 = vadd.f32 %v3292, %v3658
    %v3660 = vpop.f32.mrb[0].mxu0
    %v3661 = vadd.f32 %v3296, %v3660
    %v3662 = vpop.f32.mrb[0].mxu0
    %v3663 = vadd.f32 %v3292, %v3662
    %v3664 = vpop.f32.mrb[0].mxu0
    %v3665 = vadd.f32 %v3296, %v3664
    %3666 = vmatprep.mubr.bf16.mxu0 0
    %3667 = vmatmul.mubr.bf16.gmra.mrb[0].mxu0 %v3245
    %v3668 = vpop.f32.mrb[0].mxu0
    %v3669 = vadd.f32 %v3292, %v3668
    %v3670 = vpop.f32.mrb[0].mxu0
    %v3671 = vadd.f32 %v3296, %v3670
    %v3672 = vpop.f32.mrb[0].mxu0
    %v3673 = vadd.f32 %v3292, %v3672
    %v3674 = vpop.f32.mrb[0].mxu0
    %v3675 = vadd.f32 %v3296, %v3674
    %3676 = vmatprep.mubr.bf16.mxu0 0
    %3677 = vmatmul.mubr.bf16.gmra.mrb[0].mxu0 %v3246
    %v3678 = vpop.f32.mrb[0].mxu0
    %v3679 = vadd.f32 %v3292, %v3678
    %v3680 = vpop.f32.mrb[0].mxu0
    %v3681 = vadd.f32 %v3296, %v3680
    %v3682 = vpop.f32.mrb[0].mxu0
    %v3683 = vadd.f32 %v3292, %v3682
    %v3684 = vpop.f32.mrb[0].mxu0
    %v3685 = vadd.f32 %v3296, %v3684
    %3686 = vdwg.mxu0
    %v3687 = vmax.f32 %v3496, 0.0
    %v3688 = vmax.f32 %v3498, 0.0
    %v3689 = vmax.f32 %v3609, 0.0
    %v3690 = vmax.f32 %v3611, 0.0
    %v3691 = vmax.f32 %v3500, 0.0
    %v3692 = vmax.f32 %v3502, 0.0
    %v3693 = vmax.f32 %v3613, 0.0
    %v3694 = vmax.f32 %v3615, 0.0
    %v3695 = vmax.f32 %v3506, 0.0
    %v3696 = vmax.f32 %v3508, 0.0
    %v3697 = vmax.f32 %v3619, 0.0
    %v3698 = vmax.f32 %v3621, 0.0
    %v3699 = vmax.f32 %v3510, 0.0
    %v3700 = vmax.f32 %v3512, 0.0
    %v3701 = vmax.f32 %v3623, 0.0
    %v3702 = vmax.f32 %v3625, 0.0
    %v3703 = vmax.f32 %v3516, 0.0
    %v3704 = vmax.f32 %v3518, 0.0
    %v3705 = vmax.f32 %v3629, 0.0
    %v3706 = vmax.f32 %v3631, 0.0
    %v3707 = vmax.f32 %v3520, 0.0
    %v3708 = vmax.f32 %v3522, 0.0
    %v3709 = vmax.f32 %v3633, 0.0
    %v3710 = vmax.f32 %v3635, 0.0
    %v3711 = vmax.f32 %v3526, 0.0
    %v3712 = vmax.f32 %v3528, 0.0
    %v3713 = vmax.f32 %v3639, 0.0
    %v3714 = vmax.f32 %v3641, 0.0
    %v3715 = vmax.f32 %v3530, 0.0
    %v3716 = vmax.f32 %v3532, 0.0
    %v3717 = vmax.f32 %v3643, 0.0
    %v3718 = vmax.f32 %v3645, 0.0
    %v3719 = vmax.f32 %v3536, 0.0
    %v3720 = vmax.f32 %v3538, 0.0
    %v3721 = vmax.f32 %v3649, 0.0
    %v3722 = vmax.f32 %v3651, 0.0
    %v3723 = vmax.f32 %v3540, 0.0
    %v3724 = vmax.f32 %v3542, 0.0
    %v3725 = vmax.f32 %v3653, 0.0
    %v3726 = vmax.f32 %v3655, 0.0
    %v3727 = vmax.f32 %v3546, 0.0
    %v3728 = vmax.f32 %v3548, 0.0
    %v3729 = vmax.f32 %v3659, 0.0
    %v3730 = vmax.f32 %v3661, 0.0
    %v3731 = vmax.f32 %v3550, 0.0
    %v3732 = vmax.f32 %v3552, 0.0
    %v3733 = vmax.f32 %v3663, 0.0
    %v3734 = vmax.f32 %v3665, 0.0
    %v3735 = vmax.f32 %v3556, 0.0
    %v3736 = vmax.f32 %v3558, 0.0
    %v3737 = vmax.f32 %v3669, 0.0
    %v3738 = vmax.f32 %v3671, 0.0
    %v3739 = vmax.f32 %v3560, 0.0
    %v3740 = vmax.f32 %v3562, 0.0
    %v3741 = vmax.f32 %v3673, 0.0
    %v3742 = vmax.f32 %v3675, 0.0
    %v3743 = vmax.f32 %v3566, 0.0
    %v3744 = vmax.f32 %v3568, 0.0
    %v3745 = vmax.f32 %v3679, 0.0
    %v3746 = vmax.f32 %v3681, 0.0
    %v3747 = vmax.f32 %v3570, 0.0
    %v3748 = vmax.f32 %v3572, 0.0
    %v3749 = vmax.f32 %v3683, 0.0
    %v3750 = vmax.f32 %v3685, 0.0
    %v3751 = vpack.c.bf16 %v3691, %v3687
    %v3752 = vpack.c.bf16 %v3692, %v3688
    %v3753 = vpack.c.bf16 %v3693, %v3689
    %v3754 = vpack.c.bf16 %v3694, %v3690
    %v3755 = vpack.c.bf16 %v3699, %v3695
    %v3756 = vpack.c.bf16 %v3700, %v3696
    %v3757 = vpack.c.bf16 %v3701, %v3697
    %v3758 = vpack.c.bf16 %v3702, %v3698
    %v3759 = vpack.c.bf16 %v3707, %v3703
    %v3760 = vpack.c.bf16 %v3708, %v3704
    %v3761 = vpack.c.bf16 %v3709, %v3705
    %v3762 = vpack.c.bf16 %v3710, %v3706
    %v3763 = vpack.c.bf16 %v3715, %v3711
    %v3764 = vpack.c.bf16 %v3716, %v3712
    %v3765 = vpack.c.bf16 %v3717, %v3713
    %v3766 = vpack.c.bf16 %v3718, %v3714
    %v3767 = vpack.c.bf16 %v3723, %v3719
    %v3768 = vpack.c.bf16 %v3724, %v3720
    %v3769 = vpack.c.bf16 %v3725, %v3721
    %v3770 = vpack.c.bf16 %v3726, %v3722
    %v3771 = vpack.c.bf16 %v3731, %v3727
    %v3772 = vpack.c.bf16 %v3732, %v3728
    %v3773 = vpack.c.bf16 %v3733, %v3729
    %v3774 = vpack.c.bf16 %v3734, %v3730
    %v3775 = vpack.c.bf16 %v3739, %v3735
    %v3776 = vpack.c.bf16 %v3740, %v3736
    %v3777 = vpack.c.bf16 %v3741, %v3737
    %v3778 = vpack.c.bf16 %v3742, %v3738
    %v3779 = vpack.c.bf16 %v3747, %v3743
    %v3780 = vpack.c.bf16 %v3748, %v3744
    %v3781 = vpack.c.bf16 %v3749, %v3745
    %v3782 = vpack.c.bf16 %v3750, %v3746
    %v3783 = vld [vmem:[%s8] sm:$0xff]
    %v3784 = vld [vmem:[%s8 + $0x8] sm:$0xff]
    %v3785 = vld [vmem:[%s8 + $0x10] sm:$0xff]
    %v3786 = vld [vmem:[%s8 + $0x18] sm:$0xf]
    %v3787 = vld [vmem:[%s8 + $0x1c] sm:$0xff]
    %v3788 = vld [vmem:[%s8 + $0x24] sm:$0xff]
    %v3789 = vld [vmem:[%s8 + $0x2c] sm:$0xff]
    %v3790 = vld [vmem:[%s8 + $0x34] sm:$0xf]
    %v3791 = vld [vmem:[%s8 + $0x38] sm:$0xff]
    %v3792 = vld [vmem:[%s8 + $0x40] sm:$0xff]
    %v3793 = vld [vmem:[%s8 + $0x48] sm:$0xff]
    %v3794 = vld [vmem:[%s8 + $0x50] sm:$0xf]
    %v3795 = vld [vmem:[%s8 + $0x54] sm:$0xff]
    %v3796 = vld [vmem:[%s8 + $0x5c] sm:$0xff]
    %v3797 = vld [vmem:[%s8 + $0x64] sm:$0xff]
    %v3798 = vld [vmem:[%s8 + $0x6c] sm:$0xf]
    %v3799 = vld [vmem:[%s8 + $0x70] sm:$0xff]
    %v3800 = vld [vmem:[%s8 + $0x78] sm:$0xff]
    %v3801 = vld [vmem:[%s8 + $0x80] sm:$0xff]
    %v3802 = vld [vmem:[%s8 + $0x88] sm:$0xf]
    %v3803 = vld [vmem:[%s8 + $0x8c] sm:$0xff]
    %v3804 = vld [vmem:[%s8 + $0x94] sm:$0xff]
    %v3805 = vld [vmem:[%s8 + $0x9c] sm:$0xff]
    %v3806 = vld [vmem:[%s8 + $0xa4] sm:$0xf]
    %v3807 = vld [vmem:[%s8 + $0xa8] sm:$0xff]
    %v3808 = vld [vmem:[%s8 + $0xb0] sm:$0xff]
    %v3809 = vld [vmem:[%s8 + $0xb8] sm:$0xff]
    %v3810 = vld [vmem:[%s8 + $0xc0] sm:$0xf]
    %v3811 = vld [vmem:[%s8 + $0xc4] sm:$0xff]
    %v3812 = vld [vmem:[%s8 + $0xcc] sm:$0xff]
    %v3813 = vld [vmem:[%s8 + $0xd4] sm:$0xff]
    %v3814 = vld [vmem:[%s8 + $0xdc] sm:$0xf]
    %v3815 = vld [vmem:[%s8 + $0xe0] sm:$0xff]
    %v3816 = vld [vmem:[%s8 + $0xe8] sm:$0xff]
    %v3817 = vld [vmem:[%s8 + $0xf0] sm:$0xff]
    %v3818 = vld [vmem:[%s8 + $0xf8] sm:$0xf]
    %v3819 = vld [vmem:[%s8 + $0xfc] sm:$0xff]
    %v3820 = vld [vmem:[%s8 + $0x104] sm:$0xff]
    %v3821 = vld [vmem:[%s8 + $0x10c] sm:$0xff]
    %v3822 = vld [vmem:[%s8 + $0x114] sm:$0xf]
    %v3823 = vld [vmem:[%s8 + $0x118] sm:$0xff]
    %v3824 = vld [vmem:[%s8 + $0x120] sm:$0xff]
    %v3825 = vld [vmem:[%s8 + $0x128] sm:$0xff]
    %v3826 = vld [vmem:[%s8 + $0x130] sm:$0xf]
    %v3827 = vld [vmem:[%s8 + $0x134] sm:$0xff]
    %v3828 = vld [vmem:[%s8 + $0x13c] sm:$0xff]
    %v3829 = vld [vmem:[%s8 + $0x144] sm:$0xff]
    %v3830 = vld [vmem:[%s8 + $0x14c] sm:$0xf]
    %v3831 = vld [vmem:[%s8 + $0x150] sm:$0xff]
    %v3832 = vld [vmem:[%s8 + $0x158] sm:$0xff]
    %v3833 = vld [vmem:[%s8 + $0x160] sm:$0xff]
    %v3834 = vld [vmem:[%s8 + $0x168] sm:$0xf]
    %v3835 = vld [vmem:[%s8 + $0x16c] sm:$0xff]
    %v3836 = vld [vmem:[%s8 + $0x174] sm:$0xff]
    %v3837 = vld [vmem:[%s8 + $0x17c] sm:$0xff]
    %v3838 = vld [vmem:[%s8 + $0x184] sm:$0xf]
    %v3839 = vld [vmem:[%s8 + $0x188] sm:$0xff]
    %v3840 = vld [vmem:[%s8 + $0x190] sm:$0xff]
    %v3841 = vld [vmem:[%s8 + $0x198] sm:$0xff]
    %v3842 = vld [vmem:[%s8 + $0x1a0] sm:$0xf]
    %v3843 = vld [vmem:[%s8 + $0x1a4] sm:$0xff]
    %v3844 = vld [vmem:[%s8 + $0x1ac] sm:$0xff]
    %v3845 = vld [vmem:[%s8 + $0x1b4] sm:$0xff]
    %v3846 = vld [vmem:[%s8 + $0x1bc] sm:$0xf]
    %v3847 = vld [vmem:[%s8 + $0x1c0] sm:$0xff]
    %v3848 = vld [vmem:[%s8 + $0x1c8] sm:$0xff]
    %v3849 = vld [vmem:[%s8 + $0x1d0] sm:$0xff]
    %v3850 = vld [vmem:[%s8 + $0x1d8] sm:$0xf]
    %v3851 = vld [vmem:[%s8 + $0x1dc] sm:$0xff]
    %v3852 = vld [vmem:[%s8 + $0x1e4] sm:$0xff]
    %v3853 = vld [vmem:[%s8 + $0x1ec] sm:$0xff]
    %v3854 = vld [vmem:[%s8 + $0x1f4] sm:$0xf]
    %v3855 = vld [vmem:[%s8 + $0x1f8] sm:$0xff]
    %v3856 = vld [vmem:[%s8 + $0x200] sm:$0xff]
    %v3857 = vld [vmem:[%s8 + $0x208] sm:$0xff]
    %v3858 = vld [vmem:[%s8 + $0x210] sm:$0xf]
    %v3859 = vld [vmem:[%s8 + $0x214] sm:$0xff]
    %v3860 = vld [vmem:[%s8 + $0x21c] sm:$0xff]
    %v3861 = vld [vmem:[%s8 + $0x224] sm:$0xff]
    %v3862 = vld [vmem:[%s8 + $0x22c] sm:$0xf]
    %v3863 = vld [vmem:[%s8 + $0x230] sm:$0xff]
    %v3864 = vld [vmem:[%s8 + $0x238] sm:$0xff]
    %v3865 = vld [vmem:[%s8 + $0x240] sm:$0xff]
    %v3866 = vld [vmem:[%s8 + $0x248] sm:$0xf]
    %v3867 = vld [vmem:[%s8 + $0x24c] sm:$0xff]
    %v3868 = vld [vmem:[%s8 + $0x254] sm:$0xff]
    %v3869 = vld [vmem:[%s8 + $0x25c] sm:$0xff]
    %v3870 = vld [vmem:[%s8 + $0x264] sm:$0xf]
    %v3871 = vld [vmem:[%s8 + $0x268] sm:$0xff]
    %v3872 = vld [vmem:[%s8 + $0x270] sm:$0xff]
    %v3873 = vld [vmem:[%s8 + $0x278] sm:$0xff]
    %v3874 = vld [vmem:[%s8 + $0x280] sm:$0xf]
    %v3875 = vld [vmem:[%s8 + $0x284] sm:$0xff]
    %v3876 = vld [vmem:[%s8 + $0x28c] sm:$0xff]
    %v3877 = vld [vmem:[%s8 + $0x294] sm:$0xff]
    %v3878 = vld [vmem:[%s8 + $0x29c] sm:$0xf]
    %v3879 = vld [vmem:[%s8 + $0x2a0] sm:$0xff]
    %v3880 = vld [vmem:[%s8 + $0x2a8] sm:$0xff]
    %v3881 = vld [vmem:[%s8 + $0x2b0] sm:$0xff]
    %v3882 = vld [vmem:[%s8 + $0x2b8] sm:$0xf]
    %v3883 = vld [vmem:[%s8 + $0x2bc] sm:$0xff]
    %v3884 = vld [vmem:[%s8 + $0x2c4] sm:$0xff]
    %v3885 = vld [vmem:[%s8 + $0x2cc] sm:$0xff]
    %v3886 = vld [vmem:[%s8 + $0x2d4] sm:$0xf]
    %v3887 = vld [vmem:[%s8 + $0x2d8] sm:$0xff]
    %v3888 = vld [vmem:[%s8 + $0x2e0] sm:$0xff]
    %v3889 = vld [vmem:[%s8 + $0x2e8] sm:$0xff]
    %v3890 = vld [vmem:[%s8 + $0x2f0] sm:$0xf]
    %v3891 = vld [vmem:[%s8 + $0x2f4] sm:$0xff]
    %v3892 = vld [vmem:[%s8 + $0x2fc] sm:$0xff]
    %v3893 = vld [vmem:[%s8 + $0x304] sm:$0xff]
    %v3894 = vld [vmem:[%s8 + $0x30c] sm:$0xf]
    %v3895 = vld [vmem:[%s8 + $0x310] sm:$0xff]
    %v3896 = vld [vmem:[%s8 + $0x318] sm:$0xff]
    %v3897 = vld [vmem:[%s8 + $0x320] sm:$0xff]
    %v3898 = vld [vmem:[%s8 + $0x328] sm:$0xf]
    %v3899 = vld [vmem:[%s8 + $0x32c] sm:$0xff]
    %v3900 = vld [vmem:[%s8 + $0x334] sm:$0xff]
    %v3901 = vld [vmem:[%s8 + $0x33c] sm:$0xff]
    %v3902 = vld [vmem:[%s8 + $0x344] sm:$0xf]
    %v3903 = vld [vmem:[%s8 + $0x348] sm:$0xff]
    %v3904 = vld [vmem:[%s8 + $0x350] sm:$0xff]
    %v3905 = vld [vmem:[%s8 + $0x358] sm:$0xff]
    %v3906 = vld [vmem:[%s8 + $0x360] sm:$0xf]
    %v3907 = vld [vmem:[%s8 + $0x364] sm:$0xff]
    %v3908 = vld [vmem:[%s8 + $0x36c] sm:$0xff]
    %v3909 = vld [vmem:[%s8 + $0x374] sm:$0xff]
    %v3910 = vld [vmem:[%s8 + $0x37c] sm:$0xf]
    %v3911 = vld [vmem:[%s8 + $0x380] sm:$0xff]
    %v3912 = vld [vmem:[%s8 + $0x388] sm:$0xff]
    %v3913 = vld [vmem:[%s8 + $0x390] sm:$0xff]
    %v3914 = vld [vmem:[%s8 + $0x398] sm:$0xf]
    %v3915 = vld [vmem:[%s8 + $0x39c] sm:$0xff]
    %v3916 = vld [vmem:[%s8 + $0x3a4] sm:$0xff]
    %v3917 = vld [vmem:[%s8 + $0x3ac] sm:$0xff]
    %v3918 = vld [vmem:[%s8 + $0x3b4] sm:$0xf]
    %v3919 = vld [vmem:[%s8 + $0x3b8] sm:$0xff]
    %v3920 = vld [vmem:[%s8 + $0x3c0] sm:$0xff]
    %v3921 = vld [vmem:[%s8 + $0x3c8] sm:$0xff]
    %v3922 = vld [vmem:[%s8 + $0x3d0] sm:$0xf]
    %v3923 = vld [vmem:[%s8 + $0x3d4] sm:$0xff]
    %v3924 = vld [vmem:[%s8 + $0x3dc] sm:$0xff]
    %v3925 = vld [vmem:[%s8 + $0x3e4] sm:$0xff]
    %v3926 = vld [vmem:[%s8 + $0x3ec] sm:$0xf]
    %v3927 = vld [vmem:[%s8 + $0x3f0] sm:$0xff]
    %v3928 = vld [vmem:[%s8 + $0x3f8] sm:$0xff]
    %v3929 = vld [vmem:[%s8 + $0x400] sm:$0xff]
    %v3930 = vld [vmem:[%s8 + $0x408] sm:$0xf]
    %v3931 = vld [vmem:[%s8 + $0x40c] sm:$0xff]
    %v3932 = vld [vmem:[%s8 + $0x414] sm:$0xff]
    %v3933 = vld [vmem:[%s8 + $0x41c] sm:$0xff]
    %v3934 = vld [vmem:[%s8 + $0x424] sm:$0xf]
    %v3935 = vld [vmem:[%s8 + $0x428] sm:$0xff]
    %v3936 = vld [vmem:[%s8 + $0x430] sm:$0xff]
    %v3937 = vld [vmem:[%s8 + $0x438] sm:$0xff]
    %v3938 = vld [vmem:[%s8 + $0x440] sm:$0xf]
    %v3939 = vld [vmem:[%s8 + $0x444] sm:$0xff]
    %v3940 = vld [vmem:[%s8 + $0x44c] sm:$0xff]
    %v3941 = vld [vmem:[%s8 + $0x454] sm:$0xff]
    %v3942 = vld [vmem:[%s8 + $0x45c] sm:$0xf]
    %v3943 = vld [vmem:[%s8 + $0x460] sm:$0xff]
    %v3944 = vld [vmem:[%s8 + $0x468] sm:$0xff]
    %v3945 = vld [vmem:[%s8 + $0x470] sm:$0xff]
    %v3946 = vld [vmem:[%s8 + $0x478] sm:$0xf]
    %v3947 = vld [vmem:[%s8 + $0x47c] sm:$0xff]
    %v3948 = vld [vmem:[%s8 + $0x484] sm:$0xff]
    %v3949 = vld [vmem:[%s8 + $0x48c] sm:$0xff]
    %v3950 = vld [vmem:[%s8 + $0x494] sm:$0xf]
    %v3951 = vld [vmem:[%s8 + $0x498] sm:$0xff]
    %v3952 = vld [vmem:[%s8 + $0x4a0] sm:$0xff]
    %v3953 = vld [vmem:[%s8 + $0x4a8] sm:$0xff]
    %v3954 = vld [vmem:[%s8 + $0x4b0] sm:$0xf]
    %v3955 = vld [vmem:[%s8 + $0x4b4] sm:$0xff]
    %v3956 = vld [vmem:[%s8 + $0x4bc] sm:$0xff]
    %v3957 = vld [vmem:[%s8 + $0x4c4] sm:$0xff]
    %v3958 = vld [vmem:[%s8 + $0x4cc] sm:$0xf]
    %v3959 = vld [vmem:[%s8 + $0x4d0] sm:$0xff]
    %v3960 = vld [vmem:[%s8 + $0x4d8] sm:$0xff]
    %v3961 = vld [vmem:[%s8 + $0x4e0] sm:$0xff]
    %v3962 = vld [vmem:[%s8 + $0x4e8] sm:$0xf]
    %v3963 = vld [vmem:[%s8 + $0x4ec] sm:$0xff]
    %v3964 = vld [vmem:[%s8 + $0x4f4] sm:$0xff]
    %v3965 = vld [vmem:[%s8 + $0x4fc] sm:$0xff]
    %v3966 = vld [vmem:[%s8 + $0x504] sm:$0xf]
    %v3967 = vld [vmem:[%s8 + $0x508] sm:$0xff]
    %v3968 = vld [vmem:[%s8 + $0x510] sm:$0xff]
    %v3969 = vld [vmem:[%s8 + $0x518] sm:$0xff]
    %v3970 = vld [vmem:[%s8 + $0x520] sm:$0xf]
    %v3971 = vld [vmem:[%s8 + $0x524] sm:$0xff]
    %v3972 = vld [vmem:[%s8 + $0x52c] sm:$0xff]
    %v3973 = vld [vmem:[%s8 + $0x534] sm:$0xff]
    %v3974 = vld [vmem:[%s8 + $0x53c] sm:$0xf]
    %v3975 = vld [vmem:[%s8 + $0x540] sm:$0xff]
    %v3976 = vld [vmem:[%s8 + $0x548] sm:$0xff]
    %v3977 = vld [vmem:[%s8 + $0x550] sm:$0xff]
    %v3978 = vld [vmem:[%s8 + $0x558] sm:$0xf]
    %v3979 = vld [vmem:[%s8 + $0x55c] sm:$0xff]
    %v3980 = vld [vmem:[%s8 + $0x564] sm:$0xff]
    %v3981 = vld [vmem:[%s8 + $0x56c] sm:$0xff]
    %v3982 = vld [vmem:[%s8 + $0x574] sm:$0xf]
    %v3983 = vld [vmem:[%s8 + $0x578] sm:$0xff]
    %v3984 = vld [vmem:[%s8 + $0x580] sm:$0xff]
    %v3985 = vld [vmem:[%s8 + $0x588] sm:$0xff]
    %v3986 = vld [vmem:[%s8 + $0x590] sm:$0xf]
    %v3987 = vld [vmem:[%s8 + $0x594] sm:$0xff]
    %v3988 = vld [vmem:[%s8 + $0x59c] sm:$0xff]
    %v3989 = vld [vmem:[%s8 + $0x5a4] sm:$0xff]
    %v3990 = vld [vmem:[%s8 + $0x5ac] sm:$0xf]
    %v3991 = vld [vmem:[%s8 + $0x5b0] sm:$0xff]
    %v3992 = vld [vmem:[%s8 + $0x5b8] sm:$0xff]
    %v3993 = vld [vmem:[%s8 + $0x5c0] sm:$0xff]
    %v3994 = vld [vmem:[%s8 + $0x5c8] sm:$0xf]
    %v3995 = vld [vmem:[%s8 + $0x5cc] sm:$0xff]
    %v3996 = vld [vmem:[%s8 + $0x5d4] sm:$0xff]
    %v3997 = vld [vmem:[%s8 + $0x5dc] sm:$0xff]
    %v3998 = vld [vmem:[%s8 + $0x5e4] sm:$0xf]
    %v3999 = vld [vmem:[%s8 + $0x5e8] sm:$0xff]
    %v4000 = vld [vmem:[%s8 + $0x5f0] sm:$0xff]
    %v4001 = vld [vmem:[%s8 + $0x5f8] sm:$0xff]
    %v4002 = vld [vmem:[%s8 + $0x600] sm:$0xf]
    %v4003 = vld [vmem:[%s8 + $0x604] sm:$0xff]
    %v4004 = vld [vmem:[%s8 + $0x60c] sm:$0xff]
    %v4005 = vld [vmem:[%s8 + $0x614] sm:$0xff]
    %v4006 = vld [vmem:[%s8 + $0x61c] sm:$0xf]
    %v4007 = vld [vmem:[%s8 + $0x620] sm:$0xff]
    %v4008 = vld [vmem:[%s8 + $0x628] sm:$0xff]
    %v4009 = vld [vmem:[%s8 + $0x630] sm:$0xff]
    %v4010 = vld [vmem:[%s8 + $0x638] sm:$0xf]
    %v4011 = vld [vmem:[%s8 + $0x63c] sm:$0xff]
    %v4012 = vld [vmem:[%s8 + $0x644] sm:$0xff]
    %v4013 = vld [vmem:[%s8 + $0x64c] sm:$0xff]
    %v4014 = vld [vmem:[%s8 + $0x654] sm:$0xf]
    %v4015 = vld [vmem:[%s8 + $0x658] sm:$0xff]
    %v4016 = vld [vmem:[%s8 + $0x660] sm:$0xff]
    %v4017 = vld [vmem:[%s8 + $0x668] sm:$0xff]
    %v4018 = vld [vmem:[%s8 + $0x670] sm:$0xf]
    %v4019 = vld [vmem:[%s8 + $0x674] sm:$0xff]
    %v4020 = vld [vmem:[%s8 + $0x67c] sm:$0xff]
    %v4021 = vld [vmem:[%s8 + $0x684] sm:$0xff]
    %v4022 = vld [vmem:[%s8 + $0x68c] sm:$0xf]
    %v4023 = vld [vmem:[%s8 + $0x690] sm:$0xff]
    %v4024 = vld [vmem:[%s8 + $0x698] sm:$0xff]
    %v4025 = vld [vmem:[%s8 + $0x6a0] sm:$0xff]
    %v4026 = vld [vmem:[%s8 + $0x6a8] sm:$0xf]
    %v4027 = vld [vmem:[%s8 + $0x6ac] sm:$0xff]
    %v4028 = vld [vmem:[%s8 + $0x6b4] sm:$0xff]
    %v4029 = vld [vmem:[%s8 + $0x6bc] sm:$0xff]
    %v4030 = vld [vmem:[%s8 + $0x6c4] sm:$0xf]
    %v4031 = vld [vmem:[%s8 + $0x6c8] sm:$0xff]
    %v4032 = vld [vmem:[%s8 + $0x6d0] sm:$0xff]
    %v4033 = vld [vmem:[%s8 + $0x6d8] sm:$0xff]
    %v4034 = vld [vmem:[%s8 + $0x6e0] sm:$0xf]
    %v4035 = vld [vmem:[%s8 + $0x6e4] sm:$0xff]
    %v4036 = vld [vmem:[%s8 + $0x6ec] sm:$0xff]
    %v4037 = vld [vmem:[%s8 + $0x6f4] sm:$0xff]
    %v4038 = vld [vmem:[%s8 + $0x6fc] sm:$0xf]
    %v4039 = vld [vmem:[%s9] sm:$0x7f]
    %v4041 = vlaneseq
    %v4042 = vshrl.u32 %v4041, 7
    %v4043 = vsub.s32 0, %v4042
    %v4044 = vrot.slane %v4039, %v4043
    %v4045 = vlaneseq
    %v4046 = vshrl.u32 %v4045, 7
    %v4047 = vsub.s32 1, %v4046
    %v4048 = vrot.slane %v4039, %v4047
    %v4049 = vlaneseq
    %v4050 = vshrl.u32 %v4049, 7
    %v4051 = vsub.s32 2, %v4050
    %v4052 = vrot.slane %v4039, %v4051
    %v4053 = vlaneseq
    %v4054 = vshrl.u32 %v4053, 7
    %v4055 = vsub.s32 3, %v4054
    %v4056 = vrot.slane %v4039, %v4055
    %v4057 = vlaneseq
    %v4058 = vshrl.u32 %v4057, 7
    %v4059 = vsub.s32 4, %v4058
    %v4060 = vrot.slane %v4039, %v4059
    %v4061 = vlaneseq
    %v4062 = vshrl.u32 %v4061, 7
    %v4063 = vsub.s32 5, %v4062
    %v4064 = vrot.slane %v4039, %v4063
    %v4065 = vlaneseq
    %v4066 = vshrl.u32 %v4065, 7
    %v4067 = vsub.s32 6, %v4066
    %v4068 = vrot.slane %v4039, %v4067
    %v4332 = vunpack.c.l.b16 %v3783
    %v4333 = vunpack.c.h.b16 %v3783
    %v4334 = vunpack.c.l.b16 %v3784
    %v4335 = vunpack.c.h.b16 %v3784
    %v4336 = vunpack.c.l.b16 %v3785
    %v4337 = vunpack.c.h.b16 %v3785
    %v4338 = vunpack.c.l.b16 %v3786
    %v4339 = vunpack.c.l.b16 %v3787
    %v4340 = vunpack.c.h.b16 %v3787
    %v4341 = vunpack.c.l.b16 %v3788
    %v4342 = vunpack.c.h.b16 %v3788
    %v4343 = vunpack.c.l.b16 %v3789
    %v4344 = vunpack.c.h.b16 %v3789
    %v4345 = vunpack.c.l.b16 %v3790
    %v4346 = vunpack.c.l.b16 %v3791
    %v4347 = vunpack.c.h.b16 %v3791
    %v4348 = vunpack.c.l.b16 %v3792
    %v4349 = vunpack.c.h.b16 %v3792
    %v4350 = vunpack.c.l.b16 %v3793
    %v4351 = vunpack.c.h.b16 %v3793
    %v4352 = vunpack.c.l.b16 %v3794
    %v4353 = vunpack.c.l.b16 %v3795
    %v4354 = vunpack.c.h.b16 %v3795
    %v4355 = vunpack.c.l.b16 %v3796
    %v4356 = vunpack.c.h.b16 %v3796
    %v4357 = vunpack.c.l.b16 %v3797
    %v4358 = vunpack.c.h.b16 %v3797
    %v4359 = vunpack.c.l.b16 %v3798
    %v4360 = vunpack.c.l.b16 %v3799
    %v4361 = vunpack.c.h.b16 %v3799
    %v4362 = vunpack.c.l.b16 %v3800
    %v4363 = vunpack.c.h.b16 %v3800
    %v4364 = vunpack.c.l.b16 %v3801
    %v4365 = vunpack.c.h.b16 %v3801
    %v4366 = vunpack.c.l.b16 %v3802
    %v4367 = vunpack.c.l.b16 %v3803
    %v4368 = vunpack.c.h.b16 %v3803
    %v4369 = vunpack.c.l.b16 %v3804
    %v4370 = vunpack.c.h.b16 %v3804
    %v4371 = vunpack.c.l.b16 %v3805
    %v4372 = vunpack.c.h.b16 %v3805
    %v4373 = vunpack.c.l.b16 %v3806
    %v4374 = vunpack.c.l.b16 %v3807
    %v4375 = vunpack.c.h.b16 %v3807
    %v4376 = vunpack.c.l.b16 %v3808
    %v4377 = vunpack.c.h.b16 %v3808
    %v4378 = vunpack.c.l.b16 %v3809
    %v4379 = vunpack.c.h.b16 %v3809
    %v4380 = vunpack.c.l.b16 %v3810
    %v4381 = vunpack.c.l.b16 %v3811
    %v4382 = vunpack.c.h.b16 %v3811
    %v4383 = vunpack.c.l.b16 %v3812
    %v4384 = vunpack.c.h.b16 %v3812
    %v4385 = vunpack.c.l.b16 %v3813
    %v4386 = vunpack.c.h.b16 %v3813
    %v4387 = vunpack.c.l.b16 %v3814
    %v4388 = vunpack.c.l.b16 %v3815
    %v4389 = vunpack.c.h.b16 %v3815
    %v4390 = vunpack.c.l.b16 %v3816
    %v4391 = vunpack.c.h.b16 %v3816
    %v4392 = vunpack.c.l.b16 %v3817
    %v4393 = vunpack.c.h.b16 %v3817
    %v4394 = vunpack.c.l.b16 %v3818
    %v4395 = vunpack.c.l.b16 %v3819
    %v4396 = vunpack.c.h.b16 %v3819
    %v4397 = vunpack.c.l.b16 %v3820
    %v4398 = vunpack.c.h.b16 %v3820
    %v4399 = vunpack.c.l.b16 %v3821
    %v4400 = vunpack.c.h.b16 %v3821
    %v4401 = vunpack.c.l.b16 %v3822
    %v4402 = vunpack.c.l.b16 %v3823
    %v4403 = vunpack.c.h.b16 %v3823
    %v4404 = vunpack.c.l.b16 %v3824
    %v4405 = vunpack.c.h.b16 %v3824
    %v4406 = vunpack.c.l.b16 %v3825
    %v4407 = vunpack.c.h.b16 %v3825
    %v4408 = vunpack.c.l.b16 %v3826
    %v4409 = vunpack.c.l.b16 %v3827
    %v4410 = vunpack.c.h.b16 %v3827
    %v4411 = vunpack.c.l.b16 %v3828
    %v4412 = vunpack.c.h.b16 %v3828
    %v4413 = vunpack.c.l.b16 %v3829
    %v4414 = vunpack.c.h.b16 %v3829
    %v4415 = vunpack.c.l.b16 %v3830
    %v4416 = vunpack.c.l.b16 %v3831
    %v4417 = vunpack.c.h.b16 %v3831
    %v4418 = vunpack.c.l.b16 %v3832
    %v4419 = vunpack.c.h.b16 %v3832
    %v4420 = vunpack.c.l.b16 %v3833
    %v4421 = vunpack.c.h.b16 %v3833
    %v4422 = vunpack.c.l.b16 %v3834
    %v4423 = vunpack.c.l.b16 %v3835
    %v4424 = vunpack.c.h.b16 %v3835
    %v4425 = vunpack.c.l.b16 %v3836
    %v4426 = vunpack.c.h.b16 %v3836
    %v4427 = vunpack.c.l.b16 %v3837
    %v4428 = vunpack.c.h.b16 %v3837
    %v4429 = vunpack.c.l.b16 %v3838
    %v4430 = vunpack.c.l.b16 %v3839
    %v4431 = vunpack.c.h.b16 %v3839
    %v4432 = vunpack.c.l.b16 %v3840
    %v4433 = vunpack.c.h.b16 %v3840
    %v4434 = vunpack.c.l.b16 %v3841
    %v4435 = vunpack.c.h.b16 %v3841
    %v4436 = vunpack.c.l.b16 %v3842
    %v4437 = vunpack.c.l.b16 %v3843
    %v4438 = vunpack.c.h.b16 %v3843
    %v4439 = vunpack.c.l.b16 %v3844
    %v4440 = vunpack.c.h.b16 %v3844
    %v4441 = vunpack.c.l.b16 %v3845
    %v4442 = vunpack.c.h.b16 %v3845
    %v4443 = vunpack.c.l.b16 %v3846
    %v4444 = vunpack.c.l.b16 %v3847
    %v4445 = vunpack.c.h.b16 %v3847
    %v4446 = vunpack.c.l.b16 %v3848
    %v4447 = vunpack.c.h.b16 %v3848
    %v4448 = vunpack.c.l.b16 %v3849
    %v4449 = vunpack.c.h.b16 %v3849
    %v4450 = vunpack.c.l.b16 %v3850
    %v4451 = vunpack.c.l.b16 %v3851
    %v4452 = vunpack.c.h.b16 %v3851
    %v4453 = vunpack.c.l.b16 %v3852
    %v4454 = vunpack.c.h.b16 %v3852
    %v4455 = vunpack.c.l.b16 %v3853
    %v4456 = vunpack.c.h.b16 %v3853
    %v4457 = vunpack.c.l.b16 %v3854
    %v4458 = vunpack.c.l.b16 %v3855
    %v4459 = vunpack.c.h.b16 %v3855
    %v4460 = vunpack.c.l.b16 %v3856
    %v4461 = vunpack.c.h.b16 %v3856
    %v4462 = vunpack.c.l.b16 %v3857
    %v4463 = vunpack.c.h.b16 %v3857
    %v4464 = vunpack.c.l.b16 %v3858
    %v4465 = vunpack.c.l.b16 %v3859
    %v4466 = vunpack.c.h.b16 %v3859
    %v4467 = vunpack.c.l.b16 %v3860
    %v4468 = vunpack.c.h.b16 %v3860
    %v4469 = vunpack.c.l.b16 %v3861
    %v4470 = vunpack.c.h.b16 %v3861
    %v4471 = vunpack.c.l.b16 %v3862
    %v4472 = vunpack.c.l.b16 %v3863
    %v4473 = vunpack.c.h.b16 %v3863
    %v4474 = vunpack.c.l.b16 %v3864
    %v4475 = vunpack.c.h.b16 %v3864
    %v4476 = vunpack.c.l.b16 %v3865
    %v4477 = vunpack.c.h.b16 %v3865
    %v4478 = vunpack.c.l.b16 %v3866
    %v4479 = vunpack.c.l.b16 %v3867
    %v4480 = vunpack.c.h.b16 %v3867
    %v4481 = vunpack.c.l.b16 %v3868
    %v4482 = vunpack.c.h.b16 %v3868
    %v4483 = vunpack.c.l.b16 %v3869
    %v4484 = vunpack.c.h.b16 %v3869
    %v4485 = vunpack.c.l.b16 %v3870
    %v4486 = vunpack.c.l.b16 %v3871
    %v4487 = vunpack.c.h.b16 %v3871
    %v4488 = vunpack.c.l.b16 %v3872
    %v4489 = vunpack.c.h.b16 %v3872
    %v4490 = vunpack.c.l.b16 %v3873
    %v4491 = vunpack.c.h.b16 %v3873
    %v4492 = vunpack.c.l.b16 %v3874
    %v4493 = vunpack.c.l.b16 %v3875
    %v4494 = vunpack.c.h.b16 %v3875
    %v4495 = vunpack.c.l.b16 %v3876
    %v4496 = vunpack.c.h.b16 %v3876
    %v4497 = vunpack.c.l.b16 %v3877
    %v4498 = vunpack.c.h.b16 %v3877
    %v4499 = vunpack.c.l.b16 %v3878
    %v4500 = vunpack.c.l.b16 %v3879
    %v4501 = vunpack.c.h.b16 %v3879
    %v4502 = vunpack.c.l.b16 %v3880
    %v4503 = vunpack.c.h.b16 %v3880
    %v4504 = vunpack.c.l.b16 %v3881
    %v4505 = vunpack.c.h.b16 %v3881
    %v4506 = vunpack.c.l.b16 %v3882
    %v4507 = vunpack.c.l.b16 %v3883
    %v4508 = vunpack.c.h.b16 %v3883
    %v4509 = vunpack.c.l.b16 %v3884
    %v4510 = vunpack.c.h.b16 %v3884
    %v4511 = vunpack.c.l.b16 %v3885
    %v4512 = vunpack.c.h.b16 %v3885
    %v4513 = vunpack.c.l.b16 %v3886
    %v4514 = vunpack.c.l.b16 %v3887
    %v4515 = vunpack.c.h.b16 %v3887
    %v4516 = vunpack.c.l.b16 %v3888
    %v4517 = vunpack.c.h.b16 %v3888
    %v4518 = vunpack.c.l.b16 %v3889
    %v4519 = vunpack.c.h.b16 %v3889
    %v4520 = vunpack.c.l.b16 %v3890
    %v4521 = vunpack.c.l.b16 %v3891
    %v4522 = vunpack.c.h.b16 %v3891
    %v4523 = vunpack.c.l.b16 %v3892
    %v4524 = vunpack.c.h.b16 %v3892
    %v4525 = vunpack.c.l.b16 %v3893
    %v4526 = vunpack.c.h.b16 %v3893
    %v4527 = vunpack.c.l.b16 %v3894
    %v4528 = vunpack.c.l.b16 %v3895
    %v4529 = vunpack.c.h.b16 %v3895
    %v4530 = vunpack.c.l.b16 %v3896
    %v4531 = vunpack.c.h.b16 %v3896
    %v4532 = vunpack.c.l.b16 %v3897
    %v4533 = vunpack.c.h.b16 %v3897
    %v4534 = vunpack.c.l.b16 %v3898
    %v4535 = vunpack.c.l.b16 %v3899
    %v4536 = vunpack.c.h.b16 %v3899
    %v4537 = vunpack.c.l.b16 %v3900
    %v4538 = vunpack.c.h.b16 %v3900
    %v4539 = vunpack.c.l.b16 %v3901
    %v4540 = vunpack.c.h.b16 %v3901
    %v4541 = vunpack.c.l.b16 %v3902
    %v4542 = vunpack.c.l.b16 %v3903
    %v4543 = vunpack.c.h.b16 %v3903
    %v4544 = vunpack.c.l.b16 %v3904
    %v4545 = vunpack.c.h.b16 %v3904
    %v4546 = vunpack.c.l.b16 %v3905
    %v4547 = vunpack.c.h.b16 %v3905
    %v4548 = vunpack.c.l.b16 %v3906
    %v4549 = vunpack.c.l.b16 %v3907
    %v4550 = vunpack.c.h.b16 %v3907
    %v4551 = vunpack.c.l.b16 %v3908
    %v4552 = vunpack.c.h.b16 %v3908
    %v4553 = vunpack.c.l.b16 %v3909
    %v4554 = vunpack.c.h.b16 %v3909
    %v4555 = vunpack.c.l.b16 %v3910
    %v4556 = vunpack.c.l.b16 %v3911
    %v4557 = vunpack.c.h.b16 %v3911
    %v4558 = vunpack.c.l.b16 %v3912
    %v4559 = vunpack.c.h.b16 %v3912
    %v4560 = vunpack.c.l.b16 %v3913
    %v4561 = vunpack.c.h.b16 %v3913
    %v4562 = vunpack.c.l.b16 %v3914
    %v4563 = vunpack.c.l.b16 %v3915
    %v4564 = vunpack.c.h.b16 %v3915
    %v4565 = vunpack.c.l.b16 %v3916
    %v4566 = vunpack.c.h.b16 %v3916
    %v4567 = vunpack.c.l.b16 %v3917
    %v4568 = vunpack.c.h.b16 %v3917
    %v4569 = vunpack.c.l.b16 %v3918
    %v4570 = vunpack.c.l.b16 %v3919
    %v4571 = vunpack.c.h.b16 %v3919
    %v4572 = vunpack.c.l.b16 %v3920
    %v4573 = vunpack.c.h.b16 %v3920
    %v4574 = vunpack.c.l.b16 %v3921
    %v4575 = vunpack.c.h.b16 %v3921
    %v4576 = vunpack.c.l.b16 %v3922
    %v4577 = vunpack.c.l.b16 %v3923
    %v4578 = vunpack.c.h.b16 %v3923
    %v4579 = vunpack.c.l.b16 %v3924
    %v4580 = vunpack.c.h.b16 %v3924
    %v4581 = vunpack.c.l.b16 %v3925
    %v4582 = vunpack.c.h.b16 %v3925
    %v4583 = vunpack.c.l.b16 %v3926
    %v4584 = vunpack.c.l.b16 %v3927
    %v4585 = vunpack.c.h.b16 %v3927
    %v4586 = vunpack.c.l.b16 %v3928
    %v4587 = vunpack.c.h.b16 %v3928
    %v4588 = vunpack.c.l.b16 %v3929
    %v4589 = vunpack.c.h.b16 %v3929
    %v4590 = vunpack.c.l.b16 %v3930
    %v4591 = vunpack.c.l.b16 %v3931
    %v4592 = vunpack.c.h.b16 %v3931
    %v4593 = vunpack.c.l.b16 %v3932
    %v4594 = vunpack.c.h.b16 %v3932
    %v4595 = vunpack.c.l.b16 %v3933
    %v4596 = vunpack.c.h.b16 %v3933
    %v4597 = vunpack.c.l.b16 %v3934
    %v4598 = vunpack.c.l.b16 %v3935
    %v4599 = vunpack.c.h.b16 %v3935
    %v4600 = vunpack.c.l.b16 %v3936
    %v4601 = vunpack.c.h.b16 %v3936
    %v4602 = vunpack.c.l.b16 %v3937
    %v4603 = vunpack.c.h.b16 %v3937
    %v4604 = vunpack.c.l.b16 %v3938
    %v4605 = vunpack.c.l.b16 %v3939
    %v4606 = vunpack.c.h.b16 %v3939
    %v4607 = vunpack.c.l.b16 %v3940
    %v4608 = vunpack.c.h.b16 %v3940
    %v4609 = vunpack.c.l.b16 %v3941
    %v4610 = vunpack.c.h.b16 %v3941
    %v4611 = vunpack.c.l.b16 %v3942
    %v4612 = vunpack.c.l.b16 %v3943
    %v4613 = vunpack.c.h.b16 %v3943
    %v4614 = vunpack.c.l.b16 %v3944
    %v4615 = vunpack.c.h.b16 %v3944
    %v4616 = vunpack.c.l.b16 %v3945
    %v4617 = vunpack.c.h.b16 %v3945
    %v4618 = vunpack.c.l.b16 %v3946
    %v4619 = vunpack.c.l.b16 %v3947
    %v4620 = vunpack.c.h.b16 %v3947
    %v4621 = vunpack.c.l.b16 %v3948
    %v4622 = vunpack.c.h.b16 %v3948
    %v4623 = vunpack.c.l.b16 %v3949
    %v4624 = vunpack.c.h.b16 %v3949
    %v4625 = vunpack.c.l.b16 %v3950
    %v4626 = vunpack.c.l.b16 %v3951
    %v4627 = vunpack.c.h.b16 %v3951
    %v4628 = vunpack.c.l.b16 %v3952
    %v4629 = vunpack.c.h.b16 %v3952
    %v4630 = vunpack.c.l.b16 %v3953
    %v4631 = vunpack.c.h.b16 %v3953
    %v4632 = vunpack.c.l.b16 %v3954
    %v4633 = vunpack.c.l.b16 %v3955
    %v4634 = vunpack.c.h.b16 %v3955
    %v4635 = vunpack.c.l.b16 %v3956
    %v4636 = vunpack.c.h.b16 %v3956
    %v4637 = vunpack.c.l.b16 %v3957
    %v4638 = vunpack.c.h.b16 %v3957
    %v4639 = vunpack.c.l.b16 %v3958
    %v4640 = vunpack.c.l.b16 %v3959
    %v4641 = vunpack.c.h.b16 %v3959
    %v4642 = vunpack.c.l.b16 %v3960
    %v4643 = vunpack.c.h.b16 %v3960
    %v4644 = vunpack.c.l.b16 %v3961
    %v4645 = vunpack.c.h.b16 %v3961
    %v4646 = vunpack.c.l.b16 %v3962
    %v4647 = vunpack.c.l.b16 %v3963
    %v4648 = vunpack.c.h.b16 %v3963
    %v4649 = vunpack.c.l.b16 %v3964
    %v4650 = vunpack.c.h.b16 %v3964
    %v4651 = vunpack.c.l.b16 %v3965
    %v4652 = vunpack.c.h.b16 %v3965
    %v4653 = vunpack.c.l.b16 %v3966
    %v4654 = vunpack.c.l.b16 %v3967
    %v4655 = vunpack.c.h.b16 %v3967
    %v4656 = vunpack.c.l.b16 %v3968
    %v4657 = vunpack.c.h.b16 %v3968
    %v4658 = vunpack.c.l.b16 %v3969
    %v4659 = vunpack.c.h.b16 %v3969
    %v4660 = vunpack.c.l.b16 %v3970
    %v4661 = vunpack.c.l.b16 %v3971
    %v4662 = vunpack.c.h.b16 %v3971
    %v4663 = vunpack.c.l.b16 %v3972
    %v4664 = vunpack.c.h.b16 %v3972
    %v4665 = vunpack.c.l.b16 %v3973
    %v4666 = vunpack.c.h.b16 %v3973
    %v4667 = vunpack.c.l.b16 %v3974
    %v4668 = vunpack.c.l.b16 %v3975
    %v4669 = vunpack.c.h.b16 %v3975
    %v4670 = vunpack.c.l.b16 %v3976
    %v4671 = vunpack.c.h.b16 %v3976
    %v4672 = vunpack.c.l.b16 %v3977
    %v4673 = vunpack.c.h.b16 %v3977
    %v4674 = vunpack.c.l.b16 %v3978
    %v4675 = vunpack.c.l.b16 %v3979
    %v4676 = vunpack.c.h.b16 %v3979
    %v4677 = vunpack.c.l.b16 %v3980
    %v4678 = vunpack.c.h.b16 %v3980
    %v4679 = vunpack.c.l.b16 %v3981
    %v4680 = vunpack.c.h.b16 %v3981
    %v4681 = vunpack.c.l.b16 %v3982
    %v4682 = vunpack.c.l.b16 %v3983
    %v4683 = vunpack.c.h.b16 %v3983
    %v4684 = vunpack.c.l.b16 %v3984
    %v4685 = vunpack.c.h.b16 %v3984
    %v4686 = vunpack.c.l.b16 %v3985
    %v4687 = vunpack.c.h.b16 %v3985
    %v4688 = vunpack.c.l.b16 %v3986
    %v4689 = vunpack.c.l.b16 %v3987
    %v4690 = vunpack.c.h.b16 %v3987
    %v4691 = vunpack.c.l.b16 %v3988
    %v4692 = vunpack.c.h.b16 %v3988
    %v4693 = vunpack.c.l.b16 %v3989
    %v4694 = vunpack.c.h.b16 %v3989
    %v4695 = vunpack.c.l.b16 %v3990
    %v4696 = vunpack.c.l.b16 %v3991
    %v4697 = vunpack.c.h.b16 %v3991
    %v4698 = vunpack.c.l.b16 %v3992
    %v4699 = vunpack.c.h.b16 %v3992
    %v4700 = vunpack.c.l.b16 %v3993
    %v4701 = vunpack.c.h.b16 %v3993
    %v4702 = vunpack.c.l.b16 %v3994
    %v4703 = vunpack.c.l.b16 %v3995
    %v4704 = vunpack.c.h.b16 %v3995
    %v4705 = vunpack.c.l.b16 %v3996
    %v4706 = vunpack.c.h.b16 %v3996
    %v4707 = vunpack.c.l.b16 %v3997
    %v4708 = vunpack.c.h.b16 %v3997
    %v4709 = vunpack.c.l.b16 %v3998
    %v4710 = vunpack.c.l.b16 %v3999
    %v4711 = vunpack.c.h.b16 %v3999
    %v4712 = vunpack.c.l.b16 %v4000
    %v4713 = vunpack.c.h.b16 %v4000
    %v4714 = vunpack.c.l.b16 %v4001
    %v4715 = vunpack.c.h.b16 %v4001
    %v4716 = vunpack.c.l.b16 %v4002
    %v4717 = vunpack.c.l.b16 %v4003
    %v4718 = vunpack.c.h.b16 %v4003
    %v4719 = vunpack.c.l.b16 %v4004
    %v4720 = vunpack.c.h.b16 %v4004
    %v4721 = vunpack.c.l.b16 %v4005
    %v4722 = vunpack.c.h.b16 %v4005
    %v4723 = vunpack.c.l.b16 %v4006
    %v4724 = vunpack.c.l.b16 %v4007
    %v4725 = vunpack.c.h.b16 %v4007
    %v4726 = vunpack.c.l.b16 %v4008
    %v4727 = vunpack.c.h.b16 %v4008
    %v4728 = vunpack.c.l.b16 %v4009
    %v4729 = vunpack.c.h.b16 %v4009
    %v4730 = vunpack.c.l.b16 %v4010
    %v4731 = vunpack.c.l.b16 %v4011
    %v4732 = vunpack.c.h.b16 %v4011
    %v4733 = vunpack.c.l.b16 %v4012
    %v4734 = vunpack.c.h.b16 %v4012
    %v4735 = vunpack.c.l.b16 %v4013
    %v4736 = vunpack.c.h.b16 %v4013
    %v4737 = vunpack.c.l.b16 %v4014
    %v4738 = vunpack.c.l.b16 %v4015
    %v4739 = vunpack.c.h.b16 %v4015
    %v4740 = vunpack.c.l.b16 %v4016
    %v4741 = vunpack.c.h.b16 %v4016
    %v4742 = vunpack.c.l.b16 %v4017
    %v4743 = vunpack.c.h.b16 %v4017
    %v4744 = vunpack.c.l.b16 %v4018
    %v4745 = vunpack.c.l.b16 %v4019
    %v4746 = vunpack.c.h.b16 %v4019
    %v4747 = vunpack.c.l.b16 %v4020
    %v4748 = vunpack.c.h.b16 %v4020
    %v4749 = vunpack.c.l.b16 %v4021
    %v4750 = vunpack.c.h.b16 %v4021
    %v4751 = vunpack.c.l.b16 %v4022
    %v4752 = vunpack.c.l.b16 %v4023
    %v4753 = vunpack.c.h.b16 %v4023
    %v4754 = vunpack.c.l.b16 %v4024
    %v4755 = vunpack.c.h.b16 %v4024
    %v4756 = vunpack.c.l.b16 %v4025
    %v4757 = vunpack.c.h.b16 %v4025
    %v4758 = vunpack.c.l.b16 %v4026
    %v4759 = vunpack.c.l.b16 %v4027
    %v4760 = vunpack.c.h.b16 %v4027
    %v4761 = vunpack.c.l.b16 %v4028
    %v4762 = vunpack.c.h.b16 %v4028
    %v4763 = vunpack.c.l.b16 %v4029
    %v4764 = vunpack.c.h.b16 %v4029
    %v4765 = vunpack.c.l.b16 %v4030
    %v4766 = vunpack.c.l.b16 %v4031
    %v4767 = vunpack.c.h.b16 %v4031
    %v4768 = vunpack.c.l.b16 %v4032
    %v4769 = vunpack.c.h.b16 %v4032
    %v4770 = vunpack.c.l.b16 %v4033
    %v4771 = vunpack.c.h.b16 %v4033
    %v4772 = vunpack.c.l.b16 %v4034
    %v4773 = vunpack.c.l.b16 %v4035
    %v4774 = vunpack.c.h.b16 %v4035
    %v4775 = vunpack.c.l.b16 %v4036
    %v4776 = vunpack.c.h.b16 %v4036
    %v4777 = vunpack.c.l.b16 %v4037
    %v4778 = vunpack.c.h.b16 %v4037
    %v4779 = vunpack.c.l.b16 %v4038
    %v4780 = vpack.c.b16 %v4339, %v4332
    %v4781 = vpack.c.b16 %v4340, %v4333
    %v4782 = vpack.c.b16 %v4341, %v4334
    %v4783 = vpack.c.b16 %v4342, %v4335
    %v4784 = vpack.c.b16 %v4343, %v4336
    %v4785 = vpack.c.b16 %v4344, %v4337
    %v4786 = vpack.c.b16 %v4345, %v4338
    %v4787 = vpack.c.b16 %v4353, %v4346
    %v4788 = vpack.c.b16 %v4354, %v4347
    %v4789 = vpack.c.b16 %v4355, %v4348
    %v4790 = vpack.c.b16 %v4356, %v4349
    %v4791 = vpack.c.b16 %v4357, %v4350
    %v4792 = vpack.c.b16 %v4358, %v4351
    %v4793 = vpack.c.b16 %v4359, %v4352
    %v4794 = vpack.c.b16 %v4367, %v4360
    %v4795 = vpack.c.b16 %v4368, %v4361
    %v4796 = vpack.c.b16 %v4369, %v4362
    %v4797 = vpack.c.b16 %v4370, %v4363
    %v4798 = vpack.c.b16 %v4371, %v4364
    %v4799 = vpack.c.b16 %v4372, %v4365
    %v4800 = vpack.c.b16 %v4373, %v4366
    %v4801 = vpack.c.b16 %v4381, %v4374
    %v4802 = vpack.c.b16 %v4382, %v4375
    %v4803 = vpack.c.b16 %v4383, %v4376
    %v4804 = vpack.c.b16 %v4384, %v4377
    %v4805 = vpack.c.b16 %v4385, %v4378
    %v4806 = vpack.c.b16 %v4386, %v4379
    %v4807 = vpack.c.b16 %v4387, %v4380
    %v4808 = vpack.c.b16 %v4395, %v4388
    %v4809 = vpack.c.b16 %v4396, %v4389
    %v4810 = vpack.c.b16 %v4397, %v4390
    %v4811 = vpack.c.b16 %v4398, %v4391
    %v4812 = vpack.c.b16 %v4399, %v4392
    %v4813 = vpack.c.b16 %v4400, %v4393
    %v4814 = vpack.c.b16 %v4401, %v4394
    %v4815 = vpack.c.b16 %v4409, %v4402
    %v4816 = vpack.c.b16 %v4410, %v4403
    %v4817 = vpack.c.b16 %v4411, %v4404
    %v4818 = vpack.c.b16 %v4412, %v4405
    %v4819 = vpack.c.b16 %v4413, %v4406
    %v4820 = vpack.c.b16 %v4414, %v4407
    %v4821 = vpack.c.b16 %v4415, %v4408
    %v4822 = vpack.c.b16 %v4423, %v4416
    %v4823 = vpack.c.b16 %v4424, %v4417
    %v4824 = vpack.c.b16 %v4425, %v4418
    %v4825 = vpack.c.b16 %v4426, %v4419
    %v4826 = vpack.c.b16 %v4427, %v4420
    %v4827 = vpack.c.b16 %v4428, %v4421
    %v4828 = vpack.c.b16 %v4429, %v4422
    %v4829 = vpack.c.b16 %v4437, %v4430
    %v4830 = vpack.c.b16 %v4438, %v4431
    %v4831 = vpack.c.b16 %v4439, %v4432
    %v4832 = vpack.c.b16 %v4440, %v4433
    %v4833 = vpack.c.b16 %v4441, %v4434
    %v4834 = vpack.c.b16 %v4442, %v4435
    %v4835 = vpack.c.b16 %v4443, %v4436
    %v4836 = vpack.c.b16 %v4451, %v4444
    %v4837 = vpack.c.b16 %v4452, %v4445
    %v4838 = vpack.c.b16 %v4453, %v4446
    %v4839 = vpack.c.b16 %v4454, %v4447
    %v4840 = vpack.c.b16 %v4455, %v4448
    %v4841 = vpack.c.b16 %v4456, %v4449
    %v4842 = vpack.c.b16 %v4457, %v4450
    %v4843 = vpack.c.b16 %v4465, %v4458
    %v4844 = vpack.c.b16 %v4466, %v4459
    %v4845 = vpack.c.b16 %v4467, %v4460
    %v4846 = vpack.c.b16 %v4468, %v4461
    %v4847 = vpack.c.b16 %v4469, %v4462
    %v4848 = vpack.c.b16 %v4470, %v4463
    %v4849 = vpack.c.b16 %v4471, %v4464
    %v4850 = vpack.c.b16 %v4479, %v4472
    %v4851 = vpack.c.b16 %v4480, %v4473
    %v4852 = vpack.c.b16 %v4481, %v4474
    %v4853 = vpack.c.b16 %v4482, %v4475
    %v4854 = vpack.c.b16 %v4483, %v4476
    %v4855 = vpack.c.b16 %v4484, %v4477
    %v4856 = vpack.c.b16 %v4485, %v4478
    %v4857 = vpack.c.b16 %v4493, %v4486
    %v4858 = vpack.c.b16 %v4494, %v4487
    %v4859 = vpack.c.b16 %v4495, %v4488
    %v4860 = vpack.c.b16 %v4496, %v4489
    %v4861 = vpack.c.b16 %v4497, %v4490
    %v4862 = vpack.c.b16 %v4498, %v4491
    %v4863 = vpack.c.b16 %v4499, %v4492
    %v4864 = vpack.c.b16 %v4507, %v4500
    %v4865 = vpack.c.b16 %v4508, %v4501
    %v4866 = vpack.c.b16 %v4509, %v4502
    %v4867 = vpack.c.b16 %v4510, %v4503
    %v4868 = vpack.c.b16 %v4511, %v4504
    %v4869 = vpack.c.b16 %v4512, %v4505
    %v4870 = vpack.c.b16 %v4513, %v4506
    %v4871 = vpack.c.b16 %v4521, %v4514
    %v4872 = vpack.c.b16 %v4522, %v4515
    %v4873 = vpack.c.b16 %v4523, %v4516
    %v4874 = vpack.c.b16 %v4524, %v4517
    %v4875 = vpack.c.b16 %v4525, %v4518
    %v4876 = vpack.c.b16 %v4526, %v4519
    %v4877 = vpack.c.b16 %v4527, %v4520
    %v4878 = vpack.c.b16 %v4535, %v4528
    %v4879 = vpack.c.b16 %v4536, %v4529
    %v4880 = vpack.c.b16 %v4537, %v4530
    %v4881 = vpack.c.b16 %v4538, %v4531
    %v4882 = vpack.c.b16 %v4539, %v4532
    %v4883 = vpack.c.b16 %v4540, %v4533
    %v4884 = vpack.c.b16 %v4541, %v4534
    %v4885 = vpack.c.b16 %v4549, %v4542
    %v4886 = vpack.c.b16 %v4550, %v4543
    %v4887 = vpack.c.b16 %v4551, %v4544
    %v4888 = vpack.c.b16 %v4552, %v4545
    %v4889 = vpack.c.b16 %v4553, %v4546
    %v4890 = vpack.c.b16 %v4554, %v4547
    %v4891 = vpack.c.b16 %v4555, %v4548
    %v4892 = vpack.c.b16 %v4563, %v4556
    %v4893 = vpack.c.b16 %v4564, %v4557
    %v4894 = vpack.c.b16 %v4565, %v4558
    %v4895 = vpack.c.b16 %v4566, %v4559
    %v4896 = vpack.c.b16 %v4567, %v4560
    %v4897 = vpack.c.b16 %v4568, %v4561
    %v4898 = vpack.c.b16 %v4569, %v4562
    %v4899 = vpack.c.b16 %v4577, %v4570
    %v4900 = vpack.c.b16 %v4578, %v4571
    %v4901 = vpack.c.b16 %v4579, %v4572
    %v4902 = vpack.c.b16 %v4580, %v4573
    %v4903 = vpack.c.b16 %v4581, %v4574
    %v4904 = vpack.c.b16 %v4582, %v4575
    %v4905 = vpack.c.b16 %v4583, %v4576
    %v4906 = vpack.c.b16 %v4591, %v4584
    %v4907 = vpack.c.b16 %v4592, %v4585
    %v4908 = vpack.c.b16 %v4593, %v4586
    %v4909 = vpack.c.b16 %v4594, %v4587
    %v4910 = vpack.c.b16 %v4595, %v4588
    %v4911 = vpack.c.b16 %v4596, %v4589
    %v4912 = vpack.c.b16 %v4597, %v4590
    %v4913 = vpack.c.b16 %v4605, %v4598
    %v4914 = vpack.c.b16 %v4606, %v4599
    %v4915 = vpack.c.b16 %v4607, %v4600
    %v4916 = vpack.c.b16 %v4608, %v4601
    %v4917 = vpack.c.b16 %v4609, %v4602
    %v4918 = vpack.c.b16 %v4610, %v4603
    %v4919 = vpack.c.b16 %v4611, %v4604
    %v4920 = vpack.c.b16 %v4619, %v4612
    %v4921 = vpack.c.b16 %v4620, %v4613
    %v4922 = vpack.c.b16 %v4621, %v4614
    %v4923 = vpack.c.b16 %v4622, %v4615
    %v4924 = vpack.c.b16 %v4623, %v4616
    %v4925 = vpack.c.b16 %v4624, %v4617
    %v4926 = vpack.c.b16 %v4625, %v4618
    %v4927 = vpack.c.b16 %v4633, %v4626
    %v4928 = vpack.c.b16 %v4634, %v4627
    %v4929 = vpack.c.b16 %v4635, %v4628
    %v4930 = vpack.c.b16 %v4636, %v4629
    %v4931 = vpack.c.b16 %v4637, %v4630
    %v4932 = vpack.c.b16 %v4638, %v4631
    %v4933 = vpack.c.b16 %v4639, %v4632
    %v4934 = vpack.c.b16 %v4647, %v4640
    %v4935 = vpack.c.b16 %v4648, %v4641
    %v4936 = vpack.c.b16 %v4649, %v4642
    %v4937 = vpack.c.b16 %v4650, %v4643
    %v4938 = vpack.c.b16 %v4651, %v4644
    %v4939 = vpack.c.b16 %v4652, %v4645
    %v4940 = vpack.c.b16 %v4653, %v4646
    %v4941 = vpack.c.b16 %v4661, %v4654
    %v4942 = vpack.c.b16 %v4662, %v4655
    %v4943 = vpack.c.b16 %v4663, %v4656
    %v4944 = vpack.c.b16 %v4664, %v4657
    %v4945 = vpack.c.b16 %v4665, %v4658
    %v4946 = vpack.c.b16 %v4666, %v4659
    %v4947 = vpack.c.b16 %v4667, %v4660
    %v4948 = vpack.c.b16 %v4675, %v4668
    %v4949 = vpack.c.b16 %v4676, %v4669
    %v4950 = vpack.c.b16 %v4677, %v4670
    %v4951 = vpack.c.b16 %v4678, %v4671
    %v4952 = vpack.c.b16 %v4679, %v4672
    %v4953 = vpack.c.b16 %v4680, %v4673
    %v4954 = vpack.c.b16 %v4681, %v4674
    %v4955 = vpack.c.b16 %v4689, %v4682
    %v4956 = vpack.c.b16 %v4690, %v4683
    %v4957 = vpack.c.b16 %v4691, %v4684
    %v4958 = vpack.c.b16 %v4692, %v4685
    %v4959 = vpack.c.b16 %v4693, %v4686
    %v4960 = vpack.c.b16 %v4694, %v4687
    %v4961 = vpack.c.b16 %v4695, %v4688
    %v4962 = vpack.c.b16 %v4703, %v4696
    %v4963 = vpack.c.b16 %v4704, %v4697
    %v4964 = vpack.c.b16 %v4705, %v4698
    %v4965 = vpack.c.b16 %v4706, %v4699
    %v4966 = vpack.c.b16 %v4707, %v4700
    %v4967 = vpack.c.b16 %v4708, %v4701
    %v4968 = vpack.c.b16 %v4709, %v4702
    %v4969 = vpack.c.b16 %v4717, %v4710
    %v4970 = vpack.c.b16 %v4718, %v4711
    %v4971 = vpack.c.b16 %v4719, %v4712
    %v4972 = vpack.c.b16 %v4720, %v4713
    %v4973 = vpack.c.b16 %v4721, %v4714
    %v4974 = vpack.c.b16 %v4722, %v4715
    %v4975 = vpack.c.b16 %v4723, %v4716
    %v4976 = vpack.c.b16 %v4731, %v4724
    %v4977 = vpack.c.b16 %v4732, %v4725
    %v4978 = vpack.c.b16 %v4733, %v4726
    %v4979 = vpack.c.b16 %v4734, %v4727
    %v4980 = vpack.c.b16 %v4735, %v4728
    %v4981 = vpack.c.b16 %v4736, %v4729
    %v4982 = vpack.c.b16 %v4737, %v4730
    %v4983 = vpack.c.b16 %v4745, %v4738
    %v4984 = vpack.c.b16 %v4746, %v4739
    %v4985 = vpack.c.b16 %v4747, %v4740
    %v4986 = vpack.c.b16 %v4748, %v4741
    %v4987 = vpack.c.b16 %v4749, %v4742
    %v4988 = vpack.c.b16 %v4750, %v4743
    %v4989 = vpack.c.b16 %v4751, %v4744
    %v4990 = vpack.c.b16 %v4759, %v4752
    %v4991 = vpack.c.b16 %v4760, %v4753
    %v4992 = vpack.c.b16 %v4761, %v4754
    %v4993 = vpack.c.b16 %v4762, %v4755
    %v4994 = vpack.c.b16 %v4763, %v4756
    %v4995 = vpack.c.b16 %v4764, %v4757
    %v4996 = vpack.c.b16 %v4765, %v4758
    %v4997 = vpack.c.b16 %v4773, %v4766
    %v4998 = vpack.c.b16 %v4774, %v4767
    %v4999 = vpack.c.b16 %v4775, %v4768
    %v5000 = vpack.c.b16 %v4776, %v4769
    %v5001 = vpack.c.b16 %v4777, %v4770
    %v5002 = vpack.c.b16 %v4778, %v4771
    %v5003 = vpack.c.b16 %v4779, %v4772
    %5228 = vmatprep.subr.bf16.mxu0 %v4781
    %5229 = vmatpush1.bf16.msra.mxu0 %v4780
    %5230 = vmatprep.subr.bf16.mxu0 %v4788
    %5231 = vmatpush1.bf16.msra.mxu0 %v4787
    %5232 = vmatprep.subr.bf16.mxu0 %v4795
    %5233 = vmatpush1.bf16.msra.mxu0 %v4794
    %5234 = vmatprep.subr.bf16.mxu0 %v4802
    %5235 = vmatpush1.bf16.msra.mxu0 %v4801
    %5236 = vmatprep.subr.bf16.mxu0 %v4809
    %5237 = vmatpush1.bf16.msra.mxu0 %v4808
    %5238 = vmatprep.subr.bf16.mxu0 %v4816
    %5239 = vmatpush1.bf16.msra.mxu0 %v4815
    %5240 = vmatprep.subr.bf16.mxu0 %v4823
    %5241 = vmatpush1.bf16.msra.mxu0 %v4822
    %5242 = vmatprep.subr.bf16.mxu0 %v4830
    %5243 = vmatpush1.bf16.msra.mxu0 %v4829
    %5244 = vmatprep.subr.bf16.mxu0 %v4837
    %5245 = vmatpush1.bf16.msra.mxu0 %v4836
    %5246 = vmatprep.subr.bf16.mxu0 %v4844
    %5247 = vmatpush1.bf16.msra.mxu0 %v4843
    %5248 = vmatprep.subr.bf16.mxu0 %v4851
    %5249 = vmatpush1.bf16.msra.mxu0 %v4850
    %5250 = vmatprep.subr.bf16.mxu0 %v4858
    %5251 = vmatpush1.bf16.msra.mxu0 %v4857
    %5252 = vmatprep.subr.bf16.mxu0 %v4865
    %5253 = vmatpush1.bf16.msra.mxu0 %v4864
    %5254 = vmatprep.subr.bf16.mxu0 %v4872
    %5255 = vmatpush1.bf16.msra.mxu0 %v4871
    %5256 = vmatprep.subr.bf16.mxu0 %v4879
    %5257 = vmatpush1.bf16.msra.mxu0 %v4878
    %5258 = vmatprep.subr.bf16.mxu0 %v4886
    %5259 = vmatpush1.bf16.msra.mxu0 %v4885
    %5260 = vmatprep.mubr.bf16.mxu0 %v3752
    %5261 = vmatmul.mubr.bf16.gmra.mrb[0].mxu0 %v3751
    %v5262 = vpop.f32.mrb[0].mxu0
    %v5263 = vadd.f32 %v4044, %v5262
    %v5264 = vpop.f32.mrb[0].mxu0
    %v5265 = vadd.f32 %v4048, %v5264
    %v5266 = vpop.f32.mrb[0].mxu0
    %v5267 = vadd.f32 %v4044, %v5266
    %v5268 = vpop.f32.mrb[0].mxu0
    %v5269 = vadd.f32 %v4048, %v5268
    %5270 = vmatprep.mubr.bf16.mxu0 %v3756
    %5271 = vmatmul.mubr.bf16.gmra.mrb[0].mxu0 %v3755
    %v5272 = vpop.f32.mrb[0].mxu0
    %v5273 = vadd.f32 %v4044, %v5272
    %v5274 = vpop.f32.mrb[0].mxu0
    %v5275 = vadd.f32 %v4048, %v5274
    %v5276 = vpop.f32.mrb[0].mxu0
    %v5277 = vadd.f32 %v4044, %v5276
    %v5278 = vpop.f32.mrb[0].mxu0
    %v5279 = vadd.f32 %v4048, %v5278
    %5280 = vmatprep.mubr.bf16.mxu0 %v3760
    %5281 = vmatmul.mubr.bf16.gmra.mrb[0].mxu0 %v3759
    %v5282 = vpop.f32.mrb[0].mxu0
    %v5283 = vadd.f32 %v4044, %v5282
    %v5284 = vpop.f32.mrb[0].mxu0
    %v5285 = vadd.f32 %v4048, %v5284
    %v5286 = vpop.f32.mrb[0].mxu0
    %v5287 = vadd.f32 %v4044, %v5286
    %v5288 = vpop.f32.mrb[0].mxu0
    %v5289 = vadd.f32 %v4048, %v5288
    %5290 = vmatprep.mubr.bf16.mxu0 %v3764
    %5291 = vmatmul.mubr.bf16.gmra.mrb[0].mxu0 %v3763
    %v5292 = vpop.f32.mrb[0].mxu0
    %v5293 = vadd.f32 %v4044, %v5292
    %v5294 = vpop.f32.mrb[0].mxu0
    %v5295 = vadd.f32 %v4048, %v5294
    %v5296 = vpop.f32.mrb[0].mxu0
    %v5297 = vadd.f32 %v4044, %v5296
    %v5298 = vpop.f32.mrb[0].mxu0
    %v5299 = vadd.f32 %v4048, %v5298
    %5300 = vmatprep.mubr.bf16.mxu0 %v3768
    %5301 = vmatmul.mubr.bf16.gmra.mrb[0].mxu0 %v3767
    %v5302 = vpop.f32.mrb[0].mxu0
    %v5303 = vadd.f32 %v4044, %v5302
    %v5304 = vpop.f32.mrb[0].mxu0
    %v5305 = vadd.f32 %v4048, %v5304
    %v5306 = vpop.f32.mrb[0].mxu0
    %v5307 = vadd.f32 %v4044, %v5306
    %v5308 = vpop.f32.mrb[0].mxu0
    %v5309 = vadd.f32 %v4048, %v5308
    %5310 = vmatprep.mubr.bf16.mxu0 %v3772
    %5311 = vmatmul.mubr.bf16.gmra.mrb[0].mxu0 %v3771
    %v5312 = vpop.f32.mrb[0].mxu0
    %v5313 = vadd.f32 %v4044, %v5312
    %v5314 = vpop.f32.mrb[0].mxu0
    %v5315 = vadd.f32 %v4048, %v5314
    %v5316 = vpop.f32.mrb[0].mxu0
    %v5317 = vadd.f32 %v4044, %v5316
    %v5318 = vpop.f32.mrb[0].mxu0
    %v5319 = vadd.f32 %v4048, %v5318
    %5320 = vmatprep.mubr.bf16.mxu0 %v3776
    %5321 = vmatmul.mubr.bf16.gmra.mrb[0].mxu0 %v3775
    %v5322 = vpop.f32.mrb[0].mxu0
    %v5323 = vadd.f32 %v4044, %v5322
    %v5324 = vpop.f32.mrb[0].mxu0
    %v5325 = vadd.f32 %v4048, %v5324
    %v5326 = vpop.f32.mrb[0].mxu0
    %v5327 = vadd.f32 %v4044, %v5326
    %v5328 = vpop.f32.mrb[0].mxu0
    %v5329 = vadd.f32 %v4048, %v5328
    %5330 = vmatprep.mubr.bf16.mxu0 %v3780
    %5331 = vmatmul.mubr.bf16.gmra.mrb[0].mxu0 %v3779
    %v5332 = vpop.f32.mrb[0].mxu0
    %v5333 = vadd.f32 %v4044, %v5332
    %v5334 = vpop.f32.mrb[0].mxu0
    %v5335 = vadd.f32 %v4048, %v5334
    %v5336 = vpop.f32.mrb[0].mxu0
    %v5337 = vadd.f32 %v4044, %v5336
    %v5338 = vpop.f32.mrb[0].mxu0
    %v5339 = vadd.f32 %v4048, %v5338
    %5340 = vdwg.mxu0
    %5341 = vmatprep.subr.bf16.mxu0 %v4893
    %5342 = vmatpush1.bf16.msra.mxu0 %v4892
    %5343 = vmatprep.subr.bf16.mxu0 %v4900
    %5344 = vmatpush1.bf16.msra.mxu0 %v4899
    %5345 = vmatprep.subr.bf16.mxu0 %v4907
    %5346 = vmatpush1.bf16.msra.mxu0 %v4906
    %5347 = vmatprep.subr.bf16.mxu0 %v4914
    %5348 = vmatpush1.bf16.msra.mxu0 %v4913
    %5349 = vmatprep.subr.bf16.mxu0 %v4921
    %5350 = vmatpush1.bf16.msra.mxu0 %v4920
    %5351 = vmatprep.subr.bf16.mxu0 %v4928
    %5352 = vmatpush1.bf16.msra.mxu0 %v4927
    %5353 = vmatprep.subr.bf16.mxu0 %v4935
    %5354 = vmatpush1.bf16.msra.mxu0 %v4934
    %5355 = vmatprep.subr.bf16.mxu0 %v4942
    %5356 = vmatpush1.bf16.msra.mxu0 %v4941
    %5357 = vmatprep.subr.bf16.mxu0 %v4949
    %5358 = vmatpush1.bf16.msra.mxu0 %v4948
    %5359 = vmatprep.subr.bf16.mxu0 %v4956
    %5360 = vmatpush1.bf16.msra.mxu0 %v4955
    %5361 = vmatprep.subr.bf16.mxu0 %v4963
    %5362 = vmatpush1.bf16.msra.mxu0 %v4962
    %5363 = vmatprep.subr.bf16.mxu0 %v4970
    %5364 = vmatpush1.bf16.msra.mxu0 %v4969
    %5365 = vmatprep.subr.bf16.mxu0 %v4977
    %5366 = vmatpush1.bf16.msra.mxu0 %v4976
    %5367 = vmatprep.subr.bf16.mxu0 %v4984
    %5368 = vmatpush1.bf16.msra.mxu0 %v4983
    %5369 = vmatprep.subr.bf16.mxu0 %v4991
    %5370 = vmatpush1.bf16.msra.mxu0 %v4990
    %5371 = vmatprep.subr.bf16.mxu0 %v4998
    %5372 = vmatpush1.bf16.msra.mxu0 %v4997
    %5373 = vmatprep.mubr.bf16.mxu0 %v3754
    %5374 = vmatmul.mubr.bf16.gmra.mrb[0].mxu0 %v3753
    %v5375 = vpop.f32.mrb[0].mxu0
    %v5376 = vadd.f32 %v5263, %v5375
    %v5377 = vpop.f32.mrb[0].mxu0
    %v5378 = vadd.f32 %v5265, %v5377
    %v5379 = vpop.f32.mrb[0].mxu0
    %v5380 = vadd.f32 %v5267, %v5379
    %v5381 = vpop.f32.mrb[0].mxu0
    %v5382 = vadd.f32 %v5269, %v5381
    %5383 = vmatprep.mubr.bf16.mxu0 %v3758
    %5384 = vmatmul.mubr.bf16.gmra.mrb[0].mxu0 %v3757
    %v5385 = vpop.f32.mrb[0].mxu0
    %v5386 = vadd.f32 %v5273, %v5385
    %v5387 = vpop.f32.mrb[0].mxu0
    %v5388 = vadd.f32 %v5275, %v5387
    %v5389 = vpop.f32.mrb[0].mxu0
    %v5390 = vadd.f32 %v5277, %v5389
    %v5391 = vpop.f32.mrb[0].mxu0
    %v5392 = vadd.f32 %v5279, %v5391
    %5393 = vmatprep.mubr.bf16.mxu0 %v3762
    %5394 = vmatmul.mubr.bf16.gmra.mrb[0].mxu0 %v3761
    %v5395 = vpop.f32.mrb[0].mxu0
    %v5396 = vadd.f32 %v5283, %v5395
    %v5397 = vpop.f32.mrb[0].mxu0
    %v5398 = vadd.f32 %v5285, %v5397
    %v5399 = vpop.f32.mrb[0].mxu0
    %v5400 = vadd.f32 %v5287, %v5399
    %v5401 = vpop.f32.mrb[0].mxu0
    %v5402 = vadd.f32 %v5289, %v5401
    %5403 = vmatprep.mubr.bf16.mxu0 %v3766
    %5404 = vmatmul.mubr.bf16.gmra.mrb[0].mxu0 %v3765
    %v5405 = vpop.f32.mrb[0].mxu0
    %v5406 = vadd.f32 %v5293, %v5405
    %v5407 = vpop.f32.mrb[0].mxu0
    %v5408 = vadd.f32 %v5295, %v5407
    %v5409 = vpop.f32.mrb[0].mxu0
    %v5410 = vadd.f32 %v5297, %v5409
    %v5411 = vpop.f32.mrb[0].mxu0
    %v5412 = vadd.f32 %v5299, %v5411
    %5413 = vmatprep.mubr.bf16.mxu0 %v3770
    %5414 = vmatmul.mubr.bf16.gmra.mrb[0].mxu0 %v3769
    %v5415 = vpop.f32.mrb[0].mxu0
    %v5416 = vadd.f32 %v5303, %v5415
    %v5417 = vpop.f32.mrb[0].mxu0
    %v5418 = vadd.f32 %v5305, %v5417
    %v5419 = vpop.f32.mrb[0].mxu0
    %v5420 = vadd.f32 %v5307, %v5419
    %v5421 = vpop.f32.mrb[0].mxu0
    %v5422 = vadd.f32 %v5309, %v5421
    %5423 = vmatprep.mubr.bf16.mxu0 %v3774
    %5424 = vmatmul.mubr.bf16.gmra.mrb[0].mxu0 %v3773
    %v5425 = vpop.f32.mrb[0].mxu0
    %v5426 = vadd.f32 %v5313, %v5425
    %v5427 = vpop.f32.mrb[0].mxu0
    %v5428 = vadd.f32 %v5315, %v5427
    %v5429 = vpop.f32.mrb[0].mxu0
    %v5430 = vadd.f32 %v5317, %v5429
    %v5431 = vpop.f32.mrb[0].mxu0
    %v5432 = vadd.f32 %v5319, %v5431
    %5433 = vmatprep.mubr.bf16.mxu0 %v3778
    %5434 = vmatmul.mubr.bf16.gmra.mrb[0].mxu0 %v3777
    %v5435 = vpop.f32.mrb[0].mxu0
    %v5436 = vadd.f32 %v5323, %v5435
    %v5437 = vpop.f32.mrb[0].mxu0
    %v5438 = vadd.f32 %v5325, %v5437
    %v5439 = vpop.f32.mrb[0].mxu0
    %v5440 = vadd.f32 %v5327, %v5439
    %v5441 = vpop.f32.mrb[0].mxu0
    %v5442 = vadd.f32 %v5329, %v5441
    %5443 = vmatprep.mubr.bf16.mxu0 %v3782
    %5444 = vmatmul.mubr.bf16.gmra.mrb[0].mxu0 %v3781
    %v5445 = vpop.f32.mrb[0].mxu0
    %v5446 = vadd.f32 %v5333, %v5445
    %v5447 = vpop.f32.mrb[0].mxu0
    %v5448 = vadd.f32 %v5335, %v5447
    %v5449 = vpop.f32.mrb[0].mxu0
    %v5450 = vadd.f32 %v5337, %v5449
    %v5451 = vpop.f32.mrb[0].mxu0
    %v5452 = vadd.f32 %v5339, %v5451
    %5453 = vdwg.mxu0
    %5454 = vmatprep.subr.bf16.mxu0 %v4783
    %5455 = vmatpush1.bf16.msra.mxu0 %v4782
    %5456 = vmatprep.subr.bf16.mxu0 %v4790
    %5457 = vmatpush1.bf16.msra.mxu0 %v4789
    %5458 = vmatprep.subr.bf16.mxu0 %v4797
    %5459 = vmatpush1.bf16.msra.mxu0 %v4796
    %5460 = vmatprep.subr.bf16.mxu0 %v4804
    %5461 = vmatpush1.bf16.msra.mxu0 %v4803
    %5462 = vmatprep.subr.bf16.mxu0 %v4811
    %5463 = vmatpush1.bf16.msra.mxu0 %v4810
    %5464 = vmatprep.subr.bf16.mxu0 %v4818
    %5465 = vmatpush1.bf16.msra.mxu0 %v4817
    %5466 = vmatprep.subr.bf16.mxu0 %v4825
    %5467 = vmatpush1.bf16.msra.mxu0 %v4824
    %5468 = vmatprep.subr.bf16.mxu0 %v4832
    %5469 = vmatpush1.bf16.msra.mxu0 %v4831
    %5470 = vmatprep.subr.bf16.mxu0 %v4839
    %5471 = vmatpush1.bf16.msra.mxu0 %v4838
    %5472 = vmatprep.subr.bf16.mxu0 %v4846
    %5473 = vmatpush1.bf16.msra.mxu0 %v4845
    %5474 = vmatprep.subr.bf16.mxu0 %v4853
    %5475 = vmatpush1.bf16.msra.mxu0 %v4852
    %5476 = vmatprep.subr.bf16.mxu0 %v4860
    %5477 = vmatpush1.bf16.msra.mxu0 %v4859
    %5478 = vmatprep.subr.bf16.mxu0 %v4867
    %5479 = vmatpush1.bf16.msra.mxu0 %v4866
    %5480 = vmatprep.subr.bf16.mxu0 %v4874
    %5481 = vmatpush1.bf16.msra.mxu0 %v4873
    %5482 = vmatprep.subr.bf16.mxu0 %v4881
    %5483 = vmatpush1.bf16.msra.mxu0 %v4880
    %5484 = vmatprep.subr.bf16.mxu0 %v4888
    %5485 = vmatpush1.bf16.msra.mxu0 %v4887
    %5486 = vmatprep.mubr.bf16.mxu0 %v3752
    %5487 = vmatmul.mubr.bf16.gmra.mrb[0].mxu0 %v3751
    %v5488 = vpop.f32.mrb[0].mxu0
    %v5489 = vadd.f32 %v4052, %v5488
    %v5490 = vpop.f32.mrb[0].mxu0
    %v5491 = vadd.f32 %v4056, %v5490
    %v5492 = vpop.f32.mrb[0].mxu0
    %v5493 = vadd.f32 %v4052, %v5492
    %v5494 = vpop.f32.mrb[0].mxu0
    %v5495 = vadd.f32 %v4056, %v5494
    %5496 = vmatprep.mubr.bf16.mxu0 %v3756
    %5497 = vmatmul.mubr.bf16.gmra.mrb[0].mxu0 %v3755
    %v5498 = vpop.f32.mrb[0].mxu0
    %v5499 = vadd.f32 %v4052, %v5498
    %v5500 = vpop.f32.mrb[0].mxu0
    %v5501 = vadd.f32 %v4056, %v5500
    %v5502 = vpop.f32.mrb[0].mxu0
    %v5503 = vadd.f32 %v4052, %v5502
    %v5504 = vpop.f32.mrb[0].mxu0
    %v5505 = vadd.f32 %v4056, %v5504
    %5506 = vmatprep.mubr.bf16.mxu0 %v3760
    %5507 = vmatmul.mubr.bf16.gmra.mrb[0].mxu0 %v3759
    %v5508 = vpop.f32.mrb[0].mxu0
    %v5509 = vadd.f32 %v4052, %v5508
    %v5510 = vpop.f32.mrb[0].mxu0
    %v5511 = vadd.f32 %v4056, %v5510
    %v5512 = vpop.f32.mrb[0].mxu0
    %v5513 = vadd.f32 %v4052, %v5512
    %v5514 = vpop.f32.mrb[0].mxu0
    %v5515 = vadd.f32 %v4056, %v5514
    %5516 = vmatprep.mubr.bf16.mxu0 %v3764
    %5517 = vmatmul.mubr.bf16.gmra.mrb[0].mxu0 %v3763
    %v5518 = vpop.f32.mrb[0].mxu0
    %v5519 = vadd.f32 %v4052, %v5518
    %v5520 = vpop.f32.mrb[0].mxu0
    %v5521 = vadd.f32 %v4056, %v5520
    %v5522 = vpop.f32.mrb[0].mxu0
    %v5523 = vadd.f32 %v4052, %v5522
    %v5524 = vpop.f32.mrb[0].mxu0
    %v5525 = vadd.f32 %v4056, %v5524
    %5526 = vmatprep.mubr.bf16.mxu0 %v3768
    %5527 = vmatmul.mubr.bf16.gmra.mrb[0].mxu0 %v3767
    %v5528 = vpop.f32.mrb[0].mxu0
    %v5529 = vadd.f32 %v4052, %v5528
    %v5530 = vpop.f32.mrb[0].mxu0
    %v5531 = vadd.f32 %v4056, %v5530
    %v5532 = vpop.f32.mrb[0].mxu0
    %v5533 = vadd.f32 %v4052, %v5532
    %v5534 = vpop.f32.mrb[0].mxu0
    %v5535 = vadd.f32 %v4056, %v5534
    %5536 = vmatprep.mubr.bf16.mxu0 %v3772
    %5537 = vmatmul.mubr.bf16.gmra.mrb[0].mxu0 %v3771
    %v5538 = vpop.f32.mrb[0].mxu0
    %v5539 = vadd.f32 %v4052, %v5538
    %v5540 = vpop.f32.mrb[0].mxu0
    %v5541 = vadd.f32 %v4056, %v5540
    %v5542 = vpop.f32.mrb[0].mxu0
    %v5543 = vadd.f32 %v4052, %v5542
    %v5544 = vpop.f32.mrb[0].mxu0
    %v5545 = vadd.f32 %v4056, %v5544
    %5546 = vmatprep.mubr.bf16.mxu0 %v3776
    %5547 = vmatmul.mubr.bf16.gmra.mrb[0].mxu0 %v3775
    %v5548 = vpop.f32.mrb[0].mxu0
    %v5549 = vadd.f32 %v4052, %v5548
    %v5550 = vpop.f32.mrb[0].mxu0
    %v5551 = vadd.f32 %v4056, %v5550
    %v5552 = vpop.f32.mrb[0].mxu0
    %v5553 = vadd.f32 %v4052, %v5552
    %v5554 = vpop.f32.mrb[0].mxu0
    %v5555 = vadd.f32 %v4056, %v5554
    %5556 = vmatprep.mubr.bf16.mxu0 %v3780
    %5557 = vmatmul.mubr.bf16.gmra.mrb[0].mxu0 %v3779
    %v5558 = vpop.f32.mrb[0].mxu0
    %v5559 = vadd.f32 %v4052, %v5558
    %v5560 = vpop.f32.mrb[0].mxu0
    %v5561 = vadd.f32 %v4056, %v5560
    %v5562 = vpop.f32.mrb[0].mxu0
    %v5563 = vadd.f32 %v4052, %v5562
    %v5564 = vpop.f32.mrb[0].mxu0
    %v5565 = vadd.f32 %v4056, %v5564
    %5566 = vdwg.mxu0
    %5567 = vmatprep.subr.bf16.mxu0 %v4895
    %5568 = vmatpush1.bf16.msra.mxu0 %v4894
    %5569 = vmatprep.subr.bf16.mxu0 %v4902
    %5570 = vmatpush1.bf16.msra.mxu0 %v4901
    %5571 = vmatprep.subr.bf16.mxu0 %v4909
    %5572 = vmatpush1.bf16.msra.mxu0 %v4908
    %5573 = vmatprep.subr.bf16.mxu0 %v4916
    %5574 = vmatpush1.bf16.msra.mxu0 %v4915
    %5575 = vmatprep.subr.bf16.mxu0 %v4923
    %5576 = vmatpush1.bf16.msra.mxu0 %v4922
    %5577 = vmatprep.subr.bf16.mxu0 %v4930
    %5578 = vmatpush1.bf16.msra.mxu0 %v4929
    %5579 = vmatprep.subr.bf16.mxu0 %v4937
    %5580 = vmatpush1.bf16.msra.mxu0 %v4936
    %5581 = vmatprep.subr.bf16.mxu0 %v4944
    %5582 = vmatpush1.bf16.msra.mxu0 %v4943
    %5583 = vmatprep.subr.bf16.mxu0 %v4951
    %5584 = vmatpush1.bf16.msra.mxu0 %v4950
    %5585 = vmatprep.subr.bf16.mxu0 %v4958
    %5586 = vmatpush1.bf16.msra.mxu0 %v4957
    %5587 = vmatprep.subr.bf16.mxu0 %v4965
    %5588 = vmatpush1.bf16.msra.mxu0 %v4964
    %5589 = vmatprep.subr.bf16.mxu0 %v4972
    %5590 = vmatpush1.bf16.msra.mxu0 %v4971
    %5591 = vmatprep.subr.bf16.mxu0 %v4979
    %5592 = vmatpush1.bf16.msra.mxu0 %v4978
    %5593 = vmatprep.subr.bf16.mxu0 %v4986
    %5594 = vmatpush1.bf16.msra.mxu0 %v4985
    %5595 = vmatprep.subr.bf16.mxu0 %v4993
    %5596 = vmatpush1.bf16.msra.mxu0 %v4992
    %5597 = vmatprep.subr.bf16.mxu0 %v5000
    %5598 = vmatpush1.bf16.msra.mxu0 %v4999
    %5599 = vmatprep.mubr.bf16.mxu0 %v3754
    %5600 = vmatmul.mubr.bf16.gmra.mrb[0].mxu0 %v3753
    %v5601 = vpop.f32.mrb[0].mxu0
    %v5602 = vadd.f32 %v5489, %v5601
    %v5603 = vpop.f32.mrb[0].mxu0
    %v5604 = vadd.f32 %v5491, %v5603
    %v5605 = vpop.f32.mrb[0].mxu0
    %v5606 = vadd.f32 %v5493, %v5605
    %v5607 = vpop.f32.mrb[0].mxu0
    %v5608 = vadd.f32 %v5495, %v5607
    %5609 = vmatprep.mubr.bf16.mxu0 %v3758
    %5610 = vmatmul.mubr.bf16.gmra.mrb[0].mxu0 %v3757
    %v5611 = vpop.f32.mrb[0].mxu0
    %v5612 = vadd.f32 %v5499, %v5611
    %v5613 = vpop.f32.mrb[0].mxu0
    %v5614 = vadd.f32 %v5501, %v5613
    %v5615 = vpop.f32.mrb[0].mxu0
    %v5616 = vadd.f32 %v5503, %v5615
    %v5617 = vpop.f32.mrb[0].mxu0
    %v5618 = vadd.f32 %v5505, %v5617
    %5619 = vmatprep.mubr.bf16.mxu0 %v3762
    %5620 = vmatmul.mubr.bf16.gmra.mrb[0].mxu0 %v3761
    %v5621 = vpop.f32.mrb[0].mxu0
    %v5622 = vadd.f32 %v5509, %v5621
    %v5623 = vpop.f32.mrb[0].mxu0
    %v5624 = vadd.f32 %v5511, %v5623
    %v5625 = vpop.f32.mrb[0].mxu0
    %v5626 = vadd.f32 %v5513, %v5625
    %v5627 = vpop.f32.mrb[0].mxu0
    %v5628 = vadd.f32 %v5515, %v5627
    %5629 = vmatprep.mubr.bf16.mxu0 %v3766
    %5630 = vmatmul.mubr.bf16.gmra.mrb[0].mxu0 %v3765
    %v5631 = vpop.f32.mrb[0].mxu0
    %v5632 = vadd.f32 %v5519, %v5631
    %v5633 = vpop.f32.mrb[0].mxu0
    %v5634 = vadd.f32 %v5521, %v5633
    %v5635 = vpop.f32.mrb[0].mxu0
    %v5636 = vadd.f32 %v5523, %v5635
    %v5637 = vpop.f32.mrb[0].mxu0
    %v5638 = vadd.f32 %v5525, %v5637
    %5639 = vmatprep.mubr.bf16.mxu0 %v3770
    %5640 = vmatmul.mubr.bf16.gmra.mrb[0].mxu0 %v3769
    %v5641 = vpop.f32.mrb[0].mxu0
    %v5642 = vadd.f32 %v5529, %v5641
    %v5643 = vpop.f32.mrb[0].mxu0
    %v5644 = vadd.f32 %v5531, %v5643
    %v5645 = vpop.f32.mrb[0].mxu0
    %v5646 = vadd.f32 %v5533, %v5645
    %v5647 = vpop.f32.mrb[0].mxu0
    %v5648 = vadd.f32 %v5535, %v5647
    %5649 = vmatprep.mubr.bf16.mxu0 %v3774
    %5650 = vmatmul.mubr.bf16.gmra.mrb[0].mxu0 %v3773
    %v5651 = vpop.f32.mrb[0].mxu0
    %v5652 = vadd.f32 %v5539, %v5651
    %v5653 = vpop.f32.mrb[0].mxu0
    %v5654 = vadd.f32 %v5541, %v5653
    %v5655 = vpop.f32.mrb[0].mxu0
    %v5656 = vadd.f32 %v5543, %v5655
    %v5657 = vpop.f32.mrb[0].mxu0
    %v5658 = vadd.f32 %v5545, %v5657
    %5659 = vmatprep.mubr.bf16.mxu0 %v3778
    %5660 = vmatmul.mubr.bf16.gmra.mrb[0].mxu0 %v3777
    %v5661 = vpop.f32.mrb[0].mxu0
    %v5662 = vadd.f32 %v5549, %v5661
    %v5663 = vpop.f32.mrb[0].mxu0
    %v5664 = vadd.f32 %v5551, %v5663
    %v5665 = vpop.f32.mrb[0].mxu0
    %v5666 = vadd.f32 %v5553, %v5665
    %v5667 = vpop.f32.mrb[0].mxu0
    %v5668 = vadd.f32 %v5555, %v5667
    %5669 = vmatprep.mubr.bf16.mxu0 %v3782
    %5670 = vmatmul.mubr.bf16.gmra.mrb[0].mxu0 %v3781
    %v5671 = vpop.f32.mrb[0].mxu0
    %v5672 = vadd.f32 %v5559, %v5671
    %v5673 = vpop.f32.mrb[0].mxu0
    %v5674 = vadd.f32 %v5561, %v5673
    %v5675 = vpop.f32.mrb[0].mxu0
    %v5676 = vadd.f32 %v5563, %v5675
    %v5677 = vpop.f32.mrb[0].mxu0
    %v5678 = vadd.f32 %v5565, %v5677
    %5679 = vdwg.mxu0
    %5680 = vmatprep.subr.bf16.mxu0 %v4785
    %5681 = vmatpush1.bf16.msra.mxu0 %v4784
    %5682 = vmatprep.subr.bf16.mxu0 %v4792
    %5683 = vmatpush1.bf16.msra.mxu0 %v4791
    %5684 = vmatprep.subr.bf16.mxu0 %v4799
    %5685 = vmatpush1.bf16.msra.mxu0 %v4798
    %5686 = vmatprep.subr.bf16.mxu0 %v4806
    %5687 = vmatpush1.bf16.msra.mxu0 %v4805
    %5688 = vmatprep.subr.bf16.mxu0 %v4813
    %5689 = vmatpush1.bf16.msra.mxu0 %v4812
    %5690 = vmatprep.subr.bf16.mxu0 %v4820
    %5691 = vmatpush1.bf16.msra.mxu0 %v4819
    %5692 = vmatprep.subr.bf16.mxu0 %v4827
    %5693 = vmatpush1.bf16.msra.mxu0 %v4826
    %5694 = vmatprep.subr.bf16.mxu0 %v4834
    %5695 = vmatpush1.bf16.msra.mxu0 %v4833
    %5696 = vmatprep.subr.bf16.mxu0 %v4841
    %5697 = vmatpush1.bf16.msra.mxu0 %v4840
    %5698 = vmatprep.subr.bf16.mxu0 %v4848
    %5699 = vmatpush1.bf16.msra.mxu0 %v4847
    %5700 = vmatprep.subr.bf16.mxu0 %v4855
    %5701 = vmatpush1.bf16.msra.mxu0 %v4854
    %5702 = vmatprep.subr.bf16.mxu0 %v4862
    %5703 = vmatpush1.bf16.msra.mxu0 %v4861
    %5704 = vmatprep.subr.bf16.mxu0 %v4869
    %5705 = vmatpush1.bf16.msra.mxu0 %v4868
    %5706 = vmatprep.subr.bf16.mxu0 %v4876
    %5707 = vmatpush1.bf16.msra.mxu0 %v4875
    %5708 = vmatprep.subr.bf16.mxu0 %v4883
    %5709 = vmatpush1.bf16.msra.mxu0 %v4882
    %5710 = vmatprep.subr.bf16.mxu0 %v4890
    %5711 = vmatpush1.bf16.msra.mxu0 %v4889
    %5712 = vmatprep.mubr.bf16.mxu0 %v3752
    %5713 = vmatmul.mubr.bf16.gmra.mrb[0].mxu0 %v3751
    %v5714 = vpop.f32.mrb[0].mxu0
    %v5715 = vadd.f32 %v4060, %v5714
    %v5716 = vpop.f32.mrb[0].mxu0
    %v5717 = vadd.f32 %v4064, %v5716
    %v5718 = vpop.f32.mrb[0].mxu0
    %v5719 = vadd.f32 %v4060, %v5718
    %v5720 = vpop.f32.mrb[0].mxu0
    %v5721 = vadd.f32 %v4064, %v5720
    %5722 = vmatprep.mubr.bf16.mxu0 %v3756
    %5723 = vmatmul.mubr.bf16.gmra.mrb[0].mxu0 %v3755
    %v5724 = vpop.f32.mrb[0].mxu0
    %v5725 = vadd.f32 %v4060, %v5724
    %v5726 = vpop.f32.mrb[0].mxu0
    %v5727 = vadd.f32 %v4064, %v5726
    %v5728 = vpop.f32.mrb[0].mxu0
    %v5729 = vadd.f32 %v4060, %v5728
    %v5730 = vpop.f32.mrb[0].mxu0
    %v5731 = vadd.f32 %v4064, %v5730
    %5732 = vmatprep.mubr.bf16.mxu0 %v3760
    %5733 = vmatmul.mubr.bf16.gmra.mrb[0].mxu0 %v3759
    %v5734 = vpop.f32.mrb[0].mxu0
    %v5735 = vadd.f32 %v4060, %v5734
    %v5736 = vpop.f32.mrb[0].mxu0
    %v5737 = vadd.f32 %v4064, %v5736
    %v5738 = vpop.f32.mrb[0].mxu0
    %v5739 = vadd.f32 %v4060, %v5738
    %v5740 = vpop.f32.mrb[0].mxu0
    %v5741 = vadd.f32 %v4064, %v5740
    %5742 = vmatprep.mubr.bf16.mxu0 %v3764
    %5743 = vmatmul.mubr.bf16.gmra.mrb[0].mxu0 %v3763
    %v5744 = vpop.f32.mrb[0].mxu0
    %v5745 = vadd.f32 %v4060, %v5744
    %v5746 = vpop.f32.mrb[0].mxu0
    %v5747 = vadd.f32 %v4064, %v5746
    %v5748 = vpop.f32.mrb[0].mxu0
    %v5749 = vadd.f32 %v4060, %v5748
    %v5750 = vpop.f32.mrb[0].mxu0
    %v5751 = vadd.f32 %v4064, %v5750
    %5752 = vmatprep.mubr.bf16.mxu0 %v3768
    %5753 = vmatmul.mubr.bf16.gmra.mrb[0].mxu0 %v3767
    %v5754 = vpop.f32.mrb[0].mxu0
    %v5755 = vadd.f32 %v4060, %v5754
    %v5756 = vpop.f32.mrb[0].mxu0
    %v5757 = vadd.f32 %v4064, %v5756
    %v5758 = vpop.f32.mrb[0].mxu0
    %v5759 = vadd.f32 %v4060, %v5758
    %v5760 = vpop.f32.mrb[0].mxu0
    %v5761 = vadd.f32 %v4064, %v5760
    %5762 = vmatprep.mubr.bf16.mxu0 %v3772
    %5763 = vmatmul.mubr.bf16.gmra.mrb[0].mxu0 %v3771
    %v5764 = vpop.f32.mrb[0].mxu0
    %v5765 = vadd.f32 %v4060, %v5764
    %v5766 = vpop.f32.mrb[0].mxu0
    %v5767 = vadd.f32 %v4064, %v5766
    %v5768 = vpop.f32.mrb[0].mxu0
    %v5769 = vadd.f32 %v4060, %v5768
    %v5770 = vpop.f32.mrb[0].mxu0
    %v5771 = vadd.f32 %v4064, %v5770
    %5772 = vmatprep.mubr.bf16.mxu0 %v3776
    %5773 = vmatmul.mubr.bf16.gmra.mrb[0].mxu0 %v3775
    %v5774 = vpop.f32.mrb[0].mxu0
    %v5775 = vadd.f32 %v4060, %v5774
    %v5776 = vpop.f32.mrb[0].mxu0
    %v5777 = vadd.f32 %v4064, %v5776
    %v5778 = vpop.f32.mrb[0].mxu0
    %v5779 = vadd.f32 %v4060, %v5778
    %v5780 = vpop.f32.mrb[0].mxu0
    %v5781 = vadd.f32 %v4064, %v5780
    %5782 = vmatprep.mubr.bf16.mxu0 %v3780
    %5783 = vmatmul.mubr.bf16.gmra.mrb[0].mxu0 %v3779
    %v5784 = vpop.f32.mrb[0].mxu0
    %v5785 = vadd.f32 %v4060, %v5784
    %v5786 = vpop.f32.mrb[0].mxu0
    %v5787 = vadd.f32 %v4064, %v5786
    %v5788 = vpop.f32.mrb[0].mxu0
    %v5789 = vadd.f32 %v4060, %v5788
    %v5790 = vpop.f32.mrb[0].mxu0
    %v5791 = vadd.f32 %v4064, %v5790
    %5792 = vdwg.mxu0
    %5793 = vmatprep.subr.bf16.mxu0 %v4897
    %5794 = vmatpush1.bf16.msra.mxu0 %v4896
    %5795 = vmatprep.subr.bf16.mxu0 %v4904
    %5796 = vmatpush1.bf16.msra.mxu0 %v4903
    %5797 = vmatprep.subr.bf16.mxu0 %v4911
    %5798 = vmatpush1.bf16.msra.mxu0 %v4910
    %5799 = vmatprep.subr.bf16.mxu0 %v4918
    %5800 = vmatpush1.bf16.msra.mxu0 %v4917
    %5801 = vmatprep.subr.bf16.mxu0 %v4925
    %5802 = vmatpush1.bf16.msra.mxu0 %v4924
    %5803 = vmatprep.subr.bf16.mxu0 %v4932
    %5804 = vmatpush1.bf16.msra.mxu0 %v4931
    %5805 = vmatprep.subr.bf16.mxu0 %v4939
    %5806 = vmatpush1.bf16.msra.mxu0 %v4938
    %5807 = vmatprep.subr.bf16.mxu0 %v4946
    %5808 = vmatpush1.bf16.msra.mxu0 %v4945
    %5809 = vmatprep.subr.bf16.mxu0 %v4953
    %5810 = vmatpush1.bf16.msra.mxu0 %v4952
    %5811 = vmatprep.subr.bf16.mxu0 %v4960
    %5812 = vmatpush1.bf16.msra.mxu0 %v4959
    %5813 = vmatprep.subr.bf16.mxu0 %v4967
    %5814 = vmatpush1.bf16.msra.mxu0 %v4966
    %5815 = vmatprep.subr.bf16.mxu0 %v4974
    %5816 = vmatpush1.bf16.msra.mxu0 %v4973
    %5817 = vmatprep.subr.bf16.mxu0 %v4981
    %5818 = vmatpush1.bf16.msra.mxu0 %v4980
    %5819 = vmatprep.subr.bf16.mxu0 %v4988
    %5820 = vmatpush1.bf16.msra.mxu0 %v4987
    %5821 = vmatprep.subr.bf16.mxu0 %v4995
    %5822 = vmatpush1.bf16.msra.mxu0 %v4994
    %5823 = vmatprep.subr.bf16.mxu0 %v5002
    %5824 = vmatpush1.bf16.msra.mxu0 %v5001
    %5825 = vmatprep.mubr.bf16.mxu0 %v3754
    %5826 = vmatmul.mubr.bf16.gmra.mrb[0].mxu0 %v3753
    %v5827 = vpop.f32.mrb[0].mxu0
    %v5828 = vadd.f32 %v5715, %v5827
    %v5829 = vpop.f32.mrb[0].mxu0
    %v5830 = vadd.f32 %v5717, %v5829
    %v5831 = vpop.f32.mrb[0].mxu0
    %v5832 = vadd.f32 %v5719, %v5831
    %v5833 = vpop.f32.mrb[0].mxu0
    %v5834 = vadd.f32 %v5721, %v5833
    %5835 = vmatprep.mubr.bf16.mxu0 %v3758
    %5836 = vmatmul.mubr.bf16.gmra.mrb[0].mxu0 %v3757
    %v5837 = vpop.f32.mrb[0].mxu0
    %v5838 = vadd.f32 %v5725, %v5837
    %v5839 = vpop.f32.mrb[0].mxu0
    %v5840 = vadd.f32 %v5727, %v5839
    %v5841 = vpop.f32.mrb[0].mxu0
    %v5842 = vadd.f32 %v5729, %v5841
    %v5843 = vpop.f32.mrb[0].mxu0
    %v5844 = vadd.f32 %v5731, %v5843
    %5845 = vmatprep.mubr.bf16.mxu0 %v3762
    %5846 = vmatmul.mubr.bf16.gmra.mrb[0].mxu0 %v3761
    %v5847 = vpop.f32.mrb[0].mxu0
    %v5848 = vadd.f32 %v5735, %v5847
    %v5849 = vpop.f32.mrb[0].mxu0
    %v5850 = vadd.f32 %v5737, %v5849
    %v5851 = vpop.f32.mrb[0].mxu0
    %v5852 = vadd.f32 %v5739, %v5851
    %v5853 = vpop.f32.mrb[0].mxu0
    %v5854 = vadd.f32 %v5741, %v5853
    %5855 = vmatprep.mubr.bf16.mxu0 %v3766
    %5856 = vmatmul.mubr.bf16.gmra.mrb[0].mxu0 %v3765
    %v5857 = vpop.f32.mrb[0].mxu0
    %v5858 = vadd.f32 %v5745, %v5857
    %v5859 = vpop.f32.mrb[0].mxu0
    %v5860 = vadd.f32 %v5747, %v5859
    %v5861 = vpop.f32.mrb[0].mxu0
    %v5862 = vadd.f32 %v5749, %v5861
    %v5863 = vpop.f32.mrb[0].mxu0
    %v5864 = vadd.f32 %v5751, %v5863
    %5865 = vmatprep.mubr.bf16.mxu0 %v3770
    %5866 = vmatmul.mubr.bf16.gmra.mrb[0].mxu0 %v3769
    %v5867 = vpop.f32.mrb[0].mxu0
    %v5868 = vadd.f32 %v5755, %v5867
    %v5869 = vpop.f32.mrb[0].mxu0
    %v5870 = vadd.f32 %v5757, %v5869
    %v5871 = vpop.f32.mrb[0].mxu0
    %v5872 = vadd.f32 %v5759, %v5871
    %v5873 = vpop.f32.mrb[0].mxu0
    %v5874 = vadd.f32 %v5761, %v5873
    %5875 = vmatprep.mubr.bf16.mxu0 %v3774
    %5876 = vmatmul.mubr.bf16.gmra.mrb[0].mxu0 %v3773
    %v5877 = vpop.f32.mrb[0].mxu0
    %v5878 = vadd.f32 %v5765, %v5877
    %v5879 = vpop.f32.mrb[0].mxu0
    %v5880 = vadd.f32 %v5767, %v5879
    %v5881 = vpop.f32.mrb[0].mxu0
    %v5882 = vadd.f32 %v5769, %v5881
    %v5883 = vpop.f32.mrb[0].mxu0
    %v5884 = vadd.f32 %v5771, %v5883
    %5885 = vmatprep.mubr.bf16.mxu0 %v3778
    %5886 = vmatmul.mubr.bf16.gmra.mrb[0].mxu0 %v3777
    %v5887 = vpop.f32.mrb[0].mxu0
    %v5888 = vadd.f32 %v5775, %v5887
    %v5889 = vpop.f32.mrb[0].mxu0
    %v5890 = vadd.f32 %v5777, %v5889
    %v5891 = vpop.f32.mrb[0].mxu0
    %v5892 = vadd.f32 %v5779, %v5891
    %v5893 = vpop.f32.mrb[0].mxu0
    %v5894 = vadd.f32 %v5781, %v5893
    %5895 = vmatprep.mubr.bf16.mxu0 %v3782
    %5896 = vmatmul.mubr.bf16.gmra.mrb[0].mxu0 %v3781
    %v5897 = vpop.f32.mrb[0].mxu0
    %v5898 = vadd.f32 %v5785, %v5897
    %v5899 = vpop.f32.mrb[0].mxu0
    %v5900 = vadd.f32 %v5787, %v5899
    %v5901 = vpop.f32.mrb[0].mxu0
    %v5902 = vadd.f32 %v5789, %v5901
    %v5903 = vpop.f32.mrb[0].mxu0
    %v5904 = vadd.f32 %v5791, %v5903
    %5905 = vdwg.mxu0
    %5906 = vmatprep.subr.bf16.mxu0 0
    %5907 = vmatpush1.bf16.msra.mxu0 %v4786
    %5908 = vmatprep.subr.bf16.mxu0 0
    %5909 = vmatpush1.bf16.msra.mxu0 %v4793
    %5910 = vmatprep.subr.bf16.mxu0 0
    %5911 = vmatpush1.bf16.msra.mxu0 %v4800
    %5912 = vmatprep.subr.bf16.mxu0 0
    %5913 = vmatpush1.bf16.msra.mxu0 %v4807
    %5914 = vmatprep.subr.bf16.mxu0 0
    %5915 = vmatpush1.bf16.msra.mxu0 %v4814
    %5916 = vmatprep.subr.bf16.mxu0 0
    %5917 = vmatpush1.bf16.msra.mxu0 %v4821
    %5918 = vmatprep.subr.bf16.mxu0 0
    %5919 = vmatpush1.bf16.msra.mxu0 %v4828
    %5920 = vmatprep.subr.bf16.mxu0 0
    %5921 = vmatpush1.bf16.msra.mxu0 %v4835
    %5922 = vmatprep.subr.bf16.mxu0 0
    %5923 = vmatpush1.bf16.msra.mxu0 %v4842
    %5924 = vmatprep.subr.bf16.mxu0 0
    %5925 = vmatpush1.bf16.msra.mxu0 %v4849
    %5926 = vmatprep.subr.bf16.mxu0 0
    %5927 = vmatpush1.bf16.msra.mxu0 %v4856
    %5928 = vmatprep.subr.bf16.mxu0 0
    %5929 = vmatpush1.bf16.msra.mxu0 %v4863
    %5930 = vmatprep.subr.bf16.mxu0 0
    %5931 = vmatpush1.bf16.msra.mxu0 %v4870
    %5932 = vmatprep.subr.bf16.mxu0 0
    %5933 = vmatpush1.bf16.msra.mxu0 %v4877
    %5934 = vmatprep.subr.bf16.mxu0 0
    %5935 = vmatpush1.bf16.msra.mxu0 %v4884
    %5936 = vmatprep.subr.bf16.mxu0 0
    %5937 = vmatpush1.bf16.msra.mxu0 %v4891
    %5938 = vmatprep.mubr.bf16.mxu0 %v3752
    %5939 = vmatmul.mubr.bf16.gmra.mrb[0].mxu0 %v3751
    %v5940 = vpop.f32.mrb[0].mxu0
    %v5941 = vadd.f32 %v4068, %v5940
    %v5942 = vpop.f32.mrb[0].mxu0
    %v5943 = vpop.f32.mrb[0].mxu0
    %v5944 = vadd.f32 %v4068, %v5943
    %v5945 = vpop.f32.mrb[0].mxu0
    %5946 = vmatprep.mubr.bf16.mxu0 %v3756
    %5947 = vmatmul.mubr.bf16.gmra.mrb[0].mxu0 %v3755
    %v5948 = vpop.f32.mrb[0].mxu0
    %v5949 = vadd.f32 %v4068, %v5948
    %v5950 = vpop.f32.mrb[0].mxu0
    %v5951 = vpop.f32.mrb[0].mxu0
    %v5952 = vadd.f32 %v4068, %v5951
    %v5953 = vpop.f32.mrb[0].mxu0
    %5954 = vmatprep.mubr.bf16.mxu0 %v3760
    %5955 = vmatmul.mubr.bf16.gmra.mrb[0].mxu0 %v3759
    %v5956 = vpop.f32.mrb[0].mxu0
    %v5957 = vadd.f32 %v4068, %v5956
    %v5958 = vpop.f32.mrb[0].mxu0
    %v5959 = vpop.f32.mrb[0].mxu0
    %v5960 = vadd.f32 %v4068, %v5959
    %v5961 = vpop.f32.mrb[0].mxu0
    %5962 = vmatprep.mubr.bf16.mxu0 %v3764
    %5963 = vmatmul.mubr.bf16.gmra.mrb[0].mxu0 %v3763
    %v5964 = vpop.f32.mrb[0].mxu0
    %v5965 = vadd.f32 %v4068, %v5964
    %v5966 = vpop.f32.mrb[0].mxu0
    %v5967 = vpop.f32.mrb[0].mxu0
    %v5968 = vadd.f32 %v4068, %v5967
    %v5969 = vpop.f32.mrb[0].mxu0
    %5970 = vmatprep.mubr.bf16.mxu0 %v3768
    %5971 = vmatmul.mubr.bf16.gmra.mrb[0].mxu0 %v3767
    %v5972 = vpop.f32.mrb[0].mxu0
    %v5973 = vadd.f32 %v4068, %v5972
    %v5974 = vpop.f32.mrb[0].mxu0
    %v5975 = vpop.f32.mrb[0].mxu0
    %v5976 = vadd.f32 %v4068, %v5975
    %v5977 = vpop.f32.mrb[0].mxu0
    %5978 = vmatprep.mubr.bf16.mxu0 %v3772
    %5979 = vmatmul.mubr.bf16.gmra.mrb[0].mxu0 %v3771
    %v5980 = vpop.f32.mrb[0].mxu0
    %v5981 = vadd.f32 %v4068, %v5980
    %v5982 = vpop.f32.mrb[0].mxu0
    %v5983 = vpop.f32.mrb[0].mxu0
    %v5984 = vadd.f32 %v4068, %v5983
    %v5985 = vpop.f32.mrb[0].mxu0
    %5986 = vmatprep.mubr.bf16.mxu0 %v3776
    %5987 = vmatmul.mubr.bf16.gmra.mrb[0].mxu0 %v3775
    %v5988 = vpop.f32.mrb[0].mxu0
    %v5989 = vadd.f32 %v4068, %v5988
    %v5990 = vpop.f32.mrb[0].mxu0
    %v5991 = vpop.f32.mrb[0].mxu0
    %v5992 = vadd.f32 %v4068, %v5991
    %v5993 = vpop.f32.mrb[0].mxu0
    %5994 = vmatprep.mubr.bf16.mxu0 %v3780
    %5995 = vmatmul.mubr.bf16.gmra.mrb[0].mxu0 %v3779
    %v5996 = vpop.f32.mrb[0].mxu0
    %v5997 = vadd.f32 %v4068, %v5996
    %v5998 = vpop.f32.mrb[0].mxu0
    %v5999 = vpop.f32.mrb[0].mxu0
    %v6000 = vadd.f32 %v4068, %v5999
    %v6001 = vpop.f32.mrb[0].mxu0
    %6002 = vdwg.mxu0
    %6003 = vmatprep.subr.bf16.mxu0 0
    %6004 = vmatpush1.bf16.msra.mxu0 %v4898
    %6005 = vmatprep.subr.bf16.mxu0 0
    %6006 = vmatpush1.bf16.msra.mxu0 %v4905
    %6007 = vmatprep.subr.bf16.mxu0 0
    %6008 = vmatpush1.bf16.msra.mxu0 %v4912
    %6009 = vmatprep.subr.bf16.mxu0 0
    %6010 = vmatpush1.bf16.msra.mxu0 %v4919
    %6011 = vmatprep.subr.bf16.mxu0 0
    %6012 = vmatpush1.bf16.msra.mxu0 %v4926
    %6013 = vmatprep.subr.bf16.mxu0 0
    %6014 = vmatpush1.bf16.msra.mxu0 %v4933
    %6015 = vmatprep.subr.bf16.mxu0 0
    %6016 = vmatpush1.bf16.msra.mxu0 %v4940
    %6017 = vmatprep.subr.bf16.mxu0 0
    %6018 = vmatpush1.bf16.msra.mxu0 %v4947
    %6019 = vmatprep.subr.bf16.mxu0 0
    %6020 = vmatpush1.bf16.msra.mxu0 %v4954
    %6021 = vmatprep.subr.bf16.mxu0 0
    %6022 = vmatpush1.bf16.msra.mxu0 %v4961
    %6023 = vmatprep.subr.bf16.mxu0 0
    %6024 = vmatpush1.bf16.msra.mxu0 %v4968
    %6025 = vmatprep.subr.bf16.mxu0 0
    %6026 = vmatpush1.bf16.msra.mxu0 %v4975
    %6027 = vmatprep.subr.bf16.mxu0 0
    %6028 = vmatpush1.bf16.msra.mxu0 %v4982
    %6029 = vmatprep.subr.bf16.mxu0 0
    %6030 = vmatpush1.bf16.msra.mxu0 %v4989
    %6031 = vmatprep.subr.bf16.mxu0 0
    %6032 = vmatpush1.bf16.msra.mxu0 %v4996
    %6033 = vmatprep.subr.bf16.mxu0 0
    %6034 = vmatpush1.bf16.msra.mxu0 %v5003
    %6035 = vmatprep.mubr.bf16.mxu0 %v3754
    %6036 = vmatmul.mubr.bf16.gmra.mrb[0].mxu0 %v3753
    %v6037 = vpop.f32.mrb[0].mxu0
    %v6038 = vadd.f32 %v5941, %v6037
    %v6039 = vpop.f32.mrb[0].mxu0
    %v6040 = vpop.f32.mrb[0].mxu0
    %v6041 = vadd.f32 %v5944, %v6040
    %v6042 = vpop.f32.mrb[0].mxu0
    %6043 = vmatprep.mubr.bf16.mxu0 %v3758
    %6044 = vmatmul.mubr.bf16.gmra.mrb[0].mxu0 %v3757
    %v6045 = vpop.f32.mrb[0].mxu0
    %v6046 = vadd.f32 %v5949, %v6045
    %v6047 = vpop.f32.mrb[0].mxu0
    %v6048 = vpop.f32.mrb[0].mxu0
    %v6049 = vadd.f32 %v5952, %v6048
    %v6050 = vpop.f32.mrb[0].mxu0
    %6051 = vmatprep.mubr.bf16.mxu0 %v3762
    %6052 = vmatmul.mubr.bf16.gmra.mrb[0].mxu0 %v3761
    %v6053 = vpop.f32.mrb[0].mxu0
    %v6054 = vadd.f32 %v5957, %v6053
    %v6055 = vpop.f32.mrb[0].mxu0
    %v6056 = vpop.f32.mrb[0].mxu0
    %v6057 = vadd.f32 %v5960, %v6056
    %v6058 = vpop.f32.mrb[0].mxu0
    %6059 = vmatprep.mubr.bf16.mxu0 %v3766
    %6060 = vmatmul.mubr.bf16.gmra.mrb[0].mxu0 %v3765
    %v6061 = vpop.f32.mrb[0].mxu0
    %v6062 = vadd.f32 %v5965, %v6061
    %v6063 = vpop.f32.mrb[0].mxu0
    %v6064 = vpop.f32.mrb[0].mxu0
    %v6065 = vadd.f32 %v5968, %v6064
    %v6066 = vpop.f32.mrb[0].mxu0
    %6067 = vmatprep.mubr.bf16.mxu0 %v3770
    %6068 = vmatmul.mubr.bf16.gmra.mrb[0].mxu0 %v3769
    %v6069 = vpop.f32.mrb[0].mxu0
    %v6070 = vadd.f32 %v5973, %v6069
    %v6071 = vpop.f32.mrb[0].mxu0
    %v6072 = vpop.f32.mrb[0].mxu0
    %v6073 = vadd.f32 %v5976, %v6072
    %v6074 = vpop.f32.mrb[0].mxu0
    %6075 = vmatprep.mubr.bf16.mxu0 %v3774
    %6076 = vmatmul.mubr.bf16.gmra.mrb[0].mxu0 %v3773
    %v6077 = vpop.f32.mrb[0].mxu0
    %v6078 = vadd.f32 %v5981, %v6077
    %v6079 = vpop.f32.mrb[0].mxu0
    %v6080 = vpop.f32.mrb[0].mxu0
    %v6081 = vadd.f32 %v5984, %v6080
    %v6082 = vpop.f32.mrb[0].mxu0
    %6083 = vmatprep.mubr.bf16.mxu0 %v3778
    %6084 = vmatmul.mubr.bf16.gmra.mrb[0].mxu0 %v3777
    %v6085 = vpop.f32.mrb[0].mxu0
    %v6086 = vadd.f32 %v5989, %v6085
    %v6087 = vpop.f32.mrb[0].mxu0
    %v6088 = vpop.f32.mrb[0].mxu0
    %v6089 = vadd.f32 %v5992, %v6088
    %v6090 = vpop.f32.mrb[0].mxu0
    %6091 = vmatprep.mubr.bf16.mxu0 %v3782
    %6092 = vmatmul.mubr.bf16.gmra.mrb[0].mxu0 %v3781
    %v6093 = vpop.f32.mrb[0].mxu0
    %v6094 = vadd.f32 %v5997, %v6093
    %v6095 = vpop.f32.mrb[0].mxu0
    %v6096 = vpop.f32.mrb[0].mxu0
    %v6097 = vadd.f32 %v6000, %v6096
    %v6098 = vpop.f32.mrb[0].mxu0
    %6099 = vdwg.mxu0
    %v6100 = vsub.f32 0.0, %v5376
    %v6101 = vsub.f32 0.0, %v5378
    %v6102 = vsub.f32 0.0, %v5602
    %v6103 = vsub.f32 0.0, %v5604
    %v6104 = vsub.f32 0.0, %v5828
    %v6105 = vsub.f32 0.0, %v5830
    %v6106 = vsub.f32 0.0, %v6038
    %v6107 = vsub.f32 0.0, %v5380
    %v6108 = vsub.f32 0.0, %v5382
    %v6109 = vsub.f32 0.0, %v5606
    %v6110 = vsub.f32 0.0, %v5608
    %v6111 = vsub.f32 0.0, %v5832
    %v6112 = vsub.f32 0.0, %v5834
    %v6113 = vsub.f32 0.0, %v6041
    %v6114 = vsub.f32 0.0, %v5386
    %v6115 = vsub.f32 0.0, %v5388
    %v6116 = vsub.f32 0.0, %v5612
    %v6117 = vsub.f32 0.0, %v5614
    %v6118 = vsub.f32 0.0, %v5838
    %v6119 = vsub.f32 0.0, %v5840
    %v6120 = vsub.f32 0.0, %v6046
    %v6121 = vsub.f32 0.0, %v5390
    %v6122 = vsub.f32 0.0, %v5392
    %v6123 = vsub.f32 0.0, %v5616
    %v6124 = vsub.f32 0.0, %v5618
    %v6125 = vsub.f32 0.0, %v5842
    %v6126 = vsub.f32 0.0, %v5844
    %v6127 = vsub.f32 0.0, %v6049
    %v6128 = vsub.f32 0.0, %v5396
    %v6129 = vsub.f32 0.0, %v5398
    %v6130 = vsub.f32 0.0, %v5622
    %v6131 = vsub.f32 0.0, %v5624
    %v6132 = vsub.f32 0.0, %v5848
    %v6133 = vsub.f32 0.0, %v5850
    %v6134 = vsub.f32 0.0, %v6054
    %v6135 = vsub.f32 0.0, %v5400
    %v6136 = vsub.f32 0.0, %v5402
    %v6137 = vsub.f32 0.0, %v5626
    %v6138 = vsub.f32 0.0, %v5628
    %v6139 = vsub.f32 0.0, %v5852
    %v6140 = vsub.f32 0.0, %v5854
    %v6141 = vsub.f32 0.0, %v6057
    %v6142 = vsub.f32 0.0, %v5406
    %v6143 = vsub.f32 0.0, %v5408
    %v6144 = vsub.f32 0.0, %v5632
    %v6145 = vsub.f32 0.0, %v5634
    %v6146 = vsub.f32 0.0, %v5858
    %v6147 = vsub.f32 0.0, %v5860
    %v6148 = vsub.f32 0.0, %v6062
    %v6149 = vsub.f32 0.0, %v5410
    %v6150 = vsub.f32 0.0, %v5412
    %v6151 = vsub.f32 0.0, %v5636
    %v6152 = vsub.f32 0.0, %v5638
    %v6153 = vsub.f32 0.0, %v5862
    %v6154 = vsub.f32 0.0, %v5864
    %v6155 = vsub.f32 0.0, %v6065
    %v6156 = vsub.f32 0.0, %v5416
    %v6157 = vsub.f32 0.0, %v5418
    %v6158 = vsub.f32 0.0, %v5642
    %v6159 = vsub.f32 0.0, %v5644
    %v6160 = vsub.f32 0.0, %v5868
    %v6161 = vsub.f32 0.0, %v5870
    %v6162 = vsub.f32 0.0, %v6070
    %v6163 = vsub.f32 0.0, %v5420
    %v6164 = vsub.f32 0.0, %v5422
    %v6165 = vsub.f32 0.0, %v5646
    %v6166 = vsub.f32 0.0, %v5648
    %v6167 = vsub.f32 0.0, %v5872
    %v6168 = vsub.f32 0.0, %v5874
    %v6169 = vsub.f32 0.0, %v6073
    %v6170 = vsub.f32 0.0, %v5426
    %v6171 = vsub.f32 0.0, %v5428
    %v6172 = vsub.f32 0.0, %v5652
    %v6173 = vsub.f32 0.0, %v5654
    %v6174 = vsub.f32 0.0, %v5878
    %v6175 = vsub.f32 0.0, %v5880
    %v6176 = vsub.f32 0.0, %v6078
    %v6177 = vsub.f32 0.0, %v5430
    %v6178 = vsub.f32 0.0, %v5432
    %v6179 = vsub.f32 0.0, %v5656
    %v6180 = vsub.f32 0.0, %v5658
    %v6181 = vsub.f32 0.0, %v5882
    %v6182 = vsub.f32 0.0, %v5884
    %v6183 = vsub.f32 0.0, %v6081
    %v6184 = vsub.f32 0.0, %v5436
    %v6185 = vsub.f32 0.0, %v5438
    %v6186 = vsub.f32 0.0, %v5662
    %v6187 = vsub.f32 0.0, %v5664
    %v6188 = vsub.f32 0.0, %v5888
    %v6189 = vsub.f32 0.0, %v5890
    %v6190 = vsub.f32 0.0, %v6086
    %v6191 = vsub.f32 0.0, %v5440
    %v6192 = vsub.f32 0.0, %v5442
    %v6193 = vsub.f32 0.0, %v5666
    %v6194 = vsub.f32 0.0, %v5668
    %v6195 = vsub.f32 0.0, %v5892
    %v6196 = vsub.f32 0.0, %v5894
    %v6197 = vsub.f32 0.0, %v6089
    %v6198 = vsub.f32 0.0, %v5446
    %v6199 = vsub.f32 0.0, %v5448
    %v6200 = vsub.f32 0.0, %v5672
    %v6201 = vsub.f32 0.0, %v5674
    %v6202 = vsub.f32 0.0, %v5898
    %v6203 = vsub.f32 0.0, %v5900
    %v6204 = vsub.f32 0.0, %v6094
    %v6205 = vsub.f32 0.0, %v5450
    %v6206 = vsub.f32 0.0, %v5452
    %v6207 = vsub.f32 0.0, %v5676
    %v6208 = vsub.f32 0.0, %v5678
    %v6209 = vsub.f32 0.0, %v5902
    %v6210 = vsub.f32 0.0, %v5904
    %v6211 = vsub.f32 0.0, %v6097
    %v6212 = vmul.f32 %v6100, 1.442695
    %v6213 = vpow.pop %v6212
    %v6214 = vmul.f32 %v6101, 1.442695
    %v6215 = vpow.pop %v6214
    %v6216 = vmul.f32 %v6102, 1.442695
    %v6217 = vpow.pop %v6216
    %v6218 = vmul.f32 %v6103, 1.442695
    %v6219 = vpow.pop %v6218
    %v6220 = vmul.f32 %v6104, 1.442695
    %v6221 = vpow.pop %v6220
    %v6222 = vmul.f32 %v6105, 1.442695
    %v6223 = vpow.pop %v6222
    %v6224 = vmul.f32 %v6106, 1.442695
    %v6225 = vpow.pop %v6224
    %v6226 = vmul.f32 %v6107, 1.442695
    %v6227 = vpow.pop %v6226
    %v6228 = vmul.f32 %v6108, 1.442695
    %v6229 = vpow.pop %v6228
    %v6230 = vmul.f32 %v6109, 1.442695
    %v6231 = vpow.pop %v6230
    %v6232 = vmul.f32 %v6110, 1.442695
    %v6233 = vpow.pop %v6232
    %v6234 = vmul.f32 %v6111, 1.442695
    %v6235 = vpow.pop %v6234
    %v6236 = vmul.f32 %v6112, 1.442695
    %v6237 = vpow.pop %v6236
    %v6238 = vmul.f32 %v6113, 1.442695
    %v6239 = vpow.pop %v6238
    %v6240 = vmul.f32 %v6114, 1.442695
    %v6241 = vpow.pop %v6240
    %v6242 = vmul.f32 %v6115, 1.442695
    %v6243 = vpow.pop %v6242
    %v6244 = vmul.f32 %v6116, 1.442695
    %v6245 = vpow.pop %v6244
    %v6246 = vmul.f32 %v6117, 1.442695
    %v6247 = vpow.pop %v6246
    %v6248 = vmul.f32 %v6118, 1.442695
    %v6249 = vpow.pop %v6248
    %v6250 = vmul.f32 %v6119, 1.442695
    %v6251 = vpow.pop %v6250
    %v6252 = vmul.f32 %v6120, 1.442695
    %v6253 = vpow.pop %v6252
    %v6254 = vmul.f32 %v6121, 1.442695
    %v6255 = vpow.pop %v6254
    %v6256 = vmul.f32 %v6122, 1.442695
    %v6257 = vpow.pop %v6256
    %v6258 = vmul.f32 %v6123, 1.442695
    %v6259 = vpow.pop %v6258
    %v6260 = vmul.f32 %v6124, 1.442695
    %v6261 = vpow.pop %v6260
    %v6262 = vmul.f32 %v6125, 1.442695
    %v6263 = vpow.pop %v6262
    %v6264 = vmul.f32 %v6126, 1.442695
    %v6265 = vpow.pop %v6264
    %v6266 = vmul.f32 %v6127, 1.442695
    %v6267 = vpow.pop %v6266
    %v6268 = vmul.f32 %v6128, 1.442695
    %v6269 = vpow.pop %v6268
    %v6270 = vmul.f32 %v6129, 1.442695
    %v6271 = vpow.pop %v6270
    %v6272 = vmul.f32 %v6130, 1.442695
    %v6273 = vpow.pop %v6272
    %v6274 = vmul.f32 %v6131, 1.442695
    %v6275 = vpow.pop %v6274
    %v6276 = vmul.f32 %v6132, 1.442695
    %v6277 = vpow.pop %v6276
    %v6278 = vmul.f32 %v6133, 1.442695
    %v6279 = vpow.pop %v6278
    %v6280 = vmul.f32 %v6134, 1.442695
    %v6281 = vpow.pop %v6280
    %v6282 = vmul.f32 %v6135, 1.442695
    %v6283 = vpow.pop %v6282
    %v6284 = vmul.f32 %v6136, 1.442695
    %v6285 = vpow.pop %v6284
    %v6286 = vmul.f32 %v6137, 1.442695
    %v6287 = vpow.pop %v6286
    %v6288 = vmul.f32 %v6138, 1.442695
    %v6289 = vpow.pop %v6288
    %v6290 = vmul.f32 %v6139, 1.442695
    %v6291 = vpow.pop %v6290
    %v6292 = vmul.f32 %v6140, 1.442695
    %v6293 = vpow.pop %v6292
    %v6294 = vmul.f32 %v6141, 1.442695
    %v6295 = vpow.pop %v6294
    %v6296 = vmul.f32 %v6142, 1.442695
    %v6297 = vpow.pop %v6296
    %v6298 = vmul.f32 %v6143, 1.442695
    %v6299 = vpow.pop %v6298
    %v6300 = vmul.f32 %v6144, 1.442695
    %v6301 = vpow.pop %v6300
    %v6302 = vmul.f32 %v6145, 1.442695
    %v6303 = vpow.pop %v6302
    %v6304 = vmul.f32 %v6146, 1.442695
    %v6305 = vpow.pop %v6304
    %v6306 = vmul.f32 %v6147, 1.442695
    %v6307 = vpow.pop %v6306
    %v6308 = vmul.f32 %v6148, 1.442695
    %v6309 = vpow.pop %v6308
    %v6310 = vmul.f32 %v6149, 1.442695
    %v6311 = vpow.pop %v6310
    %v6312 = vmul.f32 %v6150, 1.442695
    %v6313 = vpow.pop %v6312
    %v6314 = vmul.f32 %v6151, 1.442695
    %v6315 = vpow.pop %v6314
    %v6316 = vmul.f32 %v6152, 1.442695
    %v6317 = vpow.pop %v6316
    %v6318 = vmul.f32 %v6153, 1.442695
    %v6319 = vpow.pop %v6318
    %v6320 = vmul.f32 %v6154, 1.442695
    %v6321 = vpow.pop %v6320
    %v6322 = vmul.f32 %v6155, 1.442695
    %v6323 = vpow.pop %v6322
    %v6324 = vmul.f32 %v6156, 1.442695
    %v6325 = vpow.pop %v6324
    %v6326 = vmul.f32 %v6157, 1.442695
    %v6327 = vpow.pop %v6326
    %v6328 = vmul.f32 %v6158, 1.442695
    %v6329 = vpow.pop %v6328
    %v6330 = vmul.f32 %v6159, 1.442695
    %v6331 = vpow.pop %v6330
    %v6332 = vmul.f32 %v6160, 1.442695
    %v6333 = vpow.pop %v6332
    %v6334 = vmul.f32 %v6161, 1.442695
    %v6335 = vpow.pop %v6334
    %v6336 = vmul.f32 %v6162, 1.442695
    %v6337 = vpow.pop %v6336
    %v6338 = vmul.f32 %v6163, 1.442695
    %v6339 = vpow.pop %v6338
    %v6340 = vmul.f32 %v6164, 1.442695
    %v6341 = vpow.pop %v6340
    %v6342 = vmul.f32 %v6165, 1.442695
    %v6343 = vpow.pop %v6342
    %v6344 = vmul.f32 %v6166, 1.442695
    %v6345 = vpow.pop %v6344
    %v6346 = vmul.f32 %v6167, 1.442695
    %v6347 = vpow.pop %v6346
    %v6348 = vmul.f32 %v6168, 1.442695
    %v6349 = vpow.pop %v6348
    %v6350 = vmul.f32 %v6169, 1.442695
    %v6351 = vpow.pop %v6350
    %v6352 = vmul.f32 %v6170, 1.442695
    %v6353 = vpow.pop %v6352
    %v6354 = vmul.f32 %v6171, 1.442695
    %v6355 = vpow.pop %v6354
    %v6356 = vmul.f32 %v6172, 1.442695
    %v6357 = vpow.pop %v6356
    %v6358 = vmul.f32 %v6173, 1.442695
    %v6359 = vpow.pop %v6358
    %v6360 = vmul.f32 %v6174, 1.442695
    %v6361 = vpow.pop %v6360
    %v6362 = vmul.f32 %v6175, 1.442695
    %v6363 = vpow.pop %v6362
    %v6364 = vmul.f32 %v6176, 1.442695
    %v6365 = vpow.pop %v6364
    %v6366 = vmul.f32 %v6177, 1.442695
    %v6367 = vpow.pop %v6366
    %v6368 = vmul.f32 %v6178, 1.442695
    %v6369 = vpow.pop %v6368
    %v6370 = vmul.f32 %v6179, 1.442695
    %v6371 = vpow.pop %v6370
    %v6372 = vmul.f32 %v6180, 1.442695
    %v6373 = vpow.pop %v6372
    %v6374 = vmul.f32 %v6181, 1.442695
    %v6375 = vpow.pop %v6374
    %v6376 = vmul.f32 %v6182, 1.442695
    %v6377 = vpow.pop %v6376
    %v6378 = vmul.f32 %v6183, 1.442695
    %v6379 = vpow.pop %v6378
    %v6380 = vmul.f32 %v6184, 1.442695
    %v6381 = vpow.pop %v6380
    %v6382 = vmul.f32 %v6185, 1.442695
    %v6383 = vpow.pop %v6382
    %v6384 = vmul.f32 %v6186, 1.442695
    %v6385 = vpow.pop %v6384
    %v6386 = vmul.f32 %v6187, 1.442695
    %v6387 = vpow.pop %v6386
    %v6388 = vmul.f32 %v6188, 1.442695
    %v6389 = vpow.pop %v6388
    %v6390 = vmul.f32 %v6189, 1.442695
    %v6391 = vpow.pop %v6390
    %v6392 = vmul.f32 %v6190, 1.442695
    %v6393 = vpow.pop %v6392
    %v6394 = vmul.f32 %v6191, 1.442695
    %v6395 = vpow.pop %v6394
    %v6396 = vmul.f32 %v6192, 1.442695
    %v6397 = vpow.pop %v6396
    %v6398 = vmul.f32 %v6193, 1.442695
    %v6399 = vpow.pop %v6398
    %v6400 = vmul.f32 %v6194, 1.442695
    %v6401 = vpow.pop %v6400
    %v6402 = vmul.f32 %v6195, 1.442695
    %v6403 = vpow.pop %v6402
    %v6404 = vmul.f32 %v6196, 1.442695
    %v6405 = vpow.pop %v6404
    %v6406 = vmul.f32 %v6197, 1.442695
    %v6407 = vpow.pop %v6406
    %v6408 = vmul.f32 %v6198, 1.442695
    %v6409 = vpow.pop %v6408
    %v6410 = vmul.f32 %v6199, 1.442695
    %v6411 = vpow.pop %v6410
    %v6412 = vmul.f32 %v6200, 1.442695
    %v6413 = vpow.pop %v6412
    %v6414 = vmul.f32 %v6201, 1.442695
    %v6415 = vpow.pop %v6414
    %v6416 = vmul.f32 %v6202, 1.442695
    %v6417 = vpow.pop %v6416
    %v6418 = vmul.f32 %v6203, 1.442695
    %v6419 = vpow.pop %v6418
    %v6420 = vmul.f32 %v6204, 1.442695
    %v6421 = vpow.pop %v6420
    %v6422 = vmul.f32 %v6205, 1.442695
    %v6423 = vpow.pop %v6422
    %v6424 = vmul.f32 %v6206, 1.442695
    %v6425 = vpow.pop %v6424
    %v6426 = vmul.f32 %v6207, 1.442695
    %v6427 = vpow.pop %v6426
    %v6428 = vmul.f32 %v6208, 1.442695
    %v6429 = vpow.pop %v6428
    %v6430 = vmul.f32 %v6209, 1.442695
    %v6431 = vpow.pop %v6430
    %v6432 = vmul.f32 %v6210, 1.442695
    %v6433 = vpow.pop %v6432
    %v6434 = vmul.f32 %v6211, 1.442695
    %v6435 = vpow.pop %v6434
    %v6436 = vadd.f32 %v6213, 1.0
    %v6437 = vadd.f32 %v6215, 1.0
    %v6438 = vadd.f32 %v6217, 1.0
    %v6439 = vadd.f32 %v6219, 1.0
    %v6440 = vadd.f32 %v6221, 1.0
    %v6441 = vadd.f32 %v6223, 1.0
    %v6442 = vadd.f32 %v6225, 1.0
    %v6443 = vadd.f32 %v6227, 1.0
    %v6444 = vadd.f32 %v6229, 1.0
    %v6445 = vadd.f32 %v6231, 1.0
    %v6446 = vadd.f32 %v6233, 1.0
    %v6447 = vadd.f32 %v6235, 1.0
    %v6448 = vadd.f32 %v6237, 1.0
    %v6449 = vadd.f32 %v6239, 1.0
    %v6450 = vadd.f32 %v6241, 1.0
    %v6451 = vadd.f32 %v6243, 1.0
    %v6452 = vadd.f32 %v6245, 1.0
    %v6453 = vadd.f32 %v6247, 1.0
    %v6454 = vadd.f32 %v6249, 1.0
    %v6455 = vadd.f32 %v6251, 1.0
    %v6456 = vadd.f32 %v6253, 1.0
    %v6457 = vadd.f32 %v6255, 1.0
    %v6458 = vadd.f32 %v6257, 1.0
    %v6459 = vadd.f32 %v6259, 1.0
    %v6460 = vadd.f32 %v6261, 1.0
    %v6461 = vadd.f32 %v6263, 1.0
    %v6462 = vadd.f32 %v6265, 1.0
    %v6463 = vadd.f32 %v6267, 1.0
    %v6464 = vadd.f32 %v6269, 1.0
    %v6465 = vadd.f32 %v6271, 1.0
    %v6466 = vadd.f32 %v6273, 1.0
    %v6467 = vadd.f32 %v6275, 1.0
    %v6468 = vadd.f32 %v6277, 1.0
    %v6469 = vadd.f32 %v6279, 1.0
    %v6470 = vadd.f32 %v6281, 1.0
    %v6471 = vadd.f32 %v6283, 1.0
    %v6472 = vadd.f32 %v6285, 1.0
    %v6473 = vadd.f32 %v6287, 1.0
    %v6474 = vadd.f32 %v6289, 1.0
    %v6475 = vadd.f32 %v6291, 1.0
    %v6476 = vadd.f32 %v6293, 1.0
    %v6477 = vadd.f32 %v6295, 1.0
    %v6478 = vadd.f32 %v6297, 1.0
    %v6479 = vadd.f32 %v6299, 1.0
    %v6480 = vadd.f32 %v6301, 1.0
    %v6481 = vadd.f32 %v6303, 1.0
    %v6482 = vadd.f32 %v6305, 1.0
    %v6483 = vadd.f32 %v6307, 1.0
    %v6484 = vadd.f32 %v6309, 1.0
    %v6485 = vadd.f32 %v6311, 1.0
    %v6486 = vadd.f32 %v6313, 1.0
    %v6487 = vadd.f32 %v6315, 1.0
    %v6488 = vadd.f32 %v6317, 1.0
    %v6489 = vadd.f32 %v6319, 1.0
    %v6490 = vadd.f32 %v6321, 1.0
    %v6491 = vadd.f32 %v6323, 1.0
    %v6492 = vadd.f32 %v6325, 1.0
    %v6493 = vadd.f32 %v6327, 1.0
    %v6494 = vadd.f32 %v6329, 1.0
    %v6495 = vadd.f32 %v6331, 1.0
    %v6496 = vadd.f32 %v6333, 1.0
    %v6497 = vadd.f32 %v6335, 1.0
    %v6498 = vadd.f32 %v6337, 1.0
    %v6499 = vadd.f32 %v6339, 1.0
    %v6500 = vadd.f32 %v6341, 1.0
    %v6501 = vadd.f32 %v6343, 1.0
    %v6502 = vadd.f32 %v6345, 1.0
    %v6503 = vadd.f32 %v6347, 1.0
    %v6504 = vadd.f32 %v6349, 1.0
    %v6505 = vadd.f32 %v6351, 1.0
    %v6506 = vadd.f32 %v6353, 1.0
    %v6507 = vadd.f32 %v6355, 1.0
    %v6508 = vadd.f32 %v6357, 1.0
    %v6509 = vadd.f32 %v6359, 1.0
    %v6510 = vadd.f32 %v6361, 1.0
    %v6511 = vadd.f32 %v6363, 1.0
    %v6512 = vadd.f32 %v6365, 1.0
    %v6513 = vadd.f32 %v6367, 1.0
    %v6514 = vadd.f32 %v6369, 1.0
    %v6515 = vadd.f32 %v6371, 1.0
    %v6516 = vadd.f32 %v6373, 1.0
    %v6517 = vadd.f32 %v6375, 1.0
    %v6518 = vadd.f32 %v6377, 1.0
    %v6519 = vadd.f32 %v6379, 1.0
    %v6520 = vadd.f32 %v6381, 1.0
    %v6521 = vadd.f32 %v6383, 1.0
    %v6522 = vadd.f32 %v6385, 1.0
    %v6523 = vadd.f32 %v6387, 1.0
    %v6524 = vadd.f32 %v6389, 1.0
    %v6525 = vadd.f32 %v6391, 1.0
    %v6526 = vadd.f32 %v6393, 1.0
    %v6527 = vadd.f32 %v6395, 1.0
    %v6528 = vadd.f32 %v6397, 1.0
    %v6529 = vadd.f32 %v6399, 1.0
    %v6530 = vadd.f32 %v6401, 1.0
    %v6531 = vadd.f32 %v6403, 1.0
    %v6532 = vadd.f32 %v6405, 1.0
    %v6533 = vadd.f32 %v6407, 1.0
    %v6534 = vadd.f32 %v6409, 1.0
    %v6535 = vadd.f32 %v6411, 1.0
    %v6536 = vadd.f32 %v6413, 1.0
    %v6537 = vadd.f32 %v6415, 1.0
    %v6538 = vadd.f32 %v6417, 1.0
    %v6539 = vadd.f32 %v6419, 1.0
    %v6540 = vadd.f32 %v6421, 1.0
    %v6541 = vadd.f32 %v6423, 1.0
    %v6542 = vadd.f32 %v6425, 1.0
    %v6543 = vadd.f32 %v6427, 1.0
    %v6544 = vadd.f32 %v6429, 1.0
    %v6545 = vadd.f32 %v6431, 1.0
    %v6546 = vadd.f32 %v6433, 1.0
    %v6547 = vadd.f32 %v6435, 1.0
    %v6548 = vrcp.pop %v6436
    %v6549 = vrcp.pop %v6437
    %v6550 = vrcp.pop %v6438
    %v6551 = vrcp.pop %v6439
    %v6552 = vrcp.pop %v6440
    %v6553 = vrcp.pop %v6441
    %v6554 = vrcp.pop %v6442
    %v6555 = vrcp.pop %v6443
    %v6556 = vrcp.pop %v6444
    %v6557 = vrcp.pop %v6445
    %v6558 = vrcp.pop %v6446
    %v6559 = vrcp.pop %v6447
    %v6560 = vrcp.pop %v6448
    %v6561 = vrcp.pop %v6449
    %v6562 = vrcp.pop %v6450
    %v6563 = vrcp.pop %v6451
    %v6564 = vrcp.pop %v6452
    %v6565 = vrcp.pop %v6453
    %v6566 = vrcp.pop %v6454
    %v6567 = vrcp.pop %v6455
    %v6568 = vrcp.pop %v6456
    %v6569 = vrcp.pop %v6457
    %v6570 = vrcp.pop %v6458
    %v6571 = vrcp.pop %v6459
    %v6572 = vrcp.pop %v6460
    %v6573 = vrcp.pop %v6461
    %v6574 = vrcp.pop %v6462
    %v6575 = vrcp.pop %v6463
    %v6576 = vrcp.pop %v6464
    %v6577 = vrcp.pop %v6465
    %v6578 = vrcp.pop %v6466
    %v6579 = vrcp.pop %v6467
    %v6580 = vrcp.pop %v6468
    %v6581 = vrcp.pop %v6469
    %v6582 = vrcp.pop %v6470
    %v6583 = vrcp.pop %v6471
    %v6584 = vrcp.pop %v6472
    %v6585 = vrcp.pop %v6473
    %v6586 = vrcp.pop %v6474
    %v6587 = vrcp.pop %v6475
    %v6588 = vrcp.pop %v6476
    %v6589 = vrcp.pop %v6477
    %v6590 = vrcp.pop %v6478
    %v6591 = vrcp.pop %v6479
    %v6592 = vrcp.pop %v6480
    %v6593 = vrcp.pop %v6481
    %v6594 = vrcp.pop %v6482
    %v6595 = vrcp.pop %v6483
    %v6596 = vrcp.pop %v6484
    %v6597 = vrcp.pop %v6485
    %v6598 = vrcp.pop %v6486
    %v6599 = vrcp.pop %v6487
    %v6600 = vrcp.pop %v6488
    %v6601 = vrcp.pop %v6489
    %v6602 = vrcp.pop %v6490
    %v6603 = vrcp.pop %v6491
    %v6604 = vrcp.pop %v6492
    %v6605 = vrcp.pop %v6493
    %v6606 = vrcp.pop %v6494
    %v6607 = vrcp.pop %v6495
    %v6608 = vrcp.pop %v6496
    %v6609 = vrcp.pop %v6497
    %v6610 = vrcp.pop %v6498
    %v6611 = vrcp.pop %v6499
    %v6612 = vrcp.pop %v6500
    %v6613 = vrcp.pop %v6501
    %v6614 = vrcp.pop %v6502
    %v6615 = vrcp.pop %v6503
    %v6616 = vrcp.pop %v6504
    %v6617 = vrcp.pop %v6505
    %v6618 = vrcp.pop %v6506
    %v6619 = vrcp.pop %v6507
    %v6620 = vrcp.pop %v6508
    %v6621 = vrcp.pop %v6509
    %v6622 = vrcp.pop %v6510
    %v6623 = vrcp.pop %v6511
    %v6624 = vrcp.pop %v6512
    %v6625 = vrcp.pop %v6513
    %v6626 = vrcp.pop %v6514
    %v6627 = vrcp.pop %v6515
    %v6628 = vrcp.pop %v6516
    %v6629 = vrcp.pop %v6517
    %v6630 = vrcp.pop %v6518
    %v6631 = vrcp.pop %v6519
    %v6632 = vrcp.pop %v6520
    %v6633 = vrcp.pop %v6521
    %v6634 = vrcp.pop %v6522
    %v6635 = vrcp.pop %v6523
    %v6636 = vrcp.pop %v6524
    %v6637 = vrcp.pop %v6525
    %v6638 = vrcp.pop %v6526
    %v6639 = vrcp.pop %v6527
    %v6640 = vrcp.pop %v6528
    %v6641 = vrcp.pop %v6529
    %v6642 = vrcp.pop %v6530
    %v6643 = vrcp.pop %v6531
    %v6644 = vrcp.pop %v6532
    %v6645 = vrcp.pop %v6533
    %v6646 = vrcp.pop %v6534
    %v6647 = vrcp.pop %v6535
    %v6648 = vrcp.pop %v6536
    %v6649 = vrcp.pop %v6537
    %v6650 = vrcp.pop %v6538
    %v6651 = vrcp.pop %v6539
    %v6652 = vrcp.pop %v6540
    %v6653 = vrcp.pop %v6541
    %v6654 = vrcp.pop %v6542
    %v6655 = vrcp.pop %v6543
    %v6656 = vrcp.pop %v6544
    %v6657 = vrcp.pop %v6545
    %v6658 = vrcp.pop %v6546
    %v6659 = vrcp.pop %v6547
    %v6660 = vpack.c.bf16 %v6555, %v6548
    %v6661 = vpack.c.bf16 %v6556, %v6549
    %v6662 = vpack.c.bf16 %v6557, %v6550
    %v6663 = vpack.c.bf16 %v6558, %v6551
    %v6664 = vpack.c.bf16 %v6559, %v6552
    %v6665 = vpack.c.bf16 %v6560, %v6553
    %v6666 = vpack.c.bf16 %v6561, %v6554
    %v6667 = vpack.c.bf16 %v6569, %v6562
    %v6668 = vpack.c.bf16 %v6570, %v6563
    %v6669 = vpack.c.bf16 %v6571, %v6564
    %v6670 = vpack.c.bf16 %v6572, %v6565
    %v6671 = vpack.c.bf16 %v6573, %v6566
    %v6672 = vpack.c.bf16 %v6574, %v6567
    %v6673 = vpack.c.bf16 %v6575, %v6568
    %v6674 = vpack.c.bf16 %v6583, %v6576
    %v6675 = vpack.c.bf16 %v6584, %v6577
    %v6676 = vpack.c.bf16 %v6585, %v6578
    %v6677 = vpack.c.bf16 %v6586, %v6579
    %v6678 = vpack.c.bf16 %v6587, %v6580
    %v6679 = vpack.c.bf16 %v6588, %v6581
    %v6680 = vpack.c.bf16 %v6589, %v6582
    %v6681 = vpack.c.bf16 %v6597, %v6590
    %v6682 = vpack.c.bf16 %v6598, %v6591
    %v6683 = vpack.c.bf16 %v6599, %v6592
    %v6684 = vpack.c.bf16 %v6600, %v6593
    %v6685 = vpack.c.bf16 %v6601, %v6594
    %v6686 = vpack.c.bf16 %v6602, %v6595
    %v6687 = vpack.c.bf16 %v6603, %v6596
    %v6688 = vpack.c.bf16 %v6611, %v6604
    %v6689 = vpack.c.bf16 %v6612, %v6605
    %v6690 = vpack.c.bf16 %v6613, %v6606
    %v6691 = vpack.c.bf16 %v6614, %v6607
    %v6692 = vpack.c.bf16 %v6615, %v6608
    %v6693 = vpack.c.bf16 %v6616, %v6609
    %v6694 = vpack.c.bf16 %v6617, %v6610
    %v6695 = vpack.c.bf16 %v6625, %v6618
    %v6696 = vpack.c.bf16 %v6626, %v6619
    %v6697 = vpack.c.bf16 %v6627, %v6620
    %v6698 = vpack.c.bf16 %v6628, %v6621
    %v6699 = vpack.c.bf16 %v6629, %v6622
    %v6700 = vpack.c.bf16 %v6630, %v6623
    %v6701 = vpack.c.bf16 %v6631, %v6624
    %v6702 = vpack.c.bf16 %v6639, %v6632
    %v6703 = vpack.c.bf16 %v6640, %v6633
    %v6704 = vpack.c.bf16 %v6641, %v6634
    %v6705 = vpack.c.bf16 %v6642, %v6635
    %v6706 = vpack.c.bf16 %v6643, %v6636
    %v6707 = vpack.c.bf16 %v6644, %v6637
    %v6708 = vpack.c.bf16 %v6645, %v6638
    %v6709 = vpack.c.bf16 %v6653, %v6646
    %v6710 = vpack.c.bf16 %v6654, %v6647
    %v6711 = vpack.c.bf16 %v6655, %v6648
    %v6712 = vpack.c.bf16 %v6656, %v6649
    %v6713 = vpack.c.bf16 %v6657, %v6650
    %v6714 = vpack.c.bf16 %v6658, %v6651
    %v6715 = vpack.c.bf16 %v6659, %v6652
    %v6772 = vunpack.c.l.b16 %v6660
    %v6773 = vunpack.c.l.b16 %v6661
    %v6774 = vunpack.c.l.b16 %v6662
    %v6775 = vunpack.c.l.b16 %v6663
    %v6776 = vunpack.c.l.b16 %v6664
    %v6777 = vunpack.c.l.b16 %v6665
    %v6778 = vunpack.c.l.b16 %v6666
    %v6779 = vunpack.c.h.b16 %v6660
    %v6780 = vunpack.c.h.b16 %v6661
    %v6781 = vunpack.c.h.b16 %v6662
    %v6782 = vunpack.c.h.b16 %v6663
    %v6783 = vunpack.c.h.b16 %v6664
    %v6784 = vunpack.c.h.b16 %v6665
    %v6785 = vunpack.c.h.b16 %v6666
    %v6786 = vunpack.c.l.b16 %v6667
    %v6787 = vunpack.c.l.b16 %v6668
    %v6788 = vunpack.c.l.b16 %v6669
    %v6789 = vunpack.c.l.b16 %v6670
    %v6790 = vunpack.c.l.b16 %v6671
    %v6791 = vunpack.c.l.b16 %v6672
    %v6792 = vunpack.c.l.b16 %v6673
    %v6793 = vunpack.c.h.b16 %v6667
    %v6794 = vunpack.c.h.b16 %v6668
    %v6795 = vunpack.c.h.b16 %v6669
    %v6796 = vunpack.c.h.b16 %v6670
    %v6797 = vunpack.c.h.b16 %v6671
    %v6798 = vunpack.c.h.b16 %v6672
    %v6799 = vunpack.c.h.b16 %v6673
    %v6800 = vunpack.c.l.b16 %v6674
    %v6801 = vunpack.c.l.b16 %v6675
    %v6802 = vunpack.c.l.b16 %v6676
    %v6803 = vunpack.c.l.b16 %v6677
    %v6804 = vunpack.c.l.b16 %v6678
    %v6805 = vunpack.c.l.b16 %v6679
    %v6806 = vunpack.c.l.b16 %v6680
    %v6807 = vunpack.c.h.b16 %v6674
    %v6808 = vunpack.c.h.b16 %v6675
    %v6809 = vunpack.c.h.b16 %v6676
    %v6810 = vunpack.c.h.b16 %v6677
    %v6811 = vunpack.c.h.b16 %v6678
    %v6812 = vunpack.c.h.b16 %v6679
    %v6813 = vunpack.c.h.b16 %v6680
    %v6814 = vunpack.c.l.b16 %v6681
    %v6815 = vunpack.c.l.b16 %v6682
    %v6816 = vunpack.c.l.b16 %v6683
    %v6817 = vunpack.c.l.b16 %v6684
    %v6818 = vunpack.c.l.b16 %v6685
    %v6819 = vunpack.c.l.b16 %v6686
    %v6820 = vunpack.c.l.b16 %v6687
    %v6821 = vunpack.c.h.b16 %v6681
    %v6822 = vunpack.c.h.b16 %v6682
    %v6823 = vunpack.c.h.b16 %v6683
    %v6824 = vunpack.c.h.b16 %v6684
    %v6825 = vunpack.c.h.b16 %v6685
    %v6826 = vunpack.c.h.b16 %v6686
    %v6827 = vunpack.c.h.b16 %v6687
    %v6828 = vunpack.c.l.b16 %v6688
    %v6829 = vunpack.c.l.b16 %v6689
    %v6830 = vunpack.c.l.b16 %v6690
    %v6831 = vunpack.c.l.b16 %v6691
    %v6832 = vunpack.c.l.b16 %v6692
    %v6833 = vunpack.c.l.b16 %v6693
    %v6834 = vunpack.c.l.b16 %v6694
    %v6835 = vunpack.c.h.b16 %v6688
    %v6836 = vunpack.c.h.b16 %v6689
    %v6837 = vunpack.c.h.b16 %v6690
    %v6838 = vunpack.c.h.b16 %v6691
    %v6839 = vunpack.c.h.b16 %v6692
    %v6840 = vunpack.c.h.b16 %v6693
    %v6841 = vunpack.c.h.b16 %v6694
    %v6842 = vunpack.c.l.b16 %v6695
    %v6843 = vunpack.c.l.b16 %v6696
    %v6844 = vunpack.c.l.b16 %v6697
    %v6845 = vunpack.c.l.b16 %v6698
    %v6846 = vunpack.c.l.b16 %v6699
    %v6847 = vunpack.c.l.b16 %v6700
    %v6848 = vunpack.c.l.b16 %v6701
    %v6849 = vunpack.c.h.b16 %v6695
    %v6850 = vunpack.c.h.b16 %v6696
    %v6851 = vunpack.c.h.b16 %v6697
    %v6852 = vunpack.c.h.b16 %v6698
    %v6853 = vunpack.c.h.b16 %v6699
    %v6854 = vunpack.c.h.b16 %v6700
    %v6855 = vunpack.c.h.b16 %v6701
    %v6856 = vunpack.c.l.b16 %v6702
    %v6857 = vunpack.c.l.b16 %v6703
    %v6858 = vunpack.c.l.b16 %v6704
    %v6859 = vunpack.c.l.b16 %v6705
    %v6860 = vunpack.c.l.b16 %v6706
    %v6861 = vunpack.c.l.b16 %v6707
    %v6862 = vunpack.c.l.b16 %v6708
    %v6863 = vunpack.c.h.b16 %v6702
    %v6864 = vunpack.c.h.b16 %v6703
    %v6865 = vunpack.c.h.b16 %v6704
    %v6866 = vunpack.c.h.b16 %v6705
    %v6867 = vunpack.c.h.b16 %v6706
    %v6868 = vunpack.c.h.b16 %v6707
    %v6869 = vunpack.c.h.b16 %v6708
    %v6870 = vunpack.c.l.b16 %v6709
    %v6871 = vunpack.c.l.b16 %v6710
    %v6872 = vunpack.c.l.b16 %v6711
    %v6873 = vunpack.c.l.b16 %v6712
    %v6874 = vunpack.c.l.b16 %v6713
    %v6875 = vunpack.c.l.b16 %v6714
    %v6876 = vunpack.c.l.b16 %v6715
    %v6877 = vunpack.c.h.b16 %v6709
    %v6878 = vunpack.c.h.b16 %v6710
    %v6879 = vunpack.c.h.b16 %v6711
    %v6880 = vunpack.c.h.b16 %v6712
    %v6881 = vunpack.c.h.b16 %v6713
    %v6882 = vunpack.c.h.b16 %v6714
    %v6883 = vunpack.c.h.b16 %v6715
    %v6884 = vpack.c.b16 %v6773, %v6772
    %v6885 = vpack.c.b16 %v6775, %v6774
    %v6886 = vpack.c.b16 %v6777, %v6776
    %v6887 = vpack.c.b16 %v6778, %v6778
    %v6888 = vpack.c.b16 %v6780, %v6779
    %v6889 = vpack.c.b16 %v6782, %v6781
    %v6890 = vpack.c.b16 %v6784, %v6783
    %v6891 = vpack.c.b16 %v6785, %v6785
    %v6892 = vpack.c.b16 %v6787, %v6786
    %v6893 = vpack.c.b16 %v6789, %v6788
    %v6894 = vpack.c.b16 %v6791, %v6790
    %v6895 = vpack.c.b16 %v6792, %v6792
    %v6896 = vpack.c.b16 %v6794, %v6793
    %v6897 = vpack.c.b16 %v6796, %v6795
    %v6898 = vpack.c.b16 %v6798, %v6797
    %v6899 = vpack.c.b16 %v6799, %v6799
    %v6900 = vpack.c.b16 %v6801, %v6800
    %v6901 = vpack.c.b16 %v6803, %v6802
    %v6902 = vpack.c.b16 %v6805, %v6804
    %v6903 = vpack.c.b16 %v6806, %v6806
    %v6904 = vpack.c.b16 %v6808, %v6807
    %v6905 = vpack.c.b16 %v6810, %v6809
    %v6906 = vpack.c.b16 %v6812, %v6811
    %v6907 = vpack.c.b16 %v6813, %v6813
    %v6908 = vpack.c.b16 %v6815, %v6814
    %v6909 = vpack.c.b16 %v6817, %v6816
    %v6910 = vpack.c.b16 %v6819, %v6818
    %v6911 = vpack.c.b16 %v6820, %v6820
    %v6912 = vpack.c.b16 %v6822, %v6821
    %v6913 = vpack.c.b16 %v6824, %v6823
    %v6914 = vpack.c.b16 %v6826, %v6825
    %v6915 = vpack.c.b16 %v6827, %v6827
    %v6916 = vpack.c.b16 %v6829, %v6828
    %v6917 = vpack.c.b16 %v6831, %v6830
    %v6918 = vpack.c.b16 %v6833, %v6832
    %v6919 = vpack.c.b16 %v6834, %v6834
    %v6920 = vpack.c.b16 %v6836, %v6835
    %v6921 = vpack.c.b16 %v6838, %v6837
    %v6922 = vpack.c.b16 %v6840, %v6839
    %v6923 = vpack.c.b16 %v6841, %v6841
    %v6924 = vpack.c.b16 %v6843, %v6842
    %v6925 = vpack.c.b16 %v6845, %v6844
    %v6926 = vpack.c.b16 %v6847, %v6846
    %v6927 = vpack.c.b16 %v6848, %v6848
    %v6928 = vpack.c.b16 %v6850, %v6849
    %v6929 = vpack.c.b16 %v6852, %v6851
    %v6930 = vpack.c.b16 %v6854, %v6853
    %v6931 = vpack.c.b16 %v6855, %v6855
    %v6932 = vpack.c.b16 %v6857, %v6856
    %v6933 = vpack.c.b16 %v6859, %v6858
    %v6934 = vpack.c.b16 %v6861, %v6860
    %v6935 = vpack.c.b16 %v6862, %v6862
    %v6936 = vpack.c.b16 %v6864, %v6863
    %v6937 = vpack.c.b16 %v6866, %v6865
    %v6938 = vpack.c.b16 %v6868, %v6867
    %v6939 = vpack.c.b16 %v6869, %v6869
    %v6940 = vpack.c.b16 %v6871, %v6870
    %v6941 = vpack.c.b16 %v6873, %v6872
    %v6942 = vpack.c.b16 %v6875, %v6874
    %v6943 = vpack.c.b16 %v6876, %v6876
    %v6944 = vpack.c.b16 %v6878, %v6877
    %v6945 = vpack.c.b16 %v6880, %v6879
    %v6946 = vpack.c.b16 %v6882, %v6881
    %v6947 = vpack.c.b16 %v6883, %v6883
    %7012 = vst [vmem:[%s10] sm:$0xff] %v6884
    %7013 = vst [vmem:[%s10 + $0x8] sm:$0xff] %v6885
    %7014 = vst [vmem:[%s10 + $0x10] sm:$0xff] %v6886
    %vm7015 = vcmask 125952
    %7016 = vst.msk [vmem:[%s10 + $0x18] sm:$0xf] %vm7015, %v6887
    %7017 = vst [vmem:[%s10 + $0x1c] sm:$0xff] %v6888
    %7018 = vst [vmem:[%s10 + $0x24] sm:$0xff] %v6889
    %7019 = vst [vmem:[%s10 + $0x2c] sm:$0xff] %v6890
    %7020 = vst.msk [vmem:[%s10 + $0x34] sm:$0xf] %vm7015, %v6891
    %7021 = vst [vmem:[%s10 + $0x38] sm:$0xff] %v6892
    %7022 = vst [vmem:[%s10 + $0x40] sm:$0xff] %v6893
    %7023 = vst [vmem:[%s10 + $0x48] sm:$0xff] %v6894
    %7024 = vst.msk [vmem:[%s10 + $0x50] sm:$0xf] %vm7015, %v6895
    %7025 = vst [vmem:[%s10 + $0x54] sm:$0xff] %v6896
    %7026 = vst [vmem:[%s10 + $0x5c] sm:$0xff] %v6897
    %7027 = vst [vmem:[%s10 + $0x64] sm:$0xff] %v6898
    %7028 = vst.msk [vmem:[%s10 + $0x6c] sm:$0xf] %vm7015, %v6899
    %7029 = vst [vmem:[%s10 + $0x70] sm:$0xff] %v6900
    %7030 = vst [vmem:[%s10 + $0x78] sm:$0xff] %v6901
    %7031 = vst [vmem:[%s10 + $0x80] sm:$0xff] %v6902
    %7032 = vst.msk [vmem:[%s10 + $0x88] sm:$0xf] %vm7015, %v6903
    %7033 = vst [vmem:[%s10 + $0x8c] sm:$0xff] %v6904
    %7034 = vst [vmem:[%s10 + $0x94] sm:$0xff] %v6905
    %7035 = vst [vmem:[%s10 + $0x9c] sm:$0xff] %v6906
    %7036 = vst.msk [vmem:[%s10 + $0xa4] sm:$0xf] %vm7015, %v6907
    %7037 = vst [vmem:[%s10 + $0xa8] sm:$0xff] %v6908
    %7038 = vst [vmem:[%s10 + $0xb0] sm:$0xff] %v6909
    %7039 = vst [vmem:[%s10 + $0xb8] sm:$0xff] %v6910
    %7040 = vst.msk [vmem:[%s10 + $0xc0] sm:$0xf] %vm7015, %v6911
    %7041 = vst [vmem:[%s10 + $0xc4] sm:$0xff] %v6912
    %7042 = vst [vmem:[%s10 + $0xcc] sm:$0xff] %v6913
    %7043 = vst [vmem:[%s10 + $0xd4] sm:$0xff] %v6914
    %7044 = vst.msk [vmem:[%s10 + $0xdc] sm:$0xf] %vm7015, %v6915
    %7045 = vst [vmem:[%s10 + $0xe0] sm:$0xff] %v6916
    %7046 = vst [vmem:[%s10 + $0xe8] sm:$0xff] %v6917
    %7047 = vst [vmem:[%s10 + $0xf0] sm:$0xff] %v6918
    %7048 = vst.msk [vmem:[%s10 + $0xf8] sm:$0xf] %vm7015, %v6919
    %7049 = vst [vmem:[%s10 + $0xfc] sm:$0xff] %v6920
    %7050 = vst [vmem:[%s10 + $0x104] sm:$0xff] %v6921
    %7051 = vst [vmem:[%s10 + $0x10c] sm:$0xff] %v6922
    %7052 = vst.msk [vmem:[%s10 + $0x114] sm:$0xf] %vm7015, %v6923
    %7053 = vst [vmem:[%s10 + $0x118] sm:$0xff] %v6924
    %7054 = vst [vmem:[%s10 + $0x120] sm:$0xff] %v6925
    %7055 = vst [vmem:[%s10 + $0x128] sm:$0xff] %v6926
    %7056 = vst.msk [vmem:[%s10 + $0x130] sm:$0xf] %vm7015, %v6927
    %7057 = vst [vmem:[%s10 + $0x134] sm:$0xff] %v6928
    %7058 = vst [vmem:[%s10 + $0x13c] sm:$0xff] %v6929
    %7059 = vst [vmem:[%s10 + $0x144] sm:$0xff] %v6930
    %7060 = vst.msk [vmem:[%s10 + $0x14c] sm:$0xf] %vm7015, %v6931
    %7061 = vst [vmem:[%s10 + $0x150] sm:$0xff] %v6932
    %7062 = vst [vmem:[%s10 + $0x158] sm:$0xff] %v6933
    %7063 = vst [vmem:[%s10 + $0x160] sm:$0xff] %v6934
    %7064 = vst.msk [vmem:[%s10 + $0x168] sm:$0xf] %vm7015, %v6935
    %7065 = vst [vmem:[%s10 + $0x16c] sm:$0xff] %v6936
    %7066 = vst [vmem:[%s10 + $0x174] sm:$0xff] %v6937
    %7067 = vst [vmem:[%s10 + $0x17c] sm:$0xff] %v6938
    %7068 = vst.msk [vmem:[%s10 + $0x184] sm:$0xf] %vm7015, %v6939
    %7069 = vst [vmem:[%s10 + $0x188] sm:$0xff] %v6940
    %7070 = vst [vmem:[%s10 + $0x190] sm:$0xff] %v6941
    %7071 = vst [vmem:[%s10 + $0x198] sm:$0xff] %v6942
    %7072 = vst.msk [vmem:[%s10 + $0x1a0] sm:$0xf] %vm7015, %v6943
    %7073 = vst [vmem:[%s10 + $0x1a4] sm:$0xff] %v6944
    %7074 = vst [vmem:[%s10 + $0x1ac] sm:$0xff] %v6945
    %7075 = vst [vmem:[%s10 + $0x1b4] sm:$0xff] %v6946
    %7076 = vst.msk [vmem:[%s10 + $0x1bc] sm:$0xf] %vm7015, %v6947
    // Predicated region
    $region42: #{tpu_custom_call.1} parent=1 // pred_check
      _
    $region43: #{tpu_custom_call.1} parent=1 // pred_check_branch
      %7078 = sbr.rel (0) target = $region45
    $region44: #{tpu_custom_call.1} parent=1 // pred_region
      _
    $region45: #{tpu_custom_call.1} parent=1 // pred_fallthru
      _
    // Predicated region
    $region46: #{tpu_custom_call.1} parent=1 // pred_check
      _
    $region47: #{tpu_custom_call.1} parent=1 // pred_check_branch
      %7080 = sbr.rel (0) target = $region49
    $region48: #{tpu_custom_call.1} parent=1 // pred_region
      %s7082 = ssub.s32 2048, 2048
      %7083 = vsyncadd [#allocation3], %s7082
      %s7084 = sshll.u32 [#allocation2], 4
      %s7085 = int_to_ptr.vmem [resolvable:$true] %s7084
      %7090 = dma.vmem_to_hbm [thread:$0]  %s7085, 2048, %s11, [#allocation3], 128, 128, 8
    $region49: #{tpu_custom_call.1} parent=1 // pred_fallthru
      _
    // Predicated region
    $region50: #{tpu_custom_call.1} parent=1 // pred_check
      _
    $region51: #{tpu_custom_call.1} parent=1 // pred_check_branch
      %7092 = sbr.rel (0) target = $region53
    $region52: #{tpu_custom_call.1} parent=1 // pred_region
      _
    $region53: #{tpu_custom_call.1} parent=1 // pred_fallthru
      _
    // Predicated region
    $region54: #{tpu_custom_call.1} parent=1 // pred_check
      _
    $region55: #{tpu_custom_call.1} parent=1 // pred_check_branch
      %7094 = sbr.rel (0) target = $region57
    $region56: #{tpu_custom_call.1} parent=1 // pred_region
      %7095 = dma.done [#allocation3], 2048
    $region57: #{tpu_custom_call.1} parent=1 // pred_fallthru
      _
    %7096 = vsyncpa [#allocation3], 1

</llo_original>
